<compile_context>
chip_gen: v6e
topology: v6e:2x2x1
jax: 0.10.0
libtpu: 0.0.40
codegen_flags: <defaults>
</compile_context>

<pallas_src>
import jax
import jax.numpy as jnp
from jax import lax
from jax.experimental import pallas as pl
from jax.experimental.pallas import tpu as pltpu


SUBLANE = 8  # f32 sublane granule; batch is padded to a multiple of this


# ----------------------------------------------------------------------------
# Fused 2-layer bidirectional LSTM kernel
# ----------------------------------------------------------------------------
def _bilstm2_kernel(x_ref, wih0_ref, whh0_ref, b0_ref,
                    wih1_ref, whh1_ref, b1_ref,
                    h0_ref, c0_ref,
                    hn_ref,
                    gx_sc, seq_sc):
    """Fused 2-layer bidirectional LSTM recurrence (batch padded to Bp rows).

    Layout (gate-major, direction-minor along lanes):
      x_ref  : (T*Bp, I)     time-major; row block t holds x[t]
      wih{l} : (in_l, 8H)    input->gates, cols [i_f,i_r,f_f,f_r,g_f,g_r,o_f,o_r]
      whh{l} : (2H, 8H)      block-diagonal hidden->gates (fwd rows 0:H, rev H:2H)
      b{l}   : (1, 8H)       combined bias (b_ih + b_hh), fused layout
      h0/c0  : (2, Bp, 2H)   per-layer initial state, cols [fwd | rev]
      hn_ref : (2, Bp, 2H)   per-layer final hidden state, cols [fwd | rev]
      gx_sc  : (T*Bp, 8H)    scratch: hoisted input projection (reused per layer)
      seq_sc : (T*Bp, 2H)    scratch: layer-0 bidirectional output sequence
    """
    TBP = x_ref.shape[0]
    BP = h0_ref.shape[1]
    T = TBP // BP
    H2 = h0_ref.shape[2]          # 2H (both directions)
    H = H2 // 2
    G = 4 * H2                    # 8H fused gate width

    # Within each 2H gate block: first H lanes = forward stream (reads time t),
    # last H lanes = reverse stream (reads time T-1-t).
    dir_mask = (lax.broadcasted_iota(jnp.int32, (BP, G), 1) % H2) < H

    def run_layer(whh, h_init, c_init, write_seq):
        def step(t, carry):
            h, c = carry
            t_rev = T - 1 - t
            row_f = pl.multiple_of(t * BP, BP)
            row_r = pl.multiple_of(t_rev * BP, BP)
            gx_t = jnp.where(dir_mask,
                             gx_sc[pl.ds(row_f, BP), :],
                             gx_sc[pl.ds(row_r, BP), :])
            gates = jnp.dot(h, whh, preferred_element_type=jnp.float32) + gx_t
            i_g = jax.nn.sigmoid(gates[:, 0 * H2:1 * H2])
            f_g = jax.nn.sigmoid(gates[:, 1 * H2:2 * H2])
            g_g = jnp.tanh(gates[:, 2 * H2:3 * H2])
            o_g = jax.nn.sigmoid(gates[:, 3 * H2:4 * H2])
            c_new = f_g * c + i_g * g_g
            h_new = o_g * jnp.tanh(c_new)
            if write_seq:
                # out[t] = [h_fwd(t) | h_rev(t)]; the reverse stream at step t
                # corresponds to input position T-1-t.
                seq_sc[pl.ds(row_f, BP), pl.ds(0, H)] = h_new[:, 0:H]
                seq_sc[pl.ds(row_r, BP), pl.ds(H, H)] = h_new[:, H:H2]
            return h_new, c_new

        return lax.fori_loop(0, T, step, (h_init, c_init), unroll=True)

    # ---- Layer 0: hoisted input projection (one big matmul, bias folded) ---
    gx_sc[...] = (jnp.dot(x_ref[...], wih0_ref[...],
                          preferred_element_type=jnp.float32) + b0_ref[...])
    h1, _c1 = run_layer(whh0_ref[...], h0_ref[0], c0_ref[0], write_seq=True)
    hn_ref[0] = h1

    # ---- Layer 1: consumes layer-0's bidirectional output from VMEM -------
    gx_sc[...] = (jnp.dot(seq_sc[...], wih1_ref[...],
                          preferred_element_type=jnp.float32) + b1_ref[...])
    h2, _c2 = run_layer(whh1_ref[...], h0_ref[1], c0_ref[1], write_seq=False)
    hn_ref[1] = h2


def _vmem():
    return pl.BlockSpec(memory_space=pltpu.MemorySpace.VMEM)


def bilstm2_pallas(x_p, wih0, whh0, b0, wih1, whh1, b1, h0_p, c0_p):
    TBP = x_p.shape[0]
    L, BP, H2 = h0_p.shape
    G = 4 * H2
    return pl.pallas_call(
        _bilstm2_kernel,
        out_shape=jax.ShapeDtypeStruct((L, BP, H2), jnp.float32),
        in_specs=[_vmem()] * 9,
        out_specs=_vmem(),
        scratch_shapes=[pltpu.VMEM((TBP, G), jnp.float32),
                        pltpu.VMEM((TBP, H2), jnp.float32)],
    )(x_p, wih0, whh0, b0, wih1, whh1, b1, h0_p, c0_p)


# ----------------------------------------------------------------------------
# Parameter fusion (PyTorch-layout params -> fused kernel layout)
# ----------------------------------------------------------------------------
def _fuse_dirs_cols(wf, wr, H):
    """(in,4H)+(in,4H) -> (in,8H), gate-major / direction-minor columns."""
    in_f = wf.shape[0]
    return jnp.stack([wf.reshape(in_f, 4, H), wr.reshape(in_f, 4, H)],
                     axis=2).reshape(in_f, 8 * H)


def _fuse_whh(whh_f, whh_r, H):
    """Block-diagonal (2H,8H): fwd state rows feed fwd gate cols, rev feed rev."""
    W = jnp.zeros((2 * H, 4, 2, H), dtype=whh_f.dtype)
    W = W.at[:H, :, 0, :].set(whh_f.reshape(H, 4, H))
    W = W.at[H:, :, 1, :].set(whh_r.reshape(H, 4, H))
    return W.reshape(2 * H, 8 * H)


def fuse_params_for_kernel(params, *, hidden_units, hidden_layers, num_directions):
    assert hidden_layers == 2 and num_directions == 2
    H = hidden_units
    fused = {}
    for layer in range(hidden_layers):
        wih_f, whh_f, b_f = params["lstm"][layer * 2 + 0]
        wih_r, whh_r, b_r = params["lstm"][layer * 2 + 1]
        fused[f"wih{layer}"] = _fuse_dirs_cols(wih_f, wih_r, H)
        fused[f"whh{layer}"] = _fuse_whh(whh_f, whh_r, H)
        fused[f"b{layer}"] = _fuse_dirs_cols(b_f, b_r, H)
    L = hidden_layers
    B = params["h0"].shape[1]
    h0 = params["h0"].reshape(L, 2, B, H)
    c0 = params["c0"].reshape(L, 2, B, H)
    fused["h0"] = jnp.concatenate([h0[:, 0], h0[:, 1]], axis=-1)   # (L, B, 2H)
    fused["c0"] = jnp.concatenate([c0[:, 0], c0[:, 1]], axis=-1)
    return fused


# ----------------------------------------------------------------------------
# SimpleLSTM forward using the fused Pallas kernel
# ----------------------------------------------------------------------------
def simple_lstm_forward_pallas(params, x, *, hidden_units, hidden_layers,
                               num_directions):
    assert hidden_layers == 2 and num_directions == 2, (
        "fused kernel is specialized to the 2-layer bidirectional config")
    B, T, I = x.shape
    H = hidden_units
    BP = ((B + SUBLANE - 1) // SUBLANE) * SUBLANE   # pad batch to sublane granule

    fused = fuse_params_for_kernel(params, hidden_units=H,
                                   hidden_layers=hidden_layers,
                                   num_directions=num_directions)

    x_tm = jnp.transpose(x, (1, 0, 2))                               # (T, B, I)
    x_p = jnp.zeros((T, BP, I), x.dtype).at[:, :B, :].set(x_tm)
    x_p = x_p.reshape(T * BP, I)
    h0_p = jnp.zeros((hidden_layers, BP, 2 * H), jnp.float32
                     ).at[:, :B, :].set(fused["h0"])
    c0_p = jnp.zeros((hidden_layers, BP, 2 * H), jnp.float32
                     ).at[:, :B, :].set(fused["c0"])

    hn_p = bilstm2_pallas(x_p, fused["wih0"], fused["whh0"], fused["b0"],
                          fused["wih1"], fused["whh1"], fused["b1"],
                          h0_p, c0_p)
    hn = hn_p[:, :B, :]                                              # (L, B, 2H)

    # Rebuild PyTorch h_n layout (L*D, B, H) and reproduce the module's
    # (row-major, batch-interleaving) h_n.reshape(-1, H*D*L) exactly, then the
    # tiny Linear head in plain JAX.
    h_n = hn.reshape(hidden_layers, B, num_directions, H)
    h_n = jnp.transpose(h_n, (0, 2, 1, 3)).reshape(
        hidden_layers * num_directions, B, H)
    hidden_reshape = h_n.reshape(-1, H * num_directions * hidden_layers)
    # TODO(synk): inter-layer dropout of nn.LSTM is train-only; no-op here.
    return hidden_reshape @ params["w_out"] + params["b_out"]


# ----------------------------------------------------------------------------
# Pure-JAX reference (correctness check only)
# ----------------------------------------------------------------------------
def lstm_layer_ref(x_tm, w_ih, w_hh, b, h0, c0):
    T = x_tm.shape[0]
    H = h0.shape[-1]
    h, c = h0, c0
    outs = []
    for t in range(T):
        gates = x_tm[t] @ w_ih + h @ w_hh + b
        i_g = jax.nn.sigmoid(gates[:, 0 * H:1 * H])
        f_g = jax.nn.sigmoid(gates[:, 1 * H:2 * H])
        g_g = jnp.tanh(gates[:, 2 * H:3 * H])
        o_g = jax.nn.sigmoid(gates[:, 3 * H:4 * H])
        c = f_g * c + i_g * g_g
        h = o_g * jnp.tanh(c)
        outs.append(h)
    return jnp.stack(outs), h, c


def simple_lstm_forward_ref(params, x, *, hidden_units, hidden_layers,
                            num_directions):
    h0_all, c0_all = params["h0"], params["c0"]
    layer_input = x
    h_n_list = []
    for layer in range(hidden_layers):
        dir_outputs = []
        for d in range(num_directions):
            idx = layer * num_directions + d
            w_ih, w_hh, b = params["lstm"][idx]
            x_tm = jnp.transpose(layer_input, (1, 0, 2))
            if d == 1:
                x_tm = x_tm[::-1]
            out_tm, h_n, _ = lstm_layer_ref(x_tm, w_ih, w_hh, b,
                                            h0_all[idx], c0_all[idx])
            if d == 1:
                out_tm = out_tm[::-1]
            dir_outputs.append(jnp.transpose(out_tm, (1, 0, 2)))
            h_n_list.append(h_n)
        layer_input = jnp.concatenate(dir_outputs, axis=-1)
    h_n = jnp.stack(h_n_list, axis=0)
    hidden_reshape = h_n.reshape(-1, hidden_units * num_directions * hidden_layers)
    return hidden_reshape @ params["w_out"] + params["b_out"]


# ----------------------------------------------------------------------------
# Deterministic parameter init (shapes match nn.LSTM / nn.Linear)
# ----------------------------------------------------------------------------
def init_params(key, *, input_dims, hidden_units, hidden_layers,
                num_directions, out, batch_size):
    H = hidden_units
    k_lstm = 1.0 / jnp.sqrt(H)
    params = {"lstm": []}
    for layer in range(hidden_layers):
        in_f = input_dims if layer == 0 else H * num_directions
        for _d in range(num_directions):
            key, k1, k2, k3, k4 = jax.random.split(key, 5)
            w_ih = jax.random.uniform(k1, (in_f, 4 * H), jnp.float32,
                                      -k_lstm, k_lstm)
            w_hh = jax.random.uniform(k2, (H, 4 * H), jnp.float32,
                                      -k_lstm, k_lstm)
            b_ih = jax.random.uniform(k3, (1, 4 * H), jnp.float32,
                                      -k_lstm, k_lstm)
            b_hh = jax.random.uniform(k4, (1, 4 * H), jnp.float32,
                                      -k_lstm, k_lstm)
            params["lstm"].append((w_ih, w_hh, b_ih + b_hh))

    feat = H * num_directions * hidden_layers
    k_lin = 1.0 / jnp.sqrt(feat)
    key, k1, k2 = jax.random.split(key, 3)
    params["w_out"] = jax.random.uniform(k1, (feat, out), jnp.float32,
                                         -k_lin, k_lin)
    params["b_out"] = jax.random.uniform(k2, (1, out), jnp.float32,
                                         -k_lin, k_lin)

    # init_hidden: xavier_normal_-style init on (L*D, B, H) tensors.
    ld = hidden_layers * num_directions
    fan_in, fan_out = batch_size * H, ld * H
    std = jnp.sqrt(2.0 / (fan_in + fan_out))
    key, k1, k2 = jax.random.split(key, 3)
    params["h0"] = std * jax.random.normal(k1, (ld, batch_size, H), jnp.float32)
    params["c0"] = std * jax.random.normal(k2, (ld, batch_size, H), jnp.float32)
    return params


# ----------------------------------------------------------------------------
if __name__ == "__main__":
    INPUT_DIMS = 16
    HIDDEN_UNITS = 32
    HIDDEN_LAYERS = 2
    OUT = 8
    BATCH = 2
    SEQ = 8
    BIDIRECTIONAL = True
    NUM_DIRECTIONS = 2 if BIDIRECTIONAL else 1

    key = jax.random.PRNGKey(0)
    key, kx, kp = jax.random.split(key, 3)
    x = jax.random.normal(kx, (BATCH, SEQ, INPUT_DIMS), jnp.float32)

    params = init_params(kp, input_dims=INPUT_DIMS, hidden_units=HIDDEN_UNITS,
                         hidden_layers=HIDDEN_LAYERS,
                         num_directions=NUM_DIRECTIONS, out=OUT,
                         batch_size=BATCH)

    raw_out = simple_lstm_forward_pallas(
        params, x, hidden_units=HIDDEN_UNITS, hidden_layers=HIDDEN_LAYERS,
        num_directions=NUM_DIRECTIONS)
    raw_out = jax.block_until_ready(raw_out)
    assert raw_out.shape == (BATCH, OUT), raw_out.shape

    ref_out = simple_lstm_forward_ref(
        params, x, hidden_units=HIDDEN_UNITS, hidden_layers=HIDDEN_LAYERS,
        num_directions=NUM_DIRECTIONS)
    ref_out = jax.block_until_ready(ref_out)
    assert jnp.allclose(raw_out, ref_out, atol=1e-2, rtol=1e-2), (
        "kernel vs reference mismatch")

    print("KERNEL_OK")
</pallas_src>

<mosaic_0001>
module attributes {stable_mosaic.version = 11 : i64} {
  func.func @_bilstm2_kernel(%arg0: memref<64x16xf32, #tpu.memory_space<vmem>>, %arg1: memref<16x256xf32, #tpu.memory_space<vmem>>, %arg2: memref<64x256xf32, #tpu.memory_space<vmem>>, %arg3: memref<1x256xf32, #tpu.memory_space<vmem>>, %arg4: memref<64x256xf32, #tpu.memory_space<vmem>>, %arg5: memref<64x256xf32, #tpu.memory_space<vmem>>, %arg6: memref<1x256xf32, #tpu.memory_space<vmem>>, %arg7: memref<2x8x64xf32, #tpu.memory_space<vmem>>, %arg8: memref<2x8x64xf32, #tpu.memory_space<vmem>>, %arg9: memref<2x8x64xf32, #tpu.memory_space<vmem>>, %arg10: memref<64x256xf32, #tpu.memory_space<vmem>>, %arg11: memref<64x64xf32, #tpu.memory_space<vmem>>) attributes {dimension_semantics = [], scalar_prefetch = 0 : i64, scratch_operands = 2 : i64, tpu.core_type = #tpu.core_type<tc>} {
    %0 = tpu.iota {dimensions = array<i32: 1>} : vector<8x256xi32>
    %c64_i32 = arith.constant 64 : i32
    %c0_i32 = arith.constant 0 : i32
    %1 = arith.cmpi eq, %c64_i32, %c0_i32 : i32
    %c1_i32 = arith.constant 1 : i32
    %2 = arith.select %1, %c1_i32, %c64_i32 : i32
    %3 = vector.broadcast %2 : i32 to vector<8x256xi32>
    %4 = arith.remsi %0, %3 : vector<8x256xi32>
    %c0_i32_0 = arith.constant 0 : i32
    %5 = vector.broadcast %c0_i32_0 : i32 to vector<8x256xi32>
    %6 = arith.cmpi ne, %4, %5 : vector<8x256xi32>
    %c0_i32_1 = arith.constant 0 : i32
    %7 = vector.broadcast %c0_i32_1 : i32 to vector<8x256xi32>
    %8 = arith.cmpi slt, %4, %7 : vector<8x256xi32>
    %c0_i32_2 = arith.constant 0 : i32
    %9 = arith.cmpi slt, %2, %c0_i32_2 : i32
    %10 = vector.broadcast %9 : i1 to vector<8x256xi1>
    %11 = vector.broadcast %10 : vector<8x256xi1> to vector<8x256xi1>
    %12 = arith.xori %8, %11 : vector<8x256xi1>
    %13 = arith.andi %12, %6 : vector<8x256xi1>
    %14 = vector.broadcast %2 : i32 to vector<8x256xi32>
    %15 = arith.addi %4, %14 : vector<8x256xi32>
    %16 = arith.select %13, %15, %4 : vector<8x256xi1>, vector<8x256xi32>
    %c32_i32 = arith.constant 32 : i32
    %17 = vector.broadcast %c32_i32 : i32 to vector<8x256xi32>
    %18 = arith.cmpi slt, %16, %17 : vector<8x256xi32>
    %c0 = arith.constant 0 : index
    %c0_3 = arith.constant 0 : index
    %19 = vector.load %arg0[%c0, %c0_3] : memref<64x16xf32, #tpu.memory_space<vmem>>, vector<64x16xf32>
    %c0_4 = arith.constant 0 : index
    %c0_5 = arith.constant 0 : index
    %20 = vector.load %arg1[%c0_4, %c0_5] : memref<16x256xf32, #tpu.memory_space<vmem>>, vector<16x256xf32>
    %cst = arith.constant dense<0.000000e+00> : vector<64x256xf32>
    %21 = tpu.matmul %19, %20, %cst {dimension_numbers = #tpu.dot_dimension_numbers<[1], [0], [0], [1], [0, 0, 1, 1], [], []>} : vector<64x16xf32>, vector<16x256xf32>, vector<64x256xf32> -> vector<64x256xf32>
    %c0_6 = arith.constant 0 : index
    %c0_7 = arith.constant 0 : index
    %22 = vector.load %arg3[%c0_6, %c0_7] : memref<1x256xf32, #tpu.memory_space<vmem>>, vector<1x256xf32>
    %23 = vector.broadcast %22 : vector<1x256xf32> to vector<64x256xf32>
    %24 = arith.addf %21, %23 : vector<64x256xf32>
    %c0_8 = arith.constant 0 : index
    %c0_9 = arith.constant 0 : index
    %25 = vector.load %arg10[%c0_8, %c0_9] : memref<64x256xf32, #tpu.memory_space<vmem>>, vector<64x256xf32>
    tpu.vector_store %arg10[%c0_8, %c0_9], %24 {strides = array<i32>} : memref<64x256xf32, #tpu.memory_space<vmem>>, vector<64x256xf32>,
    %c0_10 = arith.constant 0 : index
    %c0_11 = arith.constant 0 : index
    %26 = vector.load %arg2[%c0_10, %c0_11] : memref<64x256xf32, #tpu.memory_space<vmem>>, vector<64x256xf32>
    %c0_12 = arith.constant 0 : index
    %c0_13 = arith.constant 0 : index
    %c0_14 = arith.constant 0 : index
    %27 = vector.load %arg7[%c0_12, %c0_13, %c0_14] : memref<2x8x64xf32, #tpu.memory_space<vmem>>, vector<1x8x64xf32>
    %28 = vector.shape_cast %27 : vector<1x8x64xf32> to vector<8x64xf32>
    %c0_15 = arith.constant 0 : index
    %c0_16 = arith.constant 0 : index
    %c0_17 = arith.constant 0 : index
    %29 = vector.load %arg8[%c0_15, %c0_16, %c0_17] : memref<2x8x64xf32, #tpu.memory_space<vmem>>, vector<1x8x64xf32>
    %30 = vector.shape_cast %29 : vector<1x8x64xf32> to vector<8x64xf32>
    %c0_i32_18 = arith.constant 0 : i32
    %c7_i32 = arith.constant 7 : i32
    %31 = arith.subi %c7_i32, %c0_i32_18 : i32
    %c8_i32 = arith.constant 8 : i32
    %32 = arith.muli %c0_i32_18, %c8_i32 : i32
    %33 = tpu.assume_multiple %32, 8 : i32
    %c8_i32_19 = arith.constant 8 : i32
    %34 = arith.muli %31, %c8_i32_19 : i32
    %35 = tpu.assume_multiple %34, 8 : i32
    %36 = arith.index_cast %33 : i32 to index
    %c0_20 = arith.constant 0 : index
    %37 = vector.load %arg10[%36, %c0_20] : memref<64x256xf32, #tpu.memory_space<vmem>>, vector<8x256xf32>
    %38 = arith.index_cast %35 : i32 to index
    %c0_21 = arith.constant 0 : index
    %39 = vector.load %arg10[%38, %c0_21] : memref<64x256xf32, #tpu.memory_space<vmem>>, vector<8x256xf32>
    %40 = arith.select %18, %37, %39 : vector<8x256xi1>, vector<8x256xf32>
    %cst_22 = arith.constant dense<0.000000e+00> : vector<8x256xf32>
    %41 = tpu.matmul %28, %26, %cst_22 {dimension_numbers = #tpu.dot_dimension_numbers<[1], [0], [0], [1], [0, 0, 1, 1], [], []>} : vector<8x64xf32>, vector<64x256xf32>, vector<8x256xf32> -> vector<8x256xf32>
    %42 = arith.addf %41, %40 : vector<8x256xf32>
    %43 = vector.extract_strided_slice %42 {offsets = [0, 0], sizes = [8, 64], strides = [1, 1]} : vector<8x256xf32> to vector<8x64xf32>
    %44 = arith.negf %43 : vector<8x64xf32>
    %45 = math.exp %44 : vector<8x64xf32>
    %cst_23 = arith.constant 1.000000e+00 : f32
    %46 = vector.broadcast %cst_23 : f32 to vector<8x64xf32>
    %47 = arith.addf %46, %45 : vector<8x64xf32>
    %48 = arith.divf %46, %47 : vector<8x64xf32>
    %49 = vector.extract_strided_slice %42 {offsets = [0, 64], sizes = [8, 64], strides = [1, 1]} : vector<8x256xf32> to vector<8x64xf32>
    %50 = arith.negf %49 : vector<8x64xf32>
    %51 = math.exp %50 : vector<8x64xf32>
    %cst_24 = arith.constant 1.000000e+00 : f32
    %52 = vector.broadcast %cst_24 : f32 to vector<8x64xf32>
    %53 = arith.addf %52, %51 : vector<8x64xf32>
    %54 = arith.divf %52, %53 : vector<8x64xf32>
    %55 = vector.extract_strided_slice %42 {offsets = [0, 128], sizes = [8, 64], strides = [1, 1]} : vector<8x256xf32> to vector<8x64xf32>
    %56 = math.tanh %55 : vector<8x64xf32>
    %57 = vector.extract_strided_slice %42 {offsets = [0, 192], sizes = [8, 64], strides = [1, 1]} : vector<8x256xf32> to vector<8x64xf32>
    %58 = arith.negf %57 : vector<8x64xf32>
    %59 = math.exp %58 : vector<8x64xf32>
    %cst_25 = arith.constant 1.000000e+00 : f32
    %60 = vector.broadcast %cst_25 : f32 to vector<8x64xf32>
    %61 = arith.addf %60, %59 : vector<8x64xf32>
    %62 = arith.divf %60, %61 : vector<8x64xf32>
    %63 = arith.mulf %54, %30 : vector<8x64xf32>
    %64 = arith.mulf %48, %56 : vector<8x64xf32>
    %65 = arith.addf %63, %64 : vector<8x64xf32>
    %66 = math.tanh %65 : vector<8x64xf32>
    %67 = arith.mulf %62, %66 : vector<8x64xf32>
    %68 = vector.extract_strided_slice %67 {offsets = [0, 0], sizes = [8, 32], strides = [1, 1]} : vector<8x64xf32> to vector<8x32xf32>
    %69 = arith.index_cast %33 : i32 to index
    %c0_26 = arith.constant 0 : index
    %70 = vector.load %arg11[%69, %c0_26] : memref<64x64xf32, #tpu.memory_space<vmem>>, vector<8x32xf32>
    tpu.vector_store %arg11[%69, %c0_26], %68 {strides = array<i32>} : memref<64x64xf32, #tpu.memory_space<vmem>>, vector<8x32xf32>,
    %71 = vector.extract_strided_slice %67 {offsets = [0, 32], sizes = [8, 32], strides = [1, 1]} : vector<8x64xf32> to vector<8x32xf32>
    %72 = arith.index_cast %35 : i32 to index
    %c32 = arith.constant 32 : index
    %73 = vector.load %arg11[%72, %c32] : memref<64x64xf32, #tpu.memory_space<vmem>>, vector<8x32xf32>
    tpu.vector_store %arg11[%72, %c32], %71 {strides = array<i32>} : memref<64x64xf32, #tpu.memory_space<vmem>>, vector<8x32xf32>,
    %c1_i32_27 = arith.constant 1 : i32
    %c7_i32_28 = arith.constant 7 : i32
    %74 = arith.subi %c7_i32_28, %c1_i32_27 : i32
    %c8_i32_29 = arith.constant 8 : i32
    %75 = arith.muli %c1_i32_27, %c8_i32_29 : i32
    %76 = tpu.assume_multiple %75, 8 : i32
    %c8_i32_30 = arith.constant 8 : i32
    %77 = arith.muli %74, %c8_i32_30 : i32
    %78 = tpu.assume_multiple %77, 8 : i32
    %79 = arith.index_cast %76 : i32 to index
    %c0_31 = arith.constant 0 : index
    %80 = vector.load %arg10[%79, %c0_31] : memref<64x256xf32, #tpu.memory_space<vmem>>, vector<8x256xf32>
    %81 = arith.index_cast %78 : i32 to index
    %c0_32 = arith.constant 0 : index
    %82 = vector.load %arg10[%81, %c0_32] : memref<64x256xf32, #tpu.memory_space<vmem>>, vector<8x256xf32>
    %83 = arith.select %18, %80, %82 : vector<8x256xi1>, vector<8x256xf32>
    %cst_33 = arith.constant dense<0.000000e+00> : vector<8x256xf32>
    %84 = tpu.matmul %67, %26, %cst_33 {dimension_numbers = #tpu.dot_dimension_numbers<[1], [0], [0], [1], [0, 0, 1, 1], [], []>} : vector<8x64xf32>, vector<64x256xf32>, vector<8x256xf32> -> vector<8x256xf32>
    %85 = arith.addf %84, %83 : vector<8x256xf32>
    %86 = vector.extract_strided_slice %85 {offsets = [0, 0], sizes = [8, 64], strides = [1, 1]} : vector<8x256xf32> to vector<8x64xf32>
    %87 = arith.negf %86 : vector<8x64xf32>
    %88 = math.exp %87 : vector<8x64xf32>
    %cst_34 = arith.constant 1.000000e+00 : f32
    %89 = vector.broadcast %cst_34 : f32 to vector<8x64xf32>
    %90 = arith.addf %89, %88 : vector<8x64xf32>
    %91 = arith.divf %89, %90 : vector<8x64xf32>
    %92 = vector.extract_strided_slice %85 {offsets = [0, 64], sizes = [8, 64], strides = [1, 1]} : vector<8x256xf32> to vector<8x64xf32>
    %93 = arith.negf %92 : vector<8x64xf32>
    %94 = math.exp %93 : vector<8x64xf32>
    %cst_35 = arith.constant 1.000000e+00 : f32
    %95 = vector.broadcast %cst_35 : f32 to vector<8x64xf32>
    %96 = arith.addf %95, %94 : vector<8x64xf32>
    %97 = arith.divf %95, %96 : vector<8x64xf32>
    %98 = vector.extract_strided_slice %85 {offsets = [0, 128], sizes = [8, 64], strides = [1, 1]} : vector<8x256xf32> to vector<8x64xf32>
    %99 = math.tanh %98 : vector<8x64xf32>
    %100 = vector.extract_strided_slice %85 {offsets = [0, 192], sizes = [8, 64], strides = [1, 1]} : vector<8x256xf32> to vector<8x64xf32>
    %101 = arith.negf %100 : vector<8x64xf32>
    %102 = math.exp %101 : vector<8x64xf32>
    %cst_36 = arith.constant 1.000000e+00 : f32
    %103 = vector.broadcast %cst_36 : f32 to vector<8x64xf32>
    %104 = arith.addf %103, %102 : vector<8x64xf32>
    %105 = arith.divf %103, %104 : vector<8x64xf32>
    %106 = arith.mulf %97, %65 : vector<8x64xf32>
    %107 = arith.mulf %91, %99 : vector<8x64xf32>
    %108 = arith.addf %106, %107 : vector<8x64xf32>
    %109 = math.tanh %108 : vector<8x64xf32>
    %110 = arith.mulf %105, %109 : vector<8x64xf32>
    %111 = vector.extract_strided_slice %110 {offsets = [0, 0], sizes = [8, 32], strides = [1, 1]} : vector<8x64xf32> to vector<8x32xf32>
    %112 = arith.index_cast %76 : i32 to index
    %c0_37 = arith.constant 0 : index
    %113 = vector.load %arg11[%112, %c0_37] : memref<64x64xf32, #tpu.memory_space<vmem>>, vector<8x32xf32>
    tpu.vector_store %arg11[%112, %c0_37], %111 {strides = array<i32>} : memref<64x64xf32, #tpu.memory_space<vmem>>, vector<8x32xf32>,
    %114 = vector.extract_strided_slice %110 {offsets = [0, 32], sizes = [8, 32], strides = [1, 1]} : vector<8x64xf32> to vector<8x32xf32>
    %115 = arith.index_cast %78 : i32 to index
    %c32_38 = arith.constant 32 : index
    %116 = vector.load %arg11[%115, %c32_38] : memref<64x64xf32, #tpu.memory_space<vmem>>, vector<8x32xf32>
    tpu.vector_store %arg11[%115, %c32_38], %114 {strides = array<i32>} : memref<64x64xf32, #tpu.memory_space<vmem>>, vector<8x32xf32>,
    %c2_i32 = arith.constant 2 : i32
    %c7_i32_39 = arith.constant 7 : i32
    %117 = arith.subi %c7_i32_39, %c2_i32 : i32
    %c8_i32_40 = arith.constant 8 : i32
    %118 = arith.muli %c2_i32, %c8_i32_40 : i32
    %119 = tpu.assume_multiple %118, 8 : i32
    %c8_i32_41 = arith.constant 8 : i32
    %120 = arith.muli %117, %c8_i32_41 : i32
    %121 = tpu.assume_multiple %120, 8 : i32
    %122 = arith.index_cast %119 : i32 to index
    %c0_42 = arith.constant 0 : index
    %123 = vector.load %arg10[%122, %c0_42] : memref<64x256xf32, #tpu.memory_space<vmem>>, vector<8x256xf32>
    %124 = arith.index_cast %121 : i32 to index
    %c0_43 = arith.constant 0 : index
    %125 = vector.load %arg10[%124, %c0_43] : memref<64x256xf32, #tpu.memory_space<vmem>>, vector<8x256xf32>
    %126 = arith.select %18, %123, %125 : vector<8x256xi1>, vector<8x256xf32>
    %cst_44 = arith.constant dense<0.000000e+00> : vector<8x256xf32>
    %127 = tpu.matmul %110, %26, %cst_44 {dimension_numbers = #tpu.dot_dimension_numbers<[1], [0], [0], [1], [0, 0, 1, 1], [], []>} : vector<8x64xf32>, vector<64x256xf32>, vector<8x256xf32> -> vector<8x256xf32>
    %128 = arith.addf %127, %126 : vector<8x256xf32>
    %129 = vector.extract_strided_slice %128 {offsets = [0, 0], sizes = [8, 64], strides = [1, 1]} : vector<8x256xf32> to vector<8x64xf32>
    %130 = arith.negf %129 : vector<8x64xf32>
    %131 = math.exp %130 : vector<8x64xf32>
    %cst_45 = arith.constant 1.000000e+00 : f32
    %132 = vector.broadcast %cst_45 : f32 to vector<8x64xf32>
    %133 = arith.addf %132, %131 : vector<8x64xf32>
    %134 = arith.divf %132, %133 : vector<8x64xf32>
    %135 = vector.extract_strided_slice %128 {offsets = [0, 64], sizes = [8, 64], strides = [1, 1]} : vector<8x256xf32> to vector<8x64xf32>
    %136 = arith.negf %135 : vector<8x64xf32>
    %137 = math.exp %136 : vector<8x64xf32>
    %cst_46 = arith.constant 1.000000e+00 : f32
    %138 = vector.broadcast %cst_46 : f32 to vector<8x64xf32>
    %139 = arith.addf %138, %137 : vector<8x64xf32>
    %140 = arith.divf %138, %139 : vector<8x64xf32>
    %141 = vector.extract_strided_slice %128 {offsets = [0, 128], sizes = [8, 64], strides = [1, 1]} : vector<8x256xf32> to vector<8x64xf32>
    %142 = math.tanh %141 : vector<8x64xf32>
    %143 = vector.extract_strided_slice %128 {offsets = [0, 192], sizes = [8, 64], strides = [1, 1]} : vector<8x256xf32> to vector<8x64xf32>
    %144 = arith.negf %143 : vector<8x64xf32>
    %145 = math.exp %144 : vector<8x64xf32>
    %cst_47 = arith.constant 1.000000e+00 : f32
    %146 = vector.broadcast %cst_47 : f32 to vector<8x64xf32>
    %147 = arith.addf %146, %145 : vector<8x64xf32>
    %148 = arith.divf %146, %147 : vector<8x64xf32>
    %149 = arith.mulf %140, %108 : vector<8x64xf32>
    %150 = arith.mulf %134, %142 : vector<8x64xf32>
    %151 = arith.addf %149, %150 : vector<8x64xf32>
    %152 = math.tanh %151 : vector<8x64xf32>
    %153 = arith.mulf %148, %152 : vector<8x64xf32>
    %154 = vector.extract_strided_slice %153 {offsets = [0, 0], sizes = [8, 32], strides = [1, 1]} : vector<8x64xf32> to vector<8x32xf32>
    %155 = arith.index_cast %119 : i32 to index
    %c0_48 = arith.constant 0 : index
    %156 = vector.load %arg11[%155, %c0_48] : memref<64x64xf32, #tpu.memory_space<vmem>>, vector<8x32xf32>
    tpu.vector_store %arg11[%155, %c0_48], %154 {strides = array<i32>} : memref<64x64xf32, #tpu.memory_space<vmem>>, vector<8x32xf32>,
    %157 = vector.extract_strided_slice %153 {offsets = [0, 32], sizes = [8, 32], strides = [1, 1]} : vector<8x64xf32> to vector<8x32xf32>
    %158 = arith.index_cast %121 : i32 to index
    %c32_49 = arith.constant 32 : index
    %159 = vector.load %arg11[%158, %c32_49] : memref<64x64xf32, #tpu.memory_space<vmem>>, vector<8x32xf32>
    tpu.vector_store %arg11[%158, %c32_49], %157 {strides = array<i32>} : memref<64x64xf32, #tpu.memory_space<vmem>>, vector<8x32xf32>,
    %c3_i32 = arith.constant 3 : i32
    %c7_i32_50 = arith.constant 7 : i32
    %160 = arith.subi %c7_i32_50, %c3_i32 : i32
    %c8_i32_51 = arith.constant 8 : i32
    %161 = arith.muli %c3_i32, %c8_i32_51 : i32
    %162 = tpu.assume_multiple %161, 8 : i32
    %c8_i32_52 = arith.constant 8 : i32
    %163 = arith.muli %160, %c8_i32_52 : i32
    %164 = tpu.assume_multiple %163, 8 : i32
    %165 = arith.index_cast %162 : i32 to index
    %c0_53 = arith.constant 0 : index
    %166 = vector.load %arg10[%165, %c0_53] : memref<64x256xf32, #tpu.memory_space<vmem>>, vector<8x256xf32>
    %167 = arith.index_cast %164 : i32 to index
    %c0_54 = arith.constant 0 : index
    %168 = vector.load %arg10[%167, %c0_54] : memref<64x256xf32, #tpu.memory_space<vmem>>, vector<8x256xf32>
    %169 = arith.select %18, %166, %168 : vector<8x256xi1>, vector<8x256xf32>
    %cst_55 = arith.constant dense<0.000000e+00> : vector<8x256xf32>
    %170 = tpu.matmul %153, %26, %cst_55 {dimension_numbers = #tpu.dot_dimension_numbers<[1], [0], [0], [1], [0, 0, 1, 1], [], []>} : vector<8x64xf32>, vector<64x256xf32>, vector<8x256xf32> -> vector<8x256xf32>
    %171 = arith.addf %170, %169 : vector<8x256xf32>
    %172 = vector.extract_strided_slice %171 {offsets = [0, 0], sizes = [8, 64], strides = [1, 1]} : vector<8x256xf32> to vector<8x64xf32>
    %173 = arith.negf %172 : vector<8x64xf32>
    %174 = math.exp %173 : vector<8x64xf32>
    %cst_56 = arith.constant 1.000000e+00 : f32
    %175 = vector.broadcast %cst_56 : f32 to vector<8x64xf32>
    %176 = arith.addf %175, %174 : vector<8x64xf32>
    %177 = arith.divf %175, %176 : vector<8x64xf32>
    %178 = vector.extract_strided_slice %171 {offsets = [0, 64], sizes = [8, 64], strides = [1, 1]} : vector<8x256xf32> to vector<8x64xf32>
    %179 = arith.negf %178 : vector<8x64xf32>
    %180 = math.exp %179 : vector<8x64xf32>
    %cst_57 = arith.constant 1.000000e+00 : f32
    %181 = vector.broadcast %cst_57 : f32 to vector<8x64xf32>
    %182 = arith.addf %181, %180 : vector<8x64xf32>
    %183 = arith.divf %181, %182 : vector<8x64xf32>
    %184 = vector.extract_strided_slice %171 {offsets = [0, 128], sizes = [8, 64], strides = [1, 1]} : vector<8x256xf32> to vector<8x64xf32>
    %185 = math.tanh %184 : vector<8x64xf32>
    %186 = vector.extract_strided_slice %171 {offsets = [0, 192], sizes = [8, 64], strides = [1, 1]} : vector<8x256xf32> to vector<8x64xf32>
    %187 = arith.negf %186 : vector<8x64xf32>
    %188 = math.exp %187 : vector<8x64xf32>
    %cst_58 = arith.constant 1.000000e+00 : f32
    %189 = vector.broadcast %cst_58 : f32 to vector<8x64xf32>
    %190 = arith.addf %189, %188 : vector<8x64xf32>
    %191 = arith.divf %189, %190 : vector<8x64xf32>
    %192 = arith.mulf %183, %151 : vector<8x64xf32>
    %193 = arith.mulf %177, %185 : vector<8x64xf32>
    %194 = arith.addf %192, %193 : vector<8x64xf32>
    %195 = math.tanh %194 : vector<8x64xf32>
    %196 = arith.mulf %191, %195 : vector<8x64xf32>
    %197 = vector.extract_strided_slice %196 {offsets = [0, 0], sizes = [8, 32], strides = [1, 1]} : vector<8x64xf32> to vector<8x32xf32>
    %198 = arith.index_cast %162 : i32 to index
    %c0_59 = arith.constant 0 : index
    %199 = vector.load %arg11[%198, %c0_59] : memref<64x64xf32, #tpu.memory_space<vmem>>, vector<8x32xf32>
    tpu.vector_store %arg11[%198, %c0_59], %197 {strides = array<i32>} : memref<64x64xf32, #tpu.memory_space<vmem>>, vector<8x32xf32>,
    %200 = vector.extract_strided_slice %196 {offsets = [0, 32], sizes = [8, 32], strides = [1, 1]} : vector<8x64xf32> to vector<8x32xf32>
    %201 = arith.index_cast %164 : i32 to index
    %c32_60 = arith.constant 32 : index
    %202 = vector.load %arg11[%201, %c32_60] : memref<64x64xf32, #tpu.memory_space<vmem>>, vector<8x32xf32>
    tpu.vector_store %arg11[%201, %c32_60], %200 {strides = array<i32>} : memref<64x64xf32, #tpu.memory_space<vmem>>, vector<8x32xf32>,
    %c4_i32 = arith.constant 4 : i32
    %c7_i32_61 = arith.constant 7 : i32
    %203 = arith.subi %c7_i32_61, %c4_i32 : i32
    %c8_i32_62 = arith.constant 8 : i32
    %204 = arith.muli %c4_i32, %c8_i32_62 : i32
    %205 = tpu.assume_multiple %204, 8 : i32
    %c8_i32_63 = arith.constant 8 : i32
    %206 = arith.muli %203, %c8_i32_63 : i32
    %207 = tpu.assume_multiple %206, 8 : i32
    %208 = arith.index_cast %205 : i32 to index
    %c0_64 = arith.constant 0 : index
    %209 = vector.load %arg10[%208, %c0_64] : memref<64x256xf32, #tpu.memory_space<vmem>>, vector<8x256xf32>
    %210 = arith.index_cast %207 : i32 to index
    %c0_65 = arith.constant 0 : index
    %211 = vector.load %arg10[%210, %c0_65] : memref<64x256xf32, #tpu.memory_space<vmem>>, vector<8x256xf32>
    %212 = arith.select %18, %209, %211 : vector<8x256xi1>, vector<8x256xf32>
    %cst_66 = arith.constant dense<0.000000e+00> : vector<8x256xf32>
    %213 = tpu.matmul %196, %26, %cst_66 {dimension_numbers = #tpu.dot_dimension_numbers<[1], [0], [0], [1], [0, 0, 1, 1], [], []>} : vector<8x64xf32>, vector<64x256xf32>, vector<8x256xf32> -> vector<8x256xf32>
    %214 = arith.addf %213, %212 : vector<8x256xf32>
    %215 = vector.extract_strided_slice %214 {offsets = [0, 0], sizes = [8, 64], strides = [1, 1]} : vector<8x256xf32> to vector<8x64xf32>
    %216 = arith.negf %215 : vector<8x64xf32>
    %217 = math.exp %216 : vector<8x64xf32>
    %cst_67 = arith.constant 1.000000e+00 : f32
    %218 = vector.broadcast %cst_67 : f32 to vector<8x64xf32>
    %219 = arith.addf %218, %217 : vector<8x64xf32>
    %220 = arith.divf %218, %219 : vector<8x64xf32>
    %221 = vector.extract_strided_slice %214 {offsets = [0, 64], sizes = [8, 64], strides = [1, 1]} : vector<8x256xf32> to vector<8x64xf32>
    %222 = arith.negf %221 : vector<8x64xf32>
    %223 = math.exp %222 : vector<8x64xf32>
    %cst_68 = arith.constant 1.000000e+00 : f32
    %224 = vector.broadcast %cst_68 : f32 to vector<8x64xf32>
    %225 = arith.addf %224, %223 : vector<8x64xf32>
    %226 = arith.divf %224, %225 : vector<8x64xf32>
    %227 = vector.extract_strided_slice %214 {offsets = [0, 128], sizes = [8, 64], strides = [1, 1]} : vector<8x256xf32> to vector<8x64xf32>
    %228 = math.tanh %227 : vector<8x64xf32>
    %229 = vector.extract_strided_slice %214 {offsets = [0, 192], sizes = [8, 64], strides = [1, 1]} : vector<8x256xf32> to vector<8x64xf32>
    %230 = arith.negf %229 : vector<8x64xf32>
    %231 = math.exp %230 : vector<8x64xf32>
    %cst_69 = arith.constant 1.000000e+00 : f32
    %232 = vector.broadcast %cst_69 : f32 to vector<8x64xf32>
    %233 = arith.addf %232, %231 : vector<8x64xf32>
    %234 = arith.divf %232, %233 : vector<8x64xf32>
    %235 = arith.mulf %226, %194 : vector<8x64xf32>
    %236 = arith.mulf %220, %228 : vector<8x64xf32>
    %237 = arith.addf %235, %236 : vector<8x64xf32>
    %238 = math.tanh %237 : vector<8x64xf32>
    %239 = arith.mulf %234, %238 : vector<8x64xf32>
    %240 = vector.extract_strided_slice %239 {offsets = [0, 0], sizes = [8, 32], strides = [1, 1]} : vector<8x64xf32> to vector<8x32xf32>
    %241 = arith.index_cast %205 : i32 to index
    %c0_70 = arith.constant 0 : index
    %242 = vector.load %arg11[%241, %c0_70] : memref<64x64xf32, #tpu.memory_space<vmem>>, vector<8x32xf32>
    tpu.vector_store %arg11[%241, %c0_70], %240 {strides = array<i32>} : memref<64x64xf32, #tpu.memory_space<vmem>>, vector<8x32xf32>,
    %243 = vector.extract_strided_slice %239 {offsets = [0, 32], sizes = [8, 32], strides = [1, 1]} : vector<8x64xf32> to vector<8x32xf32>
    %244 = arith.index_cast %207 : i32 to index
    %c32_71 = arith.constant 32 : index
    %245 = vector.load %arg11[%244, %c32_71] : memref<64x64xf32, #tpu.memory_space<vmem>>, vector<8x32xf32>
    tpu.vector_store %arg11[%244, %c32_71], %243 {strides = array<i32>} : memref<64x64xf32, #tpu.memory_space<vmem>>, vector<8x32xf32>,
    %c5_i32 = arith.constant 5 : i32
    %c7_i32_72 = arith.constant 7 : i32
    %246 = arith.subi %c7_i32_72, %c5_i32 : i32
    %c8_i32_73 = arith.constant 8 : i32
    %247 = arith.muli %c5_i32, %c8_i32_73 : i32
    %248 = tpu.assume_multiple %247, 8 : i32
    %c8_i32_74 = arith.constant 8 : i32
    %249 = arith.muli %246, %c8_i32_74 : i32
    %250 = tpu.assume_multiple %249, 8 : i32
    %251 = arith.index_cast %248 : i32 to index
    %c0_75 = arith.constant 0 : index
    %252 = vector.load %arg10[%251, %c0_75] : memref<64x256xf32, #tpu.memory_space<vmem>>, vector<8x256xf32>
    %253 = arith.index_cast %250 : i32 to index
    %c0_76 = arith.constant 0 : index
    %254 = vector.load %arg10[%253, %c0_76] : memref<64x256xf32, #tpu.memory_space<vmem>>, vector<8x256xf32>
    %255 = arith.select %18, %252, %254 : vector<8x256xi1>, vector<8x256xf32>
    %cst_77 = arith.constant dense<0.000000e+00> : vector<8x256xf32>
    %256 = tpu.matmul %239, %26, %cst_77 {dimension_numbers = #tpu.dot_dimension_numbers<[1], [0], [0], [1], [0, 0, 1, 1], [], []>} : vector<8x64xf32>, vector<64x256xf32>, vector<8x256xf32> -> vector<8x256xf32>
    %257 = arith.addf %256, %255 : vector<8x256xf32>
    %258 = vector.extract_strided_slice %257 {offsets = [0, 0], sizes = [8, 64], strides = [1, 1]} : vector<8x256xf32> to vector<8x64xf32>
    %259 = arith.negf %258 : vector<8x64xf32>
    %260 = math.exp %259 : vector<8x64xf32>
    %cst_78 = arith.constant 1.000000e+00 : f32
    %261 = vector.broadcast %cst_78 : f32 to vector<8x64xf32>
    %262 = arith.addf %261, %260 : vector<8x64xf32>
    %263 = arith.divf %261, %262 : vector<8x64xf32>
    %264 = vector.extract_strided_slice %257 {offsets = [0, 64], sizes = [8, 64], strides = [1, 1]} : vector<8x256xf32> to vector<8x64xf32>
    %265 = arith.negf %264 : vector<8x64xf32>
    %266 = math.exp %265 : vector<8x64xf32>
    %cst_79 = arith.constant 1.000000e+00 : f32
    %267 = vector.broadcast %cst_79 : f32 to vector<8x64xf32>
    %268 = arith.addf %267, %266 : vector<8x64xf32>
    %269 = arith.divf %267, %268 : vector<8x64xf32>
    %270 = vector.extract_strided_slice %257 {offsets = [0, 128], sizes = [8, 64], strides = [1, 1]} : vector<8x256xf32> to vector<8x64xf32>
    %271 = math.tanh %270 : vector<8x64xf32>
    %272 = vector.extract_strided_slice %257 {offsets = [0, 192], sizes = [8, 64], strides = [1, 1]} : vector<8x256xf32> to vector<8x64xf32>
    %273 = arith.negf %272 : vector<8x64xf32>
    %274 = math.exp %273 : vector<8x64xf32>
    %cst_80 = arith.constant 1.000000e+00 : f32
    %275 = vector.broadcast %cst_80 : f32 to vector<8x64xf32>
    %276 = arith.addf %275, %274 : vector<8x64xf32>
    %277 = arith.divf %275, %276 : vector<8x64xf32>
    %278 = arith.mulf %269, %237 : vector<8x64xf32>
    %279 = arith.mulf %263, %271 : vector<8x64xf32>
    %280 = arith.addf %278, %279 : vector<8x64xf32>
    %281 = math.tanh %280 : vector<8x64xf32>
    %282 = arith.mulf %277, %281 : vector<8x64xf32>
    %283 = vector.extract_strided_slice %282 {offsets = [0, 0], sizes = [8, 32], strides = [1, 1]} : vector<8x64xf32> to vector<8x32xf32>
    %284 = arith.index_cast %248 : i32 to index
    %c0_81 = arith.constant 0 : index
    %285 = vector.load %arg11[%284, %c0_81] : memref<64x64xf32, #tpu.memory_space<vmem>>, vector<8x32xf32>
    tpu.vector_store %arg11[%284, %c0_81], %283 {strides = array<i32>} : memref<64x64xf32, #tpu.memory_space<vmem>>, vector<8x32xf32>,
    %286 = vector.extract_strided_slice %282 {offsets = [0, 32], sizes = [8, 32], strides = [1, 1]} : vector<8x64xf32> to vector<8x32xf32>
    %287 = arith.index_cast %250 : i32 to index
    %c32_82 = arith.constant 32 : index
    %288 = vector.load %arg11[%287, %c32_82] : memref<64x64xf32, #tpu.memory_space<vmem>>, vector<8x32xf32>
    tpu.vector_store %arg11[%287, %c32_82], %286 {strides = array<i32>} : memref<64x64xf32, #tpu.memory_space<vmem>>, vector<8x32xf32>,
    %c6_i32 = arith.constant 6 : i32
    %c7_i32_83 = arith.constant 7 : i32
    %289 = arith.subi %c7_i32_83, %c6_i32 : i32
    %c8_i32_84 = arith.constant 8 : i32
    %290 = arith.muli %c6_i32, %c8_i32_84 : i32
    %291 = tpu.assume_multiple %290, 8 : i32
    %c8_i32_85 = arith.constant 8 : i32
    %292 = arith.muli %289, %c8_i32_85 : i32
    %293 = tpu.assume_multiple %292, 8 : i32
    %294 = arith.index_cast %291 : i32 to index
    %c0_86 = arith.constant 0 : index
    %295 = vector.load %arg10[%294, %c0_86] : memref<64x256xf32, #tpu.memory_space<vmem>>, vector<8x256xf32>
    %296 = arith.index_cast %293 : i32 to index
    %c0_87 = arith.constant 0 : index
    %297 = vector.load %arg10[%296, %c0_87] : memref<64x256xf32, #tpu.memory_space<vmem>>, vector<8x256xf32>
    %298 = arith.select %18, %295, %297 : vector<8x256xi1>, vector<8x256xf32>
    %cst_88 = arith.constant dense<0.000000e+00> : vector<8x256xf32>
    %299 = tpu.matmul %282, %26, %cst_88 {dimension_numbers = #tpu.dot_dimension_numbers<[1], [0], [0], [1], [0, 0, 1, 1], [], []>} : vector<8x64xf32>, vector<64x256xf32>, vector<8x256xf32> -> vector<8x256xf32>
    %300 = arith.addf %299, %298 : vector<8x256xf32>
    %301 = vector.extract_strided_slice %300 {offsets = [0, 0], sizes = [8, 64], strides = [1, 1]} : vector<8x256xf32> to vector<8x64xf32>
    %302 = arith.negf %301 : vector<8x64xf32>
    %303 = math.exp %302 : vector<8x64xf32>
    %cst_89 = arith.constant 1.000000e+00 : f32
    %304 = vector.broadcast %cst_89 : f32 to vector<8x64xf32>
    %305 = arith.addf %304, %303 : vector<8x64xf32>
    %306 = arith.divf %304, %305 : vector<8x64xf32>
    %307 = vector.extract_strided_slice %300 {offsets = [0, 64], sizes = [8, 64], strides = [1, 1]} : vector<8x256xf32> to vector<8x64xf32>
    %308 = arith.negf %307 : vector<8x64xf32>
    %309 = math.exp %308 : vector<8x64xf32>
    %cst_90 = arith.constant 1.000000e+00 : f32
    %310 = vector.broadcast %cst_90 : f32 to vector<8x64xf32>
    %311 = arith.addf %310, %309 : vector<8x64xf32>
    %312 = arith.divf %310, %311 : vector<8x64xf32>
    %313 = vector.extract_strided_slice %300 {offsets = [0, 128], sizes = [8, 64], strides = [1, 1]} : vector<8x256xf32> to vector<8x64xf32>
    %314 = math.tanh %313 : vector<8x64xf32>
    %315 = vector.extract_strided_slice %300 {offsets = [0, 192], sizes = [8, 64], strides = [1, 1]} : vector<8x256xf32> to vector<8x64xf32>
    %316 = arith.negf %315 : vector<8x64xf32>
    %317 = math.exp %316 : vector<8x64xf32>
    %cst_91 = arith.constant 1.000000e+00 : f32
    %318 = vector.broadcast %cst_91 : f32 to vector<8x64xf32>
    %319 = arith.addf %318, %317 : vector<8x64xf32>
    %320 = arith.divf %318, %319 : vector<8x64xf32>
    %321 = arith.mulf %312, %280 : vector<8x64xf32>
    %322 = arith.mulf %306, %314 : vector<8x64xf32>
    %323 = arith.addf %321, %322 : vector<8x64xf32>
    %324 = math.tanh %323 : vector<8x64xf32>
    %325 = arith.mulf %320, %324 : vector<8x64xf32>
    %326 = vector.extract_strided_slice %325 {offsets = [0, 0], sizes = [8, 32], strides = [1, 1]} : vector<8x64xf32> to vector<8x32xf32>
    %327 = arith.index_cast %291 : i32 to index
    %c0_92 = arith.constant 0 : index
    %328 = vector.load %arg11[%327, %c0_92] : memref<64x64xf32, #tpu.memory_space<vmem>>, vector<8x32xf32>
    tpu.vector_store %arg11[%327, %c0_92], %326 {strides = array<i32>} : memref<64x64xf32, #tpu.memory_space<vmem>>, vector<8x32xf32>,
    %329 = vector.extract_strided_slice %325 {offsets = [0, 32], sizes = [8, 32], strides = [1, 1]} : vector<8x64xf32> to vector<8x32xf32>
    %330 = arith.index_cast %293 : i32 to index
    %c32_93 = arith.constant 32 : index
    %331 = vector.load %arg11[%330, %c32_93] : memref<64x64xf32, #tpu.memory_space<vmem>>, vector<8x32xf32>
    tpu.vector_store %arg11[%330, %c32_93], %329 {strides = array<i32>} : memref<64x64xf32, #tpu.memory_space<vmem>>, vector<8x32xf32>,
    %c7_i32_94 = arith.constant 7 : i32
    %c7_i32_95 = arith.constant 7 : i32
    %332 = arith.subi %c7_i32_95, %c7_i32_94 : i32
    %c8_i32_96 = arith.constant 8 : i32
    %333 = arith.muli %c7_i32_94, %c8_i32_96 : i32
    %334 = tpu.assume_multiple %333, 8 : i32
    %c8_i32_97 = arith.constant 8 : i32
    %335 = arith.muli %332, %c8_i32_97 : i32
    %336 = tpu.assume_multiple %335, 8 : i32
    %337 = arith.index_cast %334 : i32 to index
    %c0_98 = arith.constant 0 : index
    %338 = vector.load %arg10[%337, %c0_98] : memref<64x256xf32, #tpu.memory_space<vmem>>, vector<8x256xf32>
    %339 = arith.index_cast %336 : i32 to index
    %c0_99 = arith.constant 0 : index
    %340 = vector.load %arg10[%339, %c0_99] : memref<64x256xf32, #tpu.memory_space<vmem>>, vector<8x256xf32>
    %341 = arith.select %18, %338, %340 : vector<8x256xi1>, vector<8x256xf32>
    %cst_100 = arith.constant dense<0.000000e+00> : vector<8x256xf32>
    %342 = tpu.matmul %325, %26, %cst_100 {dimension_numbers = #tpu.dot_dimension_numbers<[1], [0], [0], [1], [0, 0, 1, 1], [], []>} : vector<8x64xf32>, vector<64x256xf32>, vector<8x256xf32> -> vector<8x256xf32>
    %343 = arith.addf %342, %341 : vector<8x256xf32>
    %344 = vector.extract_strided_slice %343 {offsets = [0, 0], sizes = [8, 64], strides = [1, 1]} : vector<8x256xf32> to vector<8x64xf32>
    %345 = arith.negf %344 : vector<8x64xf32>
    %346 = math.exp %345 : vector<8x64xf32>
    %cst_101 = arith.constant 1.000000e+00 : f32
    %347 = vector.broadcast %cst_101 : f32 to vector<8x64xf32>
    %348 = arith.addf %347, %346 : vector<8x64xf32>
    %349 = arith.divf %347, %348 : vector<8x64xf32>
    %350 = vector.extract_strided_slice %343 {offsets = [0, 64], sizes = [8, 64], strides = [1, 1]} : vector<8x256xf32> to vector<8x64xf32>
    %351 = arith.negf %350 : vector<8x64xf32>
    %352 = math.exp %351 : vector<8x64xf32>
    %cst_102 = arith.constant 1.000000e+00 : f32
    %353 = vector.broadcast %cst_102 : f32 to vector<8x64xf32>
    %354 = arith.addf %353, %352 : vector<8x64xf32>
    %355 = arith.divf %353, %354 : vector<8x64xf32>
    %356 = vector.extract_strided_slice %343 {offsets = [0, 128], sizes = [8, 64], strides = [1, 1]} : vector<8x256xf32> to vector<8x64xf32>
    %357 = math.tanh %356 : vector<8x64xf32>
    %358 = vector.extract_strided_slice %343 {offsets = [0, 192], sizes = [8, 64], strides = [1, 1]} : vector<8x256xf32> to vector<8x64xf32>
    %359 = arith.negf %358 : vector<8x64xf32>
    %360 = math.exp %359 : vector<8x64xf32>
    %cst_103 = arith.constant 1.000000e+00 : f32
    %361 = vector.broadcast %cst_103 : f32 to vector<8x64xf32>
    %362 = arith.addf %361, %360 : vector<8x64xf32>
    %363 = arith.divf %361, %362 : vector<8x64xf32>
    %364 = arith.mulf %355, %323 : vector<8x64xf32>
    %365 = arith.mulf %349, %357 : vector<8x64xf32>
    %366 = arith.addf %364, %365 : vector<8x64xf32>
    %367 = math.tanh %366 : vector<8x64xf32>
    %368 = arith.mulf %363, %367 : vector<8x64xf32>
    %369 = vector.extract_strided_slice %368 {offsets = [0, 0], sizes = [8, 32], strides = [1, 1]} : vector<8x64xf32> to vector<8x32xf32>
    %370 = arith.index_cast %334 : i32 to index
    %c0_104 = arith.constant 0 : index
    %371 = vector.load %arg11[%370, %c0_104] : memref<64x64xf32, #tpu.memory_space<vmem>>, vector<8x32xf32>
    tpu.vector_store %arg11[%370, %c0_104], %369 {strides = array<i32>} : memref<64x64xf32, #tpu.memory_space<vmem>>, vector<8x32xf32>,
    %372 = vector.extract_strided_slice %368 {offsets = [0, 32], sizes = [8, 32], strides = [1, 1]} : vector<8x64xf32> to vector<8x32xf32>
    %373 = arith.index_cast %336 : i32 to index
    %c32_105 = arith.constant 32 : index
    %374 = vector.load %arg11[%373, %c32_105] : memref<64x64xf32, #tpu.memory_space<vmem>>, vector<8x32xf32>
    tpu.vector_store %arg11[%373, %c32_105], %372 {strides = array<i32>} : memref<64x64xf32, #tpu.memory_space<vmem>>, vector<8x32xf32>,
    %c8_i32_106 = arith.constant 8 : i32
    %c0_107 = arith.constant 0 : index
    %c0_108 = arith.constant 0 : index
    %c0_109 = arith.constant 0 : index
    %375 = vector.load %arg9[%c0_107, %c0_108, %c0_109] : memref<2x8x64xf32, #tpu.memory_space<vmem>>, vector<1x8x64xf32>
    %376 = vector.shape_cast %375 : vector<1x8x64xf32> to vector<8x64xf32>
    %377 = vector.shape_cast %368 : vector<8x64xf32> to vector<1x8x64xf32>
    tpu.vector_store %arg9[%c0_107, %c0_108, %c0_109], %377 {strides = array<i32>} : memref<2x8x64xf32, #tpu.memory_space<vmem>>, vector<1x8x64xf32>,
    %c0_110 = arith.constant 0 : index
    %c0_111 = arith.constant 0 : index
    %378 = vector.load %arg11[%c0_110, %c0_111] : memref<64x64xf32, #tpu.memory_space<vmem>>, vector<64x64xf32>
    %c0_112 = arith.constant 0 : index
    %c0_113 = arith.constant 0 : index
    %379 = vector.load %arg4[%c0_112, %c0_113] : memref<64x256xf32, #tpu.memory_space<vmem>>, vector<64x256xf32>
    %cst_114 = arith.constant dense<0.000000e+00> : vector<64x256xf32>
    %380 = tpu.matmul %378, %379, %cst_114 {dimension_numbers = #tpu.dot_dimension_numbers<[1], [0], [0], [1], [0, 0, 1, 1], [], []>} : vector<64x64xf32>, vector<64x256xf32>, vector<64x256xf32> -> vector<64x256xf32>
    %c0_115 = arith.constant 0 : index
    %c0_116 = arith.constant 0 : index
    %381 = vector.load %arg6[%c0_115, %c0_116] : memref<1x256xf32, #tpu.memory_space<vmem>>, vector<1x256xf32>
    %382 = vector.broadcast %381 : vector<1x256xf32> to vector<64x256xf32>
    %383 = arith.addf %380, %382 : vector<64x256xf32>
    %c0_117 = arith.constant 0 : index
    %c0_118 = arith.constant 0 : index
    %384 = vector.load %arg10[%c0_117, %c0_118] : memref<64x256xf32, #tpu.memory_space<vmem>>, vector<64x256xf32>
    tpu.vector_store %arg10[%c0_117, %c0_118], %383 {strides = array<i32>} : memref<64x256xf32, #tpu.memory_space<vmem>>, vector<64x256xf32>,
    %c0_119 = arith.constant 0 : index
    %c0_120 = arith.constant 0 : index
    %385 = vector.load %arg5[%c0_119, %c0_120] : memref<64x256xf32, #tpu.memory_space<vmem>>, vector<64x256xf32>
    %c1 = arith.constant 1 : index
    %c0_121 = arith.constant 0 : index
    %c0_122 = arith.constant 0 : index
    %386 = vector.load %arg7[%c1, %c0_121, %c0_122] : memref<2x8x64xf32, #tpu.memory_space<vmem>>, vector<1x8x64xf32>
    %387 = vector.shape_cast %386 : vector<1x8x64xf32> to vector<8x64xf32>
    %c1_123 = arith.constant 1 : index
    %c0_124 = arith.constant 0 : index
    %c0_125 = arith.constant 0 : index
    %388 = vector.load %arg8[%c1_123, %c0_124, %c0_125] : memref<2x8x64xf32, #tpu.memory_space<vmem>>, vector<1x8x64xf32>
    %389 = vector.shape_cast %388 : vector<1x8x64xf32> to vector<8x64xf32>
    %c0_i32_126 = arith.constant 0 : i32
    %c7_i32_127 = arith.constant 7 : i32
    %390 = arith.subi %c7_i32_127, %c0_i32_126 : i32
    %c8_i32_128 = arith.constant 8 : i32
    %391 = arith.muli %c0_i32_126, %c8_i32_128 : i32
    %392 = tpu.assume_multiple %391, 8 : i32
    %c8_i32_129 = arith.constant 8 : i32
    %393 = arith.muli %390, %c8_i32_129 : i32
    %394 = tpu.assume_multiple %393, 8 : i32
    %395 = arith.index_cast %392 : i32 to index
    %c0_130 = arith.constant 0 : index
    %396 = vector.load %arg10[%395, %c0_130] : memref<64x256xf32, #tpu.memory_space<vmem>>, vector<8x256xf32>
    %397 = arith.index_cast %394 : i32 to index
    %c0_131 = arith.constant 0 : index
    %398 = vector.load %arg10[%397, %c0_131] : memref<64x256xf32, #tpu.memory_space<vmem>>, vector<8x256xf32>
    %399 = arith.select %18, %396, %398 : vector<8x256xi1>, vector<8x256xf32>
    %cst_132 = arith.constant dense<0.000000e+00> : vector<8x256xf32>
    %400 = tpu.matmul %387, %385, %cst_132 {dimension_numbers = #tpu.dot_dimension_numbers<[1], [0], [0], [1], [0, 0, 1, 1], [], []>} : vector<8x64xf32>, vector<64x256xf32>, vector<8x256xf32> -> vector<8x256xf32>
    %401 = arith.addf %400, %399 : vector<8x256xf32>
    %402 = vector.extract_strided_slice %401 {offsets = [0, 0], sizes = [8, 64], strides = [1, 1]} : vector<8x256xf32> to vector<8x64xf32>
    %403 = arith.negf %402 : vector<8x64xf32>
    %404 = math.exp %403 : vector<8x64xf32>
    %cst_133 = arith.constant 1.000000e+00 : f32
    %405 = vector.broadcast %cst_133 : f32 to vector<8x64xf32>
    %406 = arith.addf %405, %404 : vector<8x64xf32>
    %407 = arith.divf %405, %406 : vector<8x64xf32>
    %408 = vector.extract_strided_slice %401 {offsets = [0, 64], sizes = [8, 64], strides = [1, 1]} : vector<8x256xf32> to vector<8x64xf32>
    %409 = arith.negf %408 : vector<8x64xf32>
    %410 = math.exp %409 : vector<8x64xf32>
    %cst_134 = arith.constant 1.000000e+00 : f32
    %411 = vector.broadcast %cst_134 : f32 to vector<8x64xf32>
    %412 = arith.addf %411, %410 : vector<8x64xf32>
    %413 = arith.divf %411, %412 : vector<8x64xf32>
    %414 = vector.extract_strided_slice %401 {offsets = [0, 128], sizes = [8, 64], strides = [1, 1]} : vector<8x256xf32> to vector<8x64xf32>
    %415 = math.tanh %414 : vector<8x64xf32>
    %416 = vector.extract_strided_slice %401 {offsets = [0, 192], sizes = [8, 64], strides = [1, 1]} : vector<8x256xf32> to vector<8x64xf32>
    %417 = arith.negf %416 : vector<8x64xf32>
    %418 = math.exp %417 : vector<8x64xf32>
    %cst_135 = arith.constant 1.000000e+00 : f32
    %419 = vector.broadcast %cst_135 : f32 to vector<8x64xf32>
    %420 = arith.addf %419, %418 : vector<8x64xf32>
    %421 = arith.divf %419, %420 : vector<8x64xf32>
    %422 = arith.mulf %413, %389 : vector<8x64xf32>
    %423 = arith.mulf %407, %415 : vector<8x64xf32>
    %424 = arith.addf %422, %423 : vector<8x64xf32>
    %425 = math.tanh %424 : vector<8x64xf32>
    %426 = arith.mulf %421, %425 : vector<8x64xf32>
    %c1_i32_136 = arith.constant 1 : i32
    %c7_i32_137 = arith.constant 7 : i32
    %427 = arith.subi %c7_i32_137, %c1_i32_136 : i32
    %c8_i32_138 = arith.constant 8 : i32
    %428 = arith.muli %c1_i32_136, %c8_i32_138 : i32
    %429 = tpu.assume_multiple %428, 8 : i32
    %c8_i32_139 = arith.constant 8 : i32
    %430 = arith.muli %427, %c8_i32_139 : i32
    %431 = tpu.assume_multiple %430, 8 : i32
    %432 = arith.index_cast %429 : i32 to index
    %c0_140 = arith.constant 0 : index
    %433 = vector.load %arg10[%432, %c0_140] : memref<64x256xf32, #tpu.memory_space<vmem>>, vector<8x256xf32>
    %434 = arith.index_cast %431 : i32 to index
    %c0_141 = arith.constant 0 : index
    %435 = vector.load %arg10[%434, %c0_141] : memref<64x256xf32, #tpu.memory_space<vmem>>, vector<8x256xf32>
    %436 = arith.select %18, %433, %435 : vector<8x256xi1>, vector<8x256xf32>
    %cst_142 = arith.constant dense<0.000000e+00> : vector<8x256xf32>
    %437 = tpu.matmul %426, %385, %cst_142 {dimension_numbers = #tpu.dot_dimension_numbers<[1], [0], [0], [1], [0, 0, 1, 1], [], []>} : vector<8x64xf32>, vector<64x256xf32>, vector<8x256xf32> -> vector<8x256xf32>
    %438 = arith.addf %437, %436 : vector<8x256xf32>
    %439 = vector.extract_strided_slice %438 {offsets = [0, 0], sizes = [8, 64], strides = [1, 1]} : vector<8x256xf32> to vector<8x64xf32>
    %440 = arith.negf %439 : vector<8x64xf32>
    %441 = math.exp %440 : vector<8x64xf32>
    %cst_143 = arith.constant 1.000000e+00 : f32
    %442 = vector.broadcast %cst_143 : f32 to vector<8x64xf32>
    %443 = arith.addf %442, %441 : vector<8x64xf32>
    %444 = arith.divf %442, %443 : vector<8x64xf32>
    %445 = vector.extract_strided_slice %438 {offsets = [0, 64], sizes = [8, 64], strides = [1, 1]} : vector<8x256xf32> to vector<8x64xf32>
    %446 = arith.negf %445 : vector<8x64xf32>
    %447 = math.exp %446 : vector<8x64xf32>
    %cst_144 = arith.constant 1.000000e+00 : f32
    %448 = vector.broadcast %cst_144 : f32 to vector<8x64xf32>
    %449 = arith.addf %448, %447 : vector<8x64xf32>
    %450 = arith.divf %448, %449 : vector<8x64xf32>
    %451 = vector.extract_strided_slice %438 {offsets = [0, 128], sizes = [8, 64], strides = [1, 1]} : vector<8x256xf32> to vector<8x64xf32>
    %452 = math.tanh %451 : vector<8x64xf32>
    %453 = vector.extract_strided_slice %438 {offsets = [0, 192], sizes = [8, 64], strides = [1, 1]} : vector<8x256xf32> to vector<8x64xf32>
    %454 = arith.negf %453 : vector<8x64xf32>
    %455 = math.exp %454 : vector<8x64xf32>
    %cst_145 = arith.constant 1.000000e+00 : f32
    %456 = vector.broadcast %cst_145 : f32 to vector<8x64xf32>
    %457 = arith.addf %456, %455 : vector<8x64xf32>
    %458 = arith.divf %456, %457 : vector<8x64xf32>
    %459 = arith.mulf %450, %424 : vector<8x64xf32>
    %460 = arith.mulf %444, %452 : vector<8x64xf32>
    %461 = arith.addf %459, %460 : vector<8x64xf32>
    %462 = math.tanh %461 : vector<8x64xf32>
    %463 = arith.mulf %458, %462 : vector<8x64xf32>
    %c2_i32_146 = arith.constant 2 : i32
    %c7_i32_147 = arith.constant 7 : i32
    %464 = arith.subi %c7_i32_147, %c2_i32_146 : i32
    %c8_i32_148 = arith.constant 8 : i32
    %465 = arith.muli %c2_i32_146, %c8_i32_148 : i32
    %466 = tpu.assume_multiple %465, 8 : i32
    %c8_i32_149 = arith.constant 8 : i32
    %467 = arith.muli %464, %c8_i32_149 : i32
    %468 = tpu.assume_multiple %467, 8 : i32
    %469 = arith.index_cast %466 : i32 to index
    %c0_150 = arith.constant 0 : index
    %470 = vector.load %arg10[%469, %c0_150] : memref<64x256xf32, #tpu.memory_space<vmem>>, vector<8x256xf32>
    %471 = arith.index_cast %468 : i32 to index
    %c0_151 = arith.constant 0 : index
    %472 = vector.load %arg10[%471, %c0_151] : memref<64x256xf32, #tpu.memory_space<vmem>>, vector<8x256xf32>
    %473 = arith.select %18, %470, %472 : vector<8x256xi1>, vector<8x256xf32>
    %cst_152 = arith.constant dense<0.000000e+00> : vector<8x256xf32>
    %474 = tpu.matmul %463, %385, %cst_152 {dimension_numbers = #tpu.dot_dimension_numbers<[1], [0], [0], [1], [0, 0, 1, 1], [], []>} : vector<8x64xf32>, vector<64x256xf32>, vector<8x256xf32> -> vector<8x256xf32>
    %475 = arith.addf %474, %473 : vector<8x256xf32>
    %476 = vector.extract_strided_slice %475 {offsets = [0, 0], sizes = [8, 64], strides = [1, 1]} : vector<8x256xf32> to vector<8x64xf32>
    %477 = arith.negf %476 : vector<8x64xf32>
    %478 = math.exp %477 : vector<8x64xf32>
    %cst_153 = arith.constant 1.000000e+00 : f32
    %479 = vector.broadcast %cst_153 : f32 to vector<8x64xf32>
    %480 = arith.addf %479, %478 : vector<8x64xf32>
    %481 = arith.divf %479, %480 : vector<8x64xf32>
    %482 = vector.extract_strided_slice %475 {offsets = [0, 64], sizes = [8, 64], strides = [1, 1]} : vector<8x256xf32> to vector<8x64xf32>
    %483 = arith.negf %482 : vector<8x64xf32>
    %484 = math.exp %483 : vector<8x64xf32>
    %cst_154 = arith.constant 1.000000e+00 : f32
    %485 = vector.broadcast %cst_154 : f32 to vector<8x64xf32>
    %486 = arith.addf %485, %484 : vector<8x64xf32>
    %487 = arith.divf %485, %486 : vector<8x64xf32>
    %488 = vector.extract_strided_slice %475 {offsets = [0, 128], sizes = [8, 64], strides = [1, 1]} : vector<8x256xf32> to vector<8x64xf32>
    %489 = math.tanh %488 : vector<8x64xf32>
    %490 = vector.extract_strided_slice %475 {offsets = [0, 192], sizes = [8, 64], strides = [1, 1]} : vector<8x256xf32> to vector<8x64xf32>
    %491 = arith.negf %490 : vector<8x64xf32>
    %492 = math.exp %491 : vector<8x64xf32>
    %cst_155 = arith.constant 1.000000e+00 : f32
    %493 = vector.broadcast %cst_155 : f32 to vector<8x64xf32>
    %494 = arith.addf %493, %492 : vector<8x64xf32>
    %495 = arith.divf %493, %494 : vector<8x64xf32>
    %496 = arith.mulf %487, %461 : vector<8x64xf32>
    %497 = arith.mulf %481, %489 : vector<8x64xf32>
    %498 = arith.addf %496, %497 : vector<8x64xf32>
    %499 = math.tanh %498 : vector<8x64xf32>
    %500 = arith.mulf %495, %499 : vector<8x64xf32>
    %c3_i32_156 = arith.constant 3 : i32
    %c7_i32_157 = arith.constant 7 : i32
    %501 = arith.subi %c7_i32_157, %c3_i32_156 : i32
    %c8_i32_158 = arith.constant 8 : i32
    %502 = arith.muli %c3_i32_156, %c8_i32_158 : i32
    %503 = tpu.assume_multiple %502, 8 : i32
    %c8_i32_159 = arith.constant 8 : i32
    %504 = arith.muli %501, %c8_i32_159 : i32
    %505 = tpu.assume_multiple %504, 8 : i32
    %506 = arith.index_cast %503 : i32 to index
    %c0_160 = arith.constant 0 : index
    %507 = vector.load %arg10[%506, %c0_160] : memref<64x256xf32, #tpu.memory_space<vmem>>, vector<8x256xf32>
    %508 = arith.index_cast %505 : i32 to index
    %c0_161 = arith.constant 0 : index
    %509 = vector.load %arg10[%508, %c0_161] : memref<64x256xf32, #tpu.memory_space<vmem>>, vector<8x256xf32>
    %510 = arith.select %18, %507, %509 : vector<8x256xi1>, vector<8x256xf32>
    %cst_162 = arith.constant dense<0.000000e+00> : vector<8x256xf32>
    %511 = tpu.matmul %500, %385, %cst_162 {dimension_numbers = #tpu.dot_dimension_numbers<[1], [0], [0], [1], [0, 0, 1, 1], [], []>} : vector<8x64xf32>, vector<64x256xf32>, vector<8x256xf32> -> vector<8x256xf32>
    %512 = arith.addf %511, %510 : vector<8x256xf32>
    %513 = vector.extract_strided_slice %512 {offsets = [0, 0], sizes = [8, 64], strides = [1, 1]} : vector<8x256xf32> to vector<8x64xf32>
    %514 = arith.negf %513 : vector<8x64xf32>
    %515 = math.exp %514 : vector<8x64xf32>
    %cst_163 = arith.constant 1.000000e+00 : f32
    %516 = vector.broadcast %cst_163 : f32 to vector<8x64xf32>
    %517 = arith.addf %516, %515 : vector<8x64xf32>
    %518 = arith.divf %516, %517 : vector<8x64xf32>
    %519 = vector.extract_strided_slice %512 {offsets = [0, 64], sizes = [8, 64], strides = [1, 1]} : vector<8x256xf32> to vector<8x64xf32>
    %520 = arith.negf %519 : vector<8x64xf32>
    %521 = math.exp %520 : vector<8x64xf32>
    %cst_164 = arith.constant 1.000000e+00 : f32
    %522 = vector.broadcast %cst_164 : f32 to vector<8x64xf32>
    %523 = arith.addf %522, %521 : vector<8x64xf32>
    %524 = arith.divf %522, %523 : vector<8x64xf32>
    %525 = vector.extract_strided_slice %512 {offsets = [0, 128], sizes = [8, 64], strides = [1, 1]} : vector<8x256xf32> to vector<8x64xf32>
    %526 = math.tanh %525 : vector<8x64xf32>
    %527 = vector.extract_strided_slice %512 {offsets = [0, 192], sizes = [8, 64], strides = [1, 1]} : vector<8x256xf32> to vector<8x64xf32>
    %528 = arith.negf %527 : vector<8x64xf32>
    %529 = math.exp %528 : vector<8x64xf32>
    %cst_165 = arith.constant 1.000000e+00 : f32
    %530 = vector.broadcast %cst_165 : f32 to vector<8x64xf32>
    %531 = arith.addf %530, %529 : vector<8x64xf32>
    %532 = arith.divf %530, %531 : vector<8x64xf32>
    %533 = arith.mulf %524, %498 : vector<8x64xf32>
    %534 = arith.mulf %518, %526 : vector<8x64xf32>
    %535 = arith.addf %533, %534 : vector<8x64xf32>
    %536 = math.tanh %535 : vector<8x64xf32>
    %537 = arith.mulf %532, %536 : vector<8x64xf32>
    %c4_i32_166 = arith.constant 4 : i32
    %c7_i32_167 = arith.constant 7 : i32
    %538 = arith.subi %c7_i32_167, %c4_i32_166 : i32
    %c8_i32_168 = arith.constant 8 : i32
    %539 = arith.muli %c4_i32_166, %c8_i32_168 : i32
    %540 = tpu.assume_multiple %539, 8 : i32
    %c8_i32_169 = arith.constant 8 : i32
    %541 = arith.muli %538, %c8_i32_169 : i32
    %542 = tpu.assume_multiple %541, 8 : i32
    %543 = arith.index_cast %540 : i32 to index
    %c0_170 = arith.constant 0 : index
    %544 = vector.load %arg10[%543, %c0_170] : memref<64x256xf32, #tpu.memory_space<vmem>>, vector<8x256xf32>
    %545 = arith.index_cast %542 : i32 to index
    %c0_171 = arith.constant 0 : index
    %546 = vector.load %arg10[%545, %c0_171] : memref<64x256xf32, #tpu.memory_space<vmem>>, vector<8x256xf32>
    %547 = arith.select %18, %544, %546 : vector<8x256xi1>, vector<8x256xf32>
    %cst_172 = arith.constant dense<0.000000e+00> : vector<8x256xf32>
    %548 = tpu.matmul %537, %385, %cst_172 {dimension_numbers = #tpu.dot_dimension_numbers<[1], [0], [0], [1], [0, 0, 1, 1], [], []>} : vector<8x64xf32>, vector<64x256xf32>, vector<8x256xf32> -> vector<8x256xf32>
    %549 = arith.addf %548, %547 : vector<8x256xf32>
    %550 = vector.extract_strided_slice %549 {offsets = [0, 0], sizes = [8, 64], strides = [1, 1]} : vector<8x256xf32> to vector<8x64xf32>
    %551 = arith.negf %550 : vector<8x64xf32>
    %552 = math.exp %551 : vector<8x64xf32>
    %cst_173 = arith.constant 1.000000e+00 : f32
    %553 = vector.broadcast %cst_173 : f32 to vector<8x64xf32>
    %554 = arith.addf %553, %552 : vector<8x64xf32>
    %555 = arith.divf %553, %554 : vector<8x64xf32>
    %556 = vector.extract_strided_slice %549 {offsets = [0, 64], sizes = [8, 64], strides = [1, 1]} : vector<8x256xf32> to vector<8x64xf32>
    %557 = arith.negf %556 : vector<8x64xf32>
    %558 = math.exp %557 : vector<8x64xf32>
    %cst_174 = arith.constant 1.000000e+00 : f32
    %559 = vector.broadcast %cst_174 : f32 to vector<8x64xf32>
    %560 = arith.addf %559, %558 : vector<8x64xf32>
    %561 = arith.divf %559, %560 : vector<8x64xf32>
    %562 = vector.extract_strided_slice %549 {offsets = [0, 128], sizes = [8, 64], strides = [1, 1]} : vector<8x256xf32> to vector<8x64xf32>
    %563 = math.tanh %562 : vector<8x64xf32>
    %564 = vector.extract_strided_slice %549 {offsets = [0, 192], sizes = [8, 64], strides = [1, 1]} : vector<8x256xf32> to vector<8x64xf32>
    %565 = arith.negf %564 : vector<8x64xf32>
    %566 = math.exp %565 : vector<8x64xf32>
    %cst_175 = arith.constant 1.000000e+00 : f32
    %567 = vector.broadcast %cst_175 : f32 to vector<8x64xf32>
    %568 = arith.addf %567, %566 : vector<8x64xf32>
    %569 = arith.divf %567, %568 : vector<8x64xf32>
    %570 = arith.mulf %561, %535 : vector<8x64xf32>
    %571 = arith.mulf %555, %563 : vector<8x64xf32>
    %572 = arith.addf %570, %571 : vector<8x64xf32>
    %573 = math.tanh %572 : vector<8x64xf32>
    %574 = arith.mulf %569, %573 : vector<8x64xf32>
    %c5_i32_176 = arith.constant 5 : i32
    %c7_i32_177 = arith.constant 7 : i32
    %575 = arith.subi %c7_i32_177, %c5_i32_176 : i32
    %c8_i32_178 = arith.constant 8 : i32
    %576 = arith.muli %c5_i32_176, %c8_i32_178 : i32
    %577 = tpu.assume_multiple %576, 8 : i32
    %c8_i32_179 = arith.constant 8 : i32
    %578 = arith.muli %575, %c8_i32_179 : i32
    %579 = tpu.assume_multiple %578, 8 : i32
    %580 = arith.index_cast %577 : i32 to index
    %c0_180 = arith.constant 0 : index
    %581 = vector.load %arg10[%580, %c0_180] : memref<64x256xf32, #tpu.memory_space<vmem>>, vector<8x256xf32>
    %582 = arith.index_cast %579 : i32 to index
    %c0_181 = arith.constant 0 : index
    %583 = vector.load %arg10[%582, %c0_181] : memref<64x256xf32, #tpu.memory_space<vmem>>, vector<8x256xf32>
    %584 = arith.select %18, %581, %583 : vector<8x256xi1>, vector<8x256xf32>
    %cst_182 = arith.constant dense<0.000000e+00> : vector<8x256xf32>
    %585 = tpu.matmul %574, %385, %cst_182 {dimension_numbers = #tpu.dot_dimension_numbers<[1], [0], [0], [1], [0, 0, 1, 1], [], []>} : vector<8x64xf32>, vector<64x256xf32>, vector<8x256xf32> -> vector<8x256xf32>
    %586 = arith.addf %585, %584 : vector<8x256xf32>
    %587 = vector.extract_strided_slice %586 {offsets = [0, 0], sizes = [8, 64], strides = [1, 1]} : vector<8x256xf32> to vector<8x64xf32>
    %588 = arith.negf %587 : vector<8x64xf32>
    %589 = math.exp %588 : vector<8x64xf32>
    %cst_183 = arith.constant 1.000000e+00 : f32
    %590 = vector.broadcast %cst_183 : f32 to vector<8x64xf32>
    %591 = arith.addf %590, %589 : vector<8x64xf32>
    %592 = arith.divf %590, %591 : vector<8x64xf32>
    %593 = vector.extract_strided_slice %586 {offsets = [0, 64], sizes = [8, 64], strides = [1, 1]} : vector<8x256xf32> to vector<8x64xf32>
    %594 = arith.negf %593 : vector<8x64xf32>
    %595 = math.exp %594 : vector<8x64xf32>
    %cst_184 = arith.constant 1.000000e+00 : f32
    %596 = vector.broadcast %cst_184 : f32 to vector<8x64xf32>
    %597 = arith.addf %596, %595 : vector<8x64xf32>
    %598 = arith.divf %596, %597 : vector<8x64xf32>
    %599 = vector.extract_strided_slice %586 {offsets = [0, 128], sizes = [8, 64], strides = [1, 1]} : vector<8x256xf32> to vector<8x64xf32>
    %600 = math.tanh %599 : vector<8x64xf32>
    %601 = vector.extract_strided_slice %586 {offsets = [0, 192], sizes = [8, 64], strides = [1, 1]} : vector<8x256xf32> to vector<8x64xf32>
    %602 = arith.negf %601 : vector<8x64xf32>
    %603 = math.exp %602 : vector<8x64xf32>
    %cst_185 = arith.constant 1.000000e+00 : f32
    %604 = vector.broadcast %cst_185 : f32 to vector<8x64xf32>
    %605 = arith.addf %604, %603 : vector<8x64xf32>
    %606 = arith.divf %604, %605 : vector<8x64xf32>
    %607 = arith.mulf %598, %572 : vector<8x64xf32>
    %608 = arith.mulf %592, %600 : vector<8x64xf32>
    %609 = arith.addf %607, %608 : vector<8x64xf32>
    %610 = math.tanh %609 : vector<8x64xf32>
    %611 = arith.mulf %606, %610 : vector<8x64xf32>
    %c6_i32_186 = arith.constant 6 : i32
    %c7_i32_187 = arith.constant 7 : i32
    %612 = arith.subi %c7_i32_187, %c6_i32_186 : i32
    %c8_i32_188 = arith.constant 8 : i32
    %613 = arith.muli %c6_i32_186, %c8_i32_188 : i32
    %614 = tpu.assume_multiple %613, 8 : i32
    %c8_i32_189 = arith.constant 8 : i32
    %615 = arith.muli %612, %c8_i32_189 : i32
    %616 = tpu.assume_multiple %615, 8 : i32
    %617 = arith.index_cast %614 : i32 to index
    %c0_190 = arith.constant 0 : index
    %618 = vector.load %arg10[%617, %c0_190] : memref<64x256xf32, #tpu.memory_space<vmem>>, vector<8x256xf32>
    %619 = arith.index_cast %616 : i32 to index
    %c0_191 = arith.constant 0 : index
    %620 = vector.load %arg10[%619, %c0_191] : memref<64x256xf32, #tpu.memory_space<vmem>>, vector<8x256xf32>
    %621 = arith.select %18, %618, %620 : vector<8x256xi1>, vector<8x256xf32>
    %cst_192 = arith.constant dense<0.000000e+00> : vector<8x256xf32>
    %622 = tpu.matmul %611, %385, %cst_192 {dimension_numbers = #tpu.dot_dimension_numbers<[1], [0], [0], [1], [0, 0, 1, 1], [], []>} : vector<8x64xf32>, vector<64x256xf32>, vector<8x256xf32> -> vector<8x256xf32>
    %623 = arith.addf %622, %621 : vector<8x256xf32>
    %624 = vector.extract_strided_slice %623 {offsets = [0, 0], sizes = [8, 64], strides = [1, 1]} : vector<8x256xf32> to vector<8x64xf32>
    %625 = arith.negf %624 : vector<8x64xf32>
    %626 = math.exp %625 : vector<8x64xf32>
    %cst_193 = arith.constant 1.000000e+00 : f32
    %627 = vector.broadcast %cst_193 : f32 to vector<8x64xf32>
    %628 = arith.addf %627, %626 : vector<8x64xf32>
    %629 = arith.divf %627, %628 : vector<8x64xf32>
    %630 = vector.extract_strided_slice %623 {offsets = [0, 64], sizes = [8, 64], strides = [1, 1]} : vector<8x256xf32> to vector<8x64xf32>
    %631 = arith.negf %630 : vector<8x64xf32>
    %632 = math.exp %631 : vector<8x64xf32>
    %cst_194 = arith.constant 1.000000e+00 : f32
    %633 = vector.broadcast %cst_194 : f32 to vector<8x64xf32>
    %634 = arith.addf %633, %632 : vector<8x64xf32>
    %635 = arith.divf %633, %634 : vector<8x64xf32>
    %636 = vector.extract_strided_slice %623 {offsets = [0, 128], sizes = [8, 64], strides = [1, 1]} : vector<8x256xf32> to vector<8x64xf32>
    %637 = math.tanh %636 : vector<8x64xf32>
    %638 = vector.extract_strided_slice %623 {offsets = [0, 192], sizes = [8, 64], strides = [1, 1]} : vector<8x256xf32> to vector<8x64xf32>
    %639 = arith.negf %638 : vector<8x64xf32>
    %640 = math.exp %639 : vector<8x64xf32>
    %cst_195 = arith.constant 1.000000e+00 : f32
    %641 = vector.broadcast %cst_195 : f32 to vector<8x64xf32>
    %642 = arith.addf %641, %640 : vector<8x64xf32>
    %643 = arith.divf %641, %642 : vector<8x64xf32>
    %644 = arith.mulf %635, %609 : vector<8x64xf32>
    %645 = arith.mulf %629, %637 : vector<8x64xf32>
    %646 = arith.addf %644, %645 : vector<8x64xf32>
    %647 = math.tanh %646 : vector<8x64xf32>
    %648 = arith.mulf %643, %647 : vector<8x64xf32>
    %c7_i32_196 = arith.constant 7 : i32
    %c7_i32_197 = arith.constant 7 : i32
    %649 = arith.subi %c7_i32_197, %c7_i32_196 : i32
    %c8_i32_198 = arith.constant 8 : i32
    %650 = arith.muli %c7_i32_196, %c8_i32_198 : i32
    %651 = tpu.assume_multiple %650, 8 : i32
    %c8_i32_199 = arith.constant 8 : i32
    %652 = arith.muli %649, %c8_i32_199 : i32
    %653 = tpu.assume_multiple %652, 8 : i32
    %654 = arith.index_cast %651 : i32 to index
    %c0_200 = arith.constant 0 : index
    %655 = vector.load %arg10[%654, %c0_200] : memref<64x256xf32, #tpu.memory_space<vmem>>, vector<8x256xf32>
    %656 = arith.index_cast %653 : i32 to index
    %c0_201 = arith.constant 0 : index
    %657 = vector.load %arg10[%656, %c0_201] : memref<64x256xf32, #tpu.memory_space<vmem>>, vector<8x256xf32>
    %658 = arith.select %18, %655, %657 : vector<8x256xi1>, vector<8x256xf32>
    %cst_202 = arith.constant dense<0.000000e+00> : vector<8x256xf32>
    %659 = tpu.matmul %648, %385, %cst_202 {dimension_numbers = #tpu.dot_dimension_numbers<[1], [0], [0], [1], [0, 0, 1, 1], [], []>} : vector<8x64xf32>, vector<64x256xf32>, vector<8x256xf32> -> vector<8x256xf32>
    %660 = arith.addf %659, %658 : vector<8x256xf32>
    %661 = vector.extract_strided_slice %660 {offsets = [0, 0], sizes = [8, 64], strides = [1, 1]} : vector<8x256xf32> to vector<8x64xf32>
    %662 = arith.negf %661 : vector<8x64xf32>
    %663 = math.exp %662 : vector<8x64xf32>
    %cst_203 = arith.constant 1.000000e+00 : f32
    %664 = vector.broadcast %cst_203 : f32 to vector<8x64xf32>
    %665 = arith.addf %664, %663 : vector<8x64xf32>
    %666 = arith.divf %664, %665 : vector<8x64xf32>
    %667 = vector.extract_strided_slice %660 {offsets = [0, 64], sizes = [8, 64], strides = [1, 1]} : vector<8x256xf32> to vector<8x64xf32>
    %668 = arith.negf %667 : vector<8x64xf32>
    %669 = math.exp %668 : vector<8x64xf32>
    %cst_204 = arith.constant 1.000000e+00 : f32
    %670 = vector.broadcast %cst_204 : f32 to vector<8x64xf32>
    %671 = arith.addf %670, %669 : vector<8x64xf32>
    %672 = arith.divf %670, %671 : vector<8x64xf32>
    %673 = vector.extract_strided_slice %660 {offsets = [0, 128], sizes = [8, 64], strides = [1, 1]} : vector<8x256xf32> to vector<8x64xf32>
    %674 = math.tanh %673 : vector<8x64xf32>
    %675 = vector.extract_strided_slice %660 {offsets = [0, 192], sizes = [8, 64], strides = [1, 1]} : vector<8x256xf32> to vector<8x64xf32>
    %676 = arith.negf %675 : vector<8x64xf32>
    %677 = math.exp %676 : vector<8x64xf32>
    %cst_205 = arith.constant 1.000000e+00 : f32
    %678 = vector.broadcast %cst_205 : f32 to vector<8x64xf32>
    %679 = arith.addf %678, %677 : vector<8x64xf32>
    %680 = arith.divf %678, %679 : vector<8x64xf32>
    %681 = arith.mulf %672, %646 : vector<8x64xf32>
    %682 = arith.mulf %666, %674 : vector<8x64xf32>
    %683 = arith.addf %681, %682 : vector<8x64xf32>
    %684 = math.tanh %683 : vector<8x64xf32>
    %685 = arith.mulf %680, %684 : vector<8x64xf32>
    %c8_i32_206 = arith.constant 8 : i32
    %c1_207 = arith.constant 1 : index
    %c0_208 = arith.constant 0 : index
    %c0_209 = arith.constant 0 : index
    %686 = vector.load %arg9[%c1_207, %c0_208, %c0_209] : memref<2x8x64xf32, #tpu.memory_space<vmem>>, vector<1x8x64xf32>
    %687 = vector.shape_cast %686 : vector<1x8x64xf32> to vector<8x64xf32>
    %688 = vector.shape_cast %685 : vector<8x64xf32> to vector<1x8x64xf32>
    tpu.vector_store %arg9[%c1_207, %c0_208, %c0_209], %688 {strides = array<i32>} : memref<2x8x64xf32, #tpu.memory_space<vmem>>, vector<1x8x64xf32>,
    return
  }
}

</mosaic_0001>

<llo_original>
// kernel: tpu_custom_call.1
$region0: #{tpu_custom_call.1}
  #allocation0 [shape = 'u32[]', space=smem, size = 0x4, offset = 0x4, fixed_abs, tag = 'smem constant byte address 0x4 - core index']
  #allocation1 [shape = 'u32[144,128]{1,0:T(1,128)}', space=vmem, size = 0x12000, scoped, tag = 'internal scratch']
  #allocation2 [shape = 'f32[64,256]{1,0:T(8,128)}', space=vmem, size = 0x10000, scoped, tag = 'scratch operand']
  #allocation3 [shape = 'f32[64,64]{1,0:T(8,128)}', space=vmem, size = 0x8000, scoped, tag = 'scratch operand']
  %s0 = inlined_call_operand.vmem [shape: f32[64,16], index: 0, kind: input, shape index: {}]
  %s1 = inlined_call_operand.vmem [shape: f32[16,256], index: 1, kind: input, shape index: {}]
  %s2 = inlined_call_operand.hbm [shape: f32[64,256], index: 2, kind: input, shape index: {}]
  %s3 = inlined_call_operand.vmem [shape: f32[1,256], index: 3, kind: input, shape index: {}]
  %s4 = inlined_call_operand.hbm [shape: f32[64,256], index: 4, kind: input, shape index: {}]
  %s5 = inlined_call_operand.hbm [shape: f32[64,256], index: 5, kind: input, shape index: {}]
  %s6 = inlined_call_operand.vmem [shape: f32[1,256], index: 6, kind: input, shape index: {}]
  %s7 = inlined_call_operand.vmem [shape: f32[2,8,64], index: 7, kind: input, shape index: {}]
  %s8 = inlined_call_operand.vmem [shape: f32[2,8,64], index: 8, kind: input, shape index: {}]
  %s9 = inlined_call_operand.hbm [shape: f32[2,8,64], index: 9, kind: output, shape index: {}]
  %s10 = sld [smem:[#allocation0]]
  $region58: #{tpu_custom_call.1} parent=0
    _
  %s12 = ssub.s32 1, %s10
  %s13 = scalar_select 0, %s12, %s10
  $region1: #{tpu_custom_call.1} parent=0
    #allocation4 [shape = 'u8[65536]{0}', space=vmem, size = 0x10000, scoped, tag = 'input window, operand 2, single buffered']
    #allocation5 [shape = 's32[1]{0}', space=sflag, size = 0x4, scoped, tag = 'scoped memory for tpu_custom_call.1']
    #allocation6 [shape = 's32[1]{0}', space=sflag, size = 0x4, scoped, tag = 'scoped memory for tpu_custom_call.1']
    #allocation7 [shape = 'u8[65536]{0}', space=vmem, size = 0x10000, scoped, tag = 'input window, operand 4, single buffered']
    #allocation8 [shape = 's32[1]{0}', space=sflag, size = 0x4, scoped, tag = 'scoped memory for tpu_custom_call.1']
    #allocation9 [shape = 'u8[65536]{0}', space=vmem, size = 0x10000, scoped, tag = 'input window, operand 5, single buffered']
    #allocation10 [shape = 'u8[8192]{0}', space=vmem, size = 0x2000, scoped, tag = 'output window, operand 0, single buffered']
    %14 = vsyncpa [#allocation5], 0
    %15 = vsyncpa [#allocation8], 0
    %16 = vsyncpa [#allocation6], 0
    // Predicated region
    $region2: #{tpu_custom_call.1} parent=1 // pred_check
      _
    $region3: #{tpu_custom_call.1} parent=1 // pred_check_branch
      %18 = sbr.rel (0) target = $region5
    $region4: #{tpu_custom_call.1} parent=1 // pred_region
      _
    $region5: #{tpu_custom_call.1} parent=1 // pred_fallthru
      _
    // Predicated region
    $region6: #{tpu_custom_call.1} parent=1 // pred_check
      _
    $region7: #{tpu_custom_call.1} parent=1 // pred_check_branch
      %20 = sbr.rel (0) target = $region9
    $region8: #{tpu_custom_call.1} parent=1 // pred_region
      _
    $region9: #{tpu_custom_call.1} parent=1 // pred_fallthru
      _
    // Predicated region
    $region10: #{tpu_custom_call.1} parent=1 // pred_check
      _
    $region11: #{tpu_custom_call.1} parent=1 // pred_check_branch
      %22 = sbr.rel (0) target = $region13
    $region12: #{tpu_custom_call.1} parent=1 // pred_region
      %s24 = ssub.s32 2048, 2048
      %25 = vsyncadd [#allocation5], %s24
      %s26 = sshll.u32 [#allocation4], 4
      %s27 = int_to_ptr.vmem [resolvable:$true] %s26
      %32 = dma.hbm_to_vmem [thread:$0]  %s2, 2048, %s27, [#allocation5], 256, 256, 16
    $region13: #{tpu_custom_call.1} parent=1 // pred_fallthru
      _
    // Predicated region
    $region14: #{tpu_custom_call.1} parent=1 // pred_check
      _
    $region15: #{tpu_custom_call.1} parent=1 // pred_check_branch
      %34 = sbr.rel (0) target = $region17
    $region16: #{tpu_custom_call.1} parent=1 // pred_region
      _
    $region17: #{tpu_custom_call.1} parent=1 // pred_fallthru
      _
    // Predicated region
    $region18: #{tpu_custom_call.1} parent=1 // pred_check
      _
    $region19: #{tpu_custom_call.1} parent=1 // pred_check_branch
      %36 = sbr.rel (0) target = $region21
    $region20: #{tpu_custom_call.1} parent=1 // pred_region
      %s38 = ssub.s32 2048, 2048
      %39 = vsyncadd [#allocation8], %s38
      %s40 = sshll.u32 [#allocation7], 4
      %s41 = int_to_ptr.vmem [resolvable:$true] %s40
      %46 = dma.hbm_to_vmem [thread:$0]  %s4, 2048, %s41, [#allocation8], 256, 256, 16
    $region21: #{tpu_custom_call.1} parent=1 // pred_fallthru
      _
    // Predicated region
    $region22: #{tpu_custom_call.1} parent=1 // pred_check
      _
    $region23: #{tpu_custom_call.1} parent=1 // pred_check_branch
      %48 = sbr.rel (0) target = $region25
    $region24: #{tpu_custom_call.1} parent=1 // pred_region
      %s50 = ssub.s32 2048, 2048
      %51 = vsyncadd [#allocation8], %s50
      %s52 = sshll.u32 [#allocation9], 4
      %s53 = int_to_ptr.vmem [resolvable:$true] %s52
      %58 = dma.hbm_to_vmem [thread:$0]  %s5, 2048, %s53, [#allocation8], 256, 256, 16
    $region25: #{tpu_custom_call.1} parent=1 // pred_fallthru
      _
    // Predicated region
    $region26: #{tpu_custom_call.1} parent=1 // pred_check
      _
    $region27: #{tpu_custom_call.1} parent=1 // pred_check_branch
      %60 = sbr.rel (0) target = $region29
    $region28: #{tpu_custom_call.1} parent=1 // pred_region
      _
    $region29: #{tpu_custom_call.1} parent=1 // pred_fallthru
      _
    // Predicated region
    $region30: #{tpu_custom_call.1} parent=1 // pred_check
      _
    $region31: #{tpu_custom_call.1} parent=1 // pred_check_branch
      %62 = sbr.rel (0) target = $region33
    $region32: #{tpu_custom_call.1} parent=1 // pred_region
      _
    $region33: #{tpu_custom_call.1} parent=1 // pred_fallthru
      _
    // Predicated region
    $region34: #{tpu_custom_call.1} parent=1 // pred_check
      _
    $region35: #{tpu_custom_call.1} parent=1 // pred_check_branch
      %64 = sbr.rel (0) target = $region37
    $region36: #{tpu_custom_call.1} parent=1 // pred_region
      _
    $region37: #{tpu_custom_call.1} parent=1 // pred_fallthru
      _
    // Predicated region
    $region38: #{tpu_custom_call.1} parent=1 // pred_check
      _
    $region39: #{tpu_custom_call.1} parent=1 // pred_check_branch
      %66 = sbr.rel (0) target = $region41
    $region40: #{tpu_custom_call.1} parent=1 // pred_region
      %67 = dma.done [#allocation5], 2048
    $region41: #{tpu_custom_call.1} parent=1 // pred_fallthru
      _
    // Predicated region
    $region42: #{tpu_custom_call.1} parent=1 // pred_check
      _
    $region43: #{tpu_custom_call.1} parent=1 // pred_check_branch
      %69 = sbr.rel (0) target = $region45
    $region44: #{tpu_custom_call.1} parent=1 // pred_region
      %70 = dma.done [#allocation8], 2048
    $region45: #{tpu_custom_call.1} parent=1 // pred_fallthru
      _
    // Predicated region
    $region46: #{tpu_custom_call.1} parent=1 // pred_check
      _
    $region47: #{tpu_custom_call.1} parent=1 // pred_check_branch
      %72 = sbr.rel (0) target = $region49
    $region48: #{tpu_custom_call.1} parent=1 // pred_region
      %73 = dma.done [#allocation8], 2048
    $region49: #{tpu_custom_call.1} parent=1 // pred_fallthru
      _
    %v74 = vlaneseq
    %v75 = vand.u32 %v74, 127
    %v76 = vadd.s32 %v75, 128
    %vm77 = vcmp.lt.s32.totalorder %v75, 0
    %v78 = vsub.s32 0, %v75
    %v79 = vsel %vm77, %v78, %v75
    %v80 = vshrl.u32 %v79, 6
    %v81 = vand.u32 %v79, 63
    %v82 = vsub.s32 0, %v81
    %v83 = vsel %vm77, %v82, %v81
    %vm84 = vcmp.lt.s32.totalorder %v76, 0
    %v85 = vsub.s32 0, %v76
    %v86 = vsel %vm84, %v85, %v76
    %v87 = vshrl.u32 %v86, 6
    %v88 = vand.u32 %v86, 63
    %v89 = vsub.s32 0, %v88
    %v90 = vsel %vm84, %v89, %v88
    %vm91 = vcmp.ne.s32.totalorder %v83, 0
    %vm92 = vcmp.ne.s32.totalorder %v90, 0
    %vm93 = vcmp.lt.s32.totalorder %v83, 0
    %vm94 = vcmp.lt.s32.totalorder %v90, 0
    %vm95 = vmand %vm93, %vm91
    %vm96 = vmand %vm94, %vm92
    %v97 = vadd.s32 %v83, 64
    %v98 = vadd.s32 %v90, 64
    %v99 = vsel %vm95, %v97, %v83
    %v100 = vsel %vm96, %v98, %v90
    %vm101 = vcmp.lt.s32.totalorder %v99, 32
    %vm102 = vcmp.lt.s32.totalorder %v100, 32
    %v103 = vld [vmem:[%s0] sm:$0xff]
    %v104 = vld [vmem:[%s0 + $0x8] sm:$0xff]
    %v105 = vld [vmem:[%s0 + $0x10] sm:$0xff]
    %v106 = vld [vmem:[%s0 + $0x18] sm:$0xff]
    %v107 = vld [vmem:[%s0 + $0x20] sm:$0xff]
    %v108 = vld [vmem:[%s0 + $0x28] sm:$0xff]
    %v109 = vld [vmem:[%s0 + $0x30] sm:$0xff]
    %v110 = vld [vmem:[%s0 + $0x38] sm:$0xff]
    %v111 = vld [vmem:[%s1] sm:$0xff]
    %v112 = vld [vmem:[%s1 + $0x8] sm:$0xff]
    %v113 = vld [vmem:[%s1 + $0x10] sm:$0xff]
    %v114 = vld [vmem:[%s1 + $0x18] sm:$0xff]
    %v115 = vld [vmem:[%s3] sm:$0x3]
    %v117 = vlaneseq
    %v118 = vshrl.u32 %v117, 7
    %v119 = vsub.s32 0, %v118
    %v120 = vrot.slane %v115, %v119
    %v121 = vlaneseq
    %v122 = vshrl.u32 %v121, 7
    %v123 = vsub.s32 1, %v122
    %v124 = vrot.slane %v115, %v123
    %vm127 = vcmask 130048
    %v129 = vsel %vm127, %v103, 0
    %v132 = vsel %vm127, %v104, 0
    %v135 = vsel %vm127, %v105, 0
    %v138 = vsel %vm127, %v106, 0
    %v141 = vsel %vm127, %v107, 0
    %v144 = vsel %vm127, %v108, 0
    %v147 = vsel %vm127, %v109, 0
    %v150 = vsel %vm127, %v110, 0
    %152 = vmatprep.subr.mxu0 0.0
    %153 = vmatpush1.msra.mxu0 0.0
    %154 = vmatprep.subr.mxu0 0.0
    %155 = vmatpush1.msra.mxu0 0.0
    %156 = vmatprep.subr.mxu0 0.0
    %157 = vmatpush1.msra.mxu0 0.0
    %158 = vmatprep.subr.mxu0 0.0
    %159 = vmatpush1.msra.mxu0 0.0
    %160 = vmatprep.subr.mxu0 0.0
    %161 = vmatpush1.msra.mxu0 0.0
    %162 = vmatprep.subr.mxu0 0.0
    %163 = vmatpush1.msra.mxu0 0.0
    %164 = vmatprep.subr.mxu0 0.0
    %165 = vmatpush1.msra.mxu0 0.0
    %166 = vmatprep.subr.mxu0 0.0
    %167 = vmatpush1.msra.mxu0 0.0
    %168 = vmatprep.subr.mxu0 0.0
    %169 = vmatpush1.msra.mxu0 0.0
    %170 = vmatprep.subr.mxu0 0.0
    %171 = vmatpush1.msra.mxu0 0.0
    %172 = vmatprep.subr.mxu0 0.0
    %173 = vmatpush1.msra.mxu0 0.0
    %174 = vmatprep.subr.mxu0 0.0
    %175 = vmatpush1.msra.mxu0 0.0
    %176 = vmatprep.subr.mxu0 0.0
    %177 = vmatpush1.msra.mxu0 0.0
    %178 = vmatprep.subr.mxu0 0.0
    %179 = vmatpush1.msra.mxu0 0.0
    %180 = vmatprep.subr.mxu0 %v114
    %181 = vmatpush1.msra.mxu0 %v113
    %182 = vmatprep.subr.mxu0 %v112
    %183 = vmatpush1.msra.mxu0 %v111
    %184 = vmatprep.subr.mxu0 0.0
    %185 = vmatpush2.msra.mxu0 0.0
    %186 = vmatprep.subr.mxu0 0.0
    %187 = vmatpush2.msra.mxu0 0.0
    %188 = vmatprep.subr.mxu0 0.0
    %189 = vmatpush2.msra.mxu0 0.0
    %190 = vmatprep.subr.mxu0 0.0
    %191 = vmatpush2.msra.mxu0 0.0
    %192 = vmatprep.subr.mxu0 0.0
    %193 = vmatpush2.msra.mxu0 0.0
    %194 = vmatprep.subr.mxu0 0.0
    %195 = vmatpush2.msra.mxu0 0.0
    %196 = vmatprep.subr.mxu0 0.0
    %197 = vmatpush2.msra.mxu0 0.0
    %198 = vmatprep.subr.mxu0 0.0
    %199 = vmatpush2.msra.mxu0 0.0
    %200 = vmatprep.subr.mxu0 0.0
    %201 = vmatpush2.msra.mxu0 0.0
    %202 = vmatprep.subr.mxu0 0.0
    %203 = vmatpush2.msra.mxu0 0.0
    %204 = vmatprep.subr.mxu0 0.0
    %205 = vmatpush2.msra.mxu0 0.0
    %206 = vmatprep.subr.mxu0 0.0
    %207 = vmatpush2.msra.mxu0 0.0
    %208 = vmatprep.subr.mxu0 0.0
    %209 = vmatpush2.msra.mxu0 0.0
    %210 = vmatprep.subr.mxu0 0.0
    %211 = vmatpush2.msra.mxu0 0.0
    %212 = vmatprep.subr.mxu0 0.0
    %213 = vmatpush2.msra.mxu0 0.0
    %214 = vmatprep.subr.mxu0 0.0
    %215 = vmatpush2.msra.mxu0 0.0
    %216 = vmatprep.mubr.f32.mxu0 0.0
    %217 = vmatmul.mubr.f32.gmra.mxu0 %v129
    %v218 = vpop.f32.mrf.mxu0
    %v219 = vadd.f32 %v120, %v218
    %v220 = vpop.f32.mrf.mxu0
    %v221 = vadd.f32 %v124, %v220
    %222 = vmatprep.mubr.f32.mxu0 0.0
    %223 = vmatmul.mubr.f32.gmra.mxu0 %v132
    %v224 = vpop.f32.mrf.mxu0
    %v225 = vadd.f32 %v120, %v224
    %v226 = vpop.f32.mrf.mxu0
    %v227 = vadd.f32 %v124, %v226
    %228 = vmatprep.mubr.f32.mxu0 0.0
    %229 = vmatmul.mubr.f32.gmra.mxu0 %v135
    %v230 = vpop.f32.mrf.mxu0
    %v231 = vadd.f32 %v120, %v230
    %v232 = vpop.f32.mrf.mxu0
    %v233 = vadd.f32 %v124, %v232
    %234 = vmatprep.mubr.f32.mxu0 0.0
    %235 = vmatmul.mubr.f32.gmra.mxu0 %v138
    %v236 = vpop.f32.mrf.mxu0
    %v237 = vadd.f32 %v120, %v236
    %v238 = vpop.f32.mrf.mxu0
    %v239 = vadd.f32 %v124, %v238
    %240 = vmatprep.mubr.f32.mxu0 0.0
    %241 = vmatmul.mubr.f32.gmra.mxu0 %v141
    %v242 = vpop.f32.mrf.mxu0
    %v243 = vadd.f32 %v120, %v242
    %v244 = vpop.f32.mrf.mxu0
    %v245 = vadd.f32 %v124, %v244
    %246 = vmatprep.mubr.f32.mxu0 0.0
    %247 = vmatmul.mubr.f32.gmra.mxu0 %v144
    %v248 = vpop.f32.mrf.mxu0
    %v249 = vadd.f32 %v120, %v248
    %v250 = vpop.f32.mrf.mxu0
    %v251 = vadd.f32 %v124, %v250
    %252 = vmatprep.mubr.f32.mxu0 0.0
    %253 = vmatmul.mubr.f32.gmra.mxu0 %v147
    %v254 = vpop.f32.mrf.mxu0
    %v255 = vadd.f32 %v120, %v254
    %v256 = vpop.f32.mrf.mxu0
    %v257 = vadd.f32 %v124, %v256
    %258 = vmatprep.mubr.f32.mxu0 0.0
    %259 = vmatmul.mubr.f32.gmra.mxu0 %v150
    %v260 = vpop.f32.mrf.mxu0
    %v261 = vadd.f32 %v120, %v260
    %v262 = vpop.f32.mrf.mxu0
    %v263 = vadd.f32 %v124, %v262
    %264 = vdwg.mxu0
    %265 = vst [vmem:[#allocation2] sm:$0xff] %v219
    %266 = vst [vmem:[#allocation2 + $0x8] sm:$0xff] %v221
    %267 = vst [vmem:[#allocation2 + $0x10] sm:$0xff] %v225
    %268 = vst [vmem:[#allocation2 + $0x18] sm:$0xff] %v227
    %269 = vst [vmem:[#allocation2 + $0x20] sm:$0xff] %v231
    %270 = vst [vmem:[#allocation2 + $0x28] sm:$0xff] %v233
    %271 = vst [vmem:[#allocation2 + $0x30] sm:$0xff] %v237
    %272 = vst [vmem:[#allocation2 + $0x38] sm:$0xff] %v239
    %273 = vst [vmem:[#allocation2 + $0x40] sm:$0xff] %v243
    %274 = vst [vmem:[#allocation2 + $0x48] sm:$0xff] %v245
    %275 = vst [vmem:[#allocation2 + $0x50] sm:$0xff] %v249
    %276 = vst [vmem:[#allocation2 + $0x58] sm:$0xff] %v251
    %277 = vst [vmem:[#allocation2 + $0x60] sm:$0xff] %v255
    %278 = vst [vmem:[#allocation2 + $0x68] sm:$0xff] %v257
    %279 = vst [vmem:[#allocation2 + $0x70] sm:$0xff] %v261
    %280 = vst [vmem:[#allocation2 + $0x78] sm:$0xff] %v263
    %v281 = vld [vmem:[#allocation4] sm:$0xff]
    %v282 = vld [vmem:[#allocation4 + $0x8] sm:$0xff]
    %v283 = vld [vmem:[#allocation4 + $0x10] sm:$0xff]
    %v284 = vld [vmem:[#allocation4 + $0x18] sm:$0xff]
    %v285 = vld [vmem:[#allocation4 + $0x20] sm:$0xff]
    %v286 = vld [vmem:[#allocation4 + $0x28] sm:$0xff]
    %v287 = vld [vmem:[#allocation4 + $0x30] sm:$0xff]
    %v288 = vld [vmem:[#allocation4 + $0x38] sm:$0xff]
    %v289 = vld [vmem:[#allocation4 + $0x40] sm:$0xff]
    %v290 = vld [vmem:[#allocation4 + $0x48] sm:$0xff]
    %v291 = vld [vmem:[#allocation4 + $0x50] sm:$0xff]
    %v292 = vld [vmem:[#allocation4 + $0x58] sm:$0xff]
    %v293 = vld [vmem:[#allocation4 + $0x60] sm:$0xff]
    %v294 = vld [vmem:[#allocation4 + $0x68] sm:$0xff]
    %v295 = vld [vmem:[#allocation4 + $0x70] sm:$0xff]
    %v296 = vld [vmem:[#allocation4 + $0x78] sm:$0xff]
    %v297 = vld [vmem:[%s7] sm:$0xff]
    %v298 = vld [vmem:[%s8] sm:$0xff]
    %s299 = smul.u32 0, 2
    %s300 = smul.addr %s299, 8
    %s301 = scalar_lea.vmem [#allocation2], %s300
    %v302 = vld [vmem:[%s301] sm:$0xff]
    %v303 = vld [vmem:[%s301 + $0x8] sm:$0xff]
    %s304 = smul.u32 7, 2
    %s305 = smul.addr %s304, 8
    %s306 = scalar_lea.vmem [#allocation2], %s305
    %v307 = vld [vmem:[%s306] sm:$0xff]
    %v308 = vld [vmem:[%s306 + $0x8] sm:$0xff]
    %v309 = vsel %vm101, %v302, %v307
    %v310 = vsel %vm102, %v303, %v308
    %vm311 = vcmask 523264
    %v313 = vsel %vm311, %v297, 0
    %315 = vmatprep.subr.mxu0 0.0
    %316 = vmatpush1.msra.mxu0 0.0
    %317 = vmatprep.subr.mxu0 0.0
    %318 = vmatpush1.msra.mxu0 0.0
    %319 = vmatprep.subr.mxu0 0.0
    %320 = vmatpush1.msra.mxu0 0.0
    %321 = vmatprep.subr.mxu0 0.0
    %322 = vmatpush1.msra.mxu0 0.0
    %323 = vmatprep.subr.mxu0 0.0
    %324 = vmatpush1.msra.mxu0 0.0
    %325 = vmatprep.subr.mxu0 0.0
    %326 = vmatpush1.msra.mxu0 0.0
    %327 = vmatprep.subr.mxu0 0.0
    %328 = vmatpush1.msra.mxu0 0.0
    %329 = vmatprep.subr.mxu0 0.0
    %330 = vmatpush1.msra.mxu0 0.0
    %331 = vmatprep.subr.mxu0 %v296
    %332 = vmatpush1.msra.mxu0 %v295
    %333 = vmatprep.subr.mxu0 %v294
    %334 = vmatpush1.msra.mxu0 %v293
    %335 = vmatprep.subr.mxu0 %v292
    %336 = vmatpush1.msra.mxu0 %v291
    %337 = vmatprep.subr.mxu0 %v290
    %338 = vmatpush1.msra.mxu0 %v289
    %339 = vmatprep.subr.mxu0 %v288
    %340 = vmatpush1.msra.mxu0 %v287
    %341 = vmatprep.subr.mxu0 %v286
    %342 = vmatpush1.msra.mxu0 %v285
    %343 = vmatprep.subr.mxu0 %v284
    %344 = vmatpush1.msra.mxu0 %v283
    %345 = vmatprep.subr.mxu0 %v282
    %346 = vmatpush1.msra.mxu0 %v281
    %347 = vmatprep.subr.mxu0 0.0
    %348 = vmatpush2.msra.mxu0 0.0
    %349 = vmatprep.subr.mxu0 0.0
    %350 = vmatpush2.msra.mxu0 0.0
    %351 = vmatprep.subr.mxu0 0.0
    %352 = vmatpush2.msra.mxu0 0.0
    %353 = vmatprep.subr.mxu0 0.0
    %354 = vmatpush2.msra.mxu0 0.0
    %355 = vmatprep.subr.mxu0 0.0
    %356 = vmatpush2.msra.mxu0 0.0
    %357 = vmatprep.subr.mxu0 0.0
    %358 = vmatpush2.msra.mxu0 0.0
    %359 = vmatprep.subr.mxu0 0.0
    %360 = vmatpush2.msra.mxu0 0.0
    %361 = vmatprep.subr.mxu0 0.0
    %362 = vmatpush2.msra.mxu0 0.0
    %363 = vmatprep.subr.mxu0 0.0
    %364 = vmatpush2.msra.mxu0 0.0
    %365 = vmatprep.subr.mxu0 0.0
    %366 = vmatpush2.msra.mxu0 0.0
    %367 = vmatprep.subr.mxu0 0.0
    %368 = vmatpush2.msra.mxu0 0.0
    %369 = vmatprep.subr.mxu0 0.0
    %370 = vmatpush2.msra.mxu0 0.0
    %371 = vmatprep.subr.mxu0 0.0
    %372 = vmatpush2.msra.mxu0 0.0
    %373 = vmatprep.subr.mxu0 0.0
    %374 = vmatpush2.msra.mxu0 0.0
    %375 = vmatprep.subr.mxu0 0.0
    %376 = vmatpush2.msra.mxu0 0.0
    %377 = vmatprep.subr.mxu0 0.0
    %378 = vmatpush2.msra.mxu0 0.0
    %379 = vmatprep.mubr.f32.mxu0 0.0
    %380 = vmatmul.mubr.f32.gmra.mxu0 %v313
    %v381 = vpop.f32.mrf.mxu0
    %v382 = vadd.f32 %v309, %v381
    %v383 = vpop.f32.mrf.mxu0
    %v384 = vadd.f32 %v310, %v383
    %385 = vdwg.mxu0
    %v386 = vxor.u32 %v382, 2147483648
    %v387 = vmul.f32 %v386, 1.442695
    %v388 = vpow.pop %v387
    %v389 = vadd.f32 %v388, 1.0
    %v390 = vrcp.pop %v389
    %v391 = vmul.f32 1.0, %v390
    %v392 = vtanh.pop %v384
    %v393 = vxor.u32 %v384, 2147483648
    %v394 = vmul.f32 %v393, 1.442695
    %v395 = vpow.pop %v394
    %v396 = vadd.f32 %v395, 1.0
    %v397 = vrcp.pop %v396
    %v398 = vmul.f32 1.0, %v397
    %400 = vrot.lane.b32.xlu0 %v298, 64
    %v401 = vpop.permute.xlu0 %400
    %v403 = vmul.f32 %v391, %v401
    %v404 = vmul.f32 %v391, %v392
    %406 = vrot.lane.b32.xlu0 %v404, 64
    %v407 = vpop.permute.xlu0 %406
    %v409 = vadd.f32 %v403, %v407
    %v410 = vtanh.pop %v409
    %v411 = vmul.f32 %v398, %v410
    %413 = vrot.lane.b32.xlu0 %v411, 64
    %v414 = vpop.permute.xlu0 %413
    %vm416 = vcmask 261120
    %417 = vst.msk [vmem:[#allocation3] sm:$0xff] %vm416, %v414
    %s418 = scalar_lea.vmem [#allocation3], 56
    %vm419 = vcmask 523520
    %420 = vst.msk [vmem:[%s418] sm:$0xff] %vm419, %v414
    %s421 = smul.u32 1, 2
    %s422 = smul.addr %s421, 8
    %s423 = scalar_lea.vmem [#allocation2], %s422
    %v424 = vld [vmem:[%s423] sm:$0xff]
    %v425 = vld [vmem:[%s423 + $0x8] sm:$0xff]
    %s426 = smul.u32 6, 2
    %s427 = smul.addr %s426, 8
    %s428 = scalar_lea.vmem [#allocation2], %s427
    %v429 = vld [vmem:[%s428] sm:$0xff]
    %v430 = vld [vmem:[%s428 + $0x8] sm:$0xff]
    %v431 = vsel %vm101, %v424, %v429
    %v432 = vsel %vm102, %v425, %v430
    %v433 = vsel %vm311, %v414, 0
    %435 = vmatprep.subr.mxu0 0.0
    %436 = vmatpush1.msra.mxu0 0.0
    %437 = vmatprep.subr.mxu0 0.0
    %438 = vmatpush1.msra.mxu0 0.0
    %439 = vmatprep.subr.mxu0 0.0
    %440 = vmatpush1.msra.mxu0 0.0
    %441 = vmatprep.subr.mxu0 0.0
    %442 = vmatpush1.msra.mxu0 0.0
    %443 = vmatprep.subr.mxu0 0.0
    %444 = vmatpush1.msra.mxu0 0.0
    %445 = vmatprep.subr.mxu0 0.0
    %446 = vmatpush1.msra.mxu0 0.0
    %447 = vmatprep.subr.mxu0 0.0
    %448 = vmatpush1.msra.mxu0 0.0
    %449 = vmatprep.subr.mxu0 0.0
    %450 = vmatpush1.msra.mxu0 0.0
    %451 = vmatprep.subr.mxu0 %v296
    %452 = vmatpush1.msra.mxu0 %v295
    %453 = vmatprep.subr.mxu0 %v294
    %454 = vmatpush1.msra.mxu0 %v293
    %455 = vmatprep.subr.mxu0 %v292
    %456 = vmatpush1.msra.mxu0 %v291
    %457 = vmatprep.subr.mxu0 %v290
    %458 = vmatpush1.msra.mxu0 %v289
    %459 = vmatprep.subr.mxu0 %v288
    %460 = vmatpush1.msra.mxu0 %v287
    %461 = vmatprep.subr.mxu0 %v286
    %462 = vmatpush1.msra.mxu0 %v285
    %463 = vmatprep.subr.mxu0 %v284
    %464 = vmatpush1.msra.mxu0 %v283
    %465 = vmatprep.subr.mxu0 %v282
    %466 = vmatpush1.msra.mxu0 %v281
    %467 = vmatprep.subr.mxu0 0.0
    %468 = vmatpush2.msra.mxu0 0.0
    %469 = vmatprep.subr.mxu0 0.0
    %470 = vmatpush2.msra.mxu0 0.0
    %471 = vmatprep.subr.mxu0 0.0
    %472 = vmatpush2.msra.mxu0 0.0
    %473 = vmatprep.subr.mxu0 0.0
    %474 = vmatpush2.msra.mxu0 0.0
    %475 = vmatprep.subr.mxu0 0.0
    %476 = vmatpush2.msra.mxu0 0.0
    %477 = vmatprep.subr.mxu0 0.0
    %478 = vmatpush2.msra.mxu0 0.0
    %479 = vmatprep.subr.mxu0 0.0
    %480 = vmatpush2.msra.mxu0 0.0
    %481 = vmatprep.subr.mxu0 0.0
    %482 = vmatpush2.msra.mxu0 0.0
    %483 = vmatprep.subr.mxu0 0.0
    %484 = vmatpush2.msra.mxu0 0.0
    %485 = vmatprep.subr.mxu0 0.0
    %486 = vmatpush2.msra.mxu0 0.0
    %487 = vmatprep.subr.mxu0 0.0
    %488 = vmatpush2.msra.mxu0 0.0
    %489 = vmatprep.subr.mxu0 0.0
    %490 = vmatpush2.msra.mxu0 0.0
    %491 = vmatprep.subr.mxu0 0.0
    %492 = vmatpush2.msra.mxu0 0.0
    %493 = vmatprep.subr.mxu0 0.0
    %494 = vmatpush2.msra.mxu0 0.0
    %495 = vmatprep.subr.mxu0 0.0
    %496 = vmatpush2.msra.mxu0 0.0
    %497 = vmatprep.subr.mxu0 0.0
    %498 = vmatpush2.msra.mxu0 0.0
    %499 = vmatprep.mubr.f32.mxu0 0.0
    %500 = vmatmul.mubr.f32.gmra.mxu0 %v433
    %v501 = vpop.f32.mrf.mxu0
    %v502 = vadd.f32 %v431, %v501
    %v503 = vpop.f32.mrf.mxu0
    %v504 = vadd.f32 %v432, %v503
    %505 = vdwg.mxu0
    %v506 = vxor.u32 %v502, 2147483648
    %v507 = vmul.f32 %v506, 1.442695
    %v508 = vpow.pop %v507
    %v509 = vadd.f32 %v508, 1.0
    %v510 = vrcp.pop %v509
    %v511 = vmul.f32 1.0, %v510
    %v512 = vtanh.pop %v504
    %v513 = vxor.u32 %v504, 2147483648
    %v514 = vmul.f32 %v513, 1.442695
    %v515 = vpow.pop %v514
    %v516 = vadd.f32 %v515, 1.0
    %v517 = vrcp.pop %v516
    %v518 = vmul.f32 1.0, %v517
    %v519 = vmul.f32 %v511, %v409
    %v520 = vmul.f32 %v511, %v512
    %522 = vrot.lane.b32.xlu0 %v520, 64
    %v523 = vpop.permute.xlu0 %522
    %v525 = vadd.f32 %v519, %v523
    %v526 = vtanh.pop %v525
    %v527 = vmul.f32 %v518, %v526
    %529 = vrot.lane.b32.xlu0 %v527, 64
    %v530 = vpop.permute.xlu0 %529
    %s532 = scalar_lea.vmem [#allocation3], 8
    %533 = vst.msk [vmem:[%s532] sm:$0xff] %vm416, %v530
    %s534 = scalar_lea.vmem [#allocation3], 48
    %535 = vst.msk [vmem:[%s534] sm:$0xff] %vm419, %v530
    %s536 = smul.u32 2, 2
    %s537 = smul.addr %s536, 8
    %s538 = scalar_lea.vmem [#allocation2], %s537
    %v539 = vld [vmem:[%s538] sm:$0xff]
    %v540 = vld [vmem:[%s538 + $0x8] sm:$0xff]
    %s541 = smul.u32 5, 2
    %s542 = smul.addr %s541, 8
    %s543 = scalar_lea.vmem [#allocation2], %s542
    %v544 = vld [vmem:[%s543] sm:$0xff]
    %v545 = vld [vmem:[%s543 + $0x8] sm:$0xff]
    %v546 = vsel %vm101, %v539, %v544
    %v547 = vsel %vm102, %v540, %v545
    %v548 = vsel %vm311, %v530, 0
    %550 = vmatprep.subr.mxu0 0.0
    %551 = vmatpush1.msra.mxu0 0.0
    %552 = vmatprep.subr.mxu0 0.0
    %553 = vmatpush1.msra.mxu0 0.0
    %554 = vmatprep.subr.mxu0 0.0
    %555 = vmatpush1.msra.mxu0 0.0
    %556 = vmatprep.subr.mxu0 0.0
    %557 = vmatpush1.msra.mxu0 0.0
    %558 = vmatprep.subr.mxu0 0.0
    %559 = vmatpush1.msra.mxu0 0.0
    %560 = vmatprep.subr.mxu0 0.0
    %561 = vmatpush1.msra.mxu0 0.0
    %562 = vmatprep.subr.mxu0 0.0
    %563 = vmatpush1.msra.mxu0 0.0
    %564 = vmatprep.subr.mxu0 0.0
    %565 = vmatpush1.msra.mxu0 0.0
    %566 = vmatprep.subr.mxu0 %v296
    %567 = vmatpush1.msra.mxu0 %v295
    %568 = vmatprep.subr.mxu0 %v294
    %569 = vmatpush1.msra.mxu0 %v293
    %570 = vmatprep.subr.mxu0 %v292
    %571 = vmatpush1.msra.mxu0 %v291
    %572 = vmatprep.subr.mxu0 %v290
    %573 = vmatpush1.msra.mxu0 %v289
    %574 = vmatprep.subr.mxu0 %v288
    %575 = vmatpush1.msra.mxu0 %v287
    %576 = vmatprep.subr.mxu0 %v286
    %577 = vmatpush1.msra.mxu0 %v285
    %578 = vmatprep.subr.mxu0 %v284
    %579 = vmatpush1.msra.mxu0 %v283
    %580 = vmatprep.subr.mxu0 %v282
    %581 = vmatpush1.msra.mxu0 %v281
    %582 = vmatprep.subr.mxu0 0.0
    %583 = vmatpush2.msra.mxu0 0.0
    %584 = vmatprep.subr.mxu0 0.0
    %585 = vmatpush2.msra.mxu0 0.0
    %586 = vmatprep.subr.mxu0 0.0
    %587 = vmatpush2.msra.mxu0 0.0
    %588 = vmatprep.subr.mxu0 0.0
    %589 = vmatpush2.msra.mxu0 0.0
    %590 = vmatprep.subr.mxu0 0.0
    %591 = vmatpush2.msra.mxu0 0.0
    %592 = vmatprep.subr.mxu0 0.0
    %593 = vmatpush2.msra.mxu0 0.0
    %594 = vmatprep.subr.mxu0 0.0
    %595 = vmatpush2.msra.mxu0 0.0
    %596 = vmatprep.subr.mxu0 0.0
    %597 = vmatpush2.msra.mxu0 0.0
    %598 = vmatprep.subr.mxu0 0.0
    %599 = vmatpush2.msra.mxu0 0.0
    %600 = vmatprep.subr.mxu0 0.0
    %601 = vmatpush2.msra.mxu0 0.0
    %602 = vmatprep.subr.mxu0 0.0
    %603 = vmatpush2.msra.mxu0 0.0
    %604 = vmatprep.subr.mxu0 0.0
    %605 = vmatpush2.msra.mxu0 0.0
    %606 = vmatprep.subr.mxu0 0.0
    %607 = vmatpush2.msra.mxu0 0.0
    %608 = vmatprep.subr.mxu0 0.0
    %609 = vmatpush2.msra.mxu0 0.0
    %610 = vmatprep.subr.mxu0 0.0
    %611 = vmatpush2.msra.mxu0 0.0
    %612 = vmatprep.subr.mxu0 0.0
    %613 = vmatpush2.msra.mxu0 0.0
    %614 = vmatprep.mubr.f32.mxu0 0.0
    %615 = vmatmul.mubr.f32.gmra.mxu0 %v548
    %v616 = vpop.f32.mrf.mxu0
    %v617 = vadd.f32 %v546, %v616
    %v618 = vpop.f32.mrf.mxu0
    %v619 = vadd.f32 %v547, %v618
    %620 = vdwg.mxu0
    %v621 = vxor.u32 %v617, 2147483648
    %v622 = vmul.f32 %v621, 1.442695
    %v623 = vpow.pop %v622
    %v624 = vadd.f32 %v623, 1.0
    %v625 = vrcp.pop %v624
    %v626 = vmul.f32 1.0, %v625
    %v627 = vtanh.pop %v619
    %v628 = vxor.u32 %v619, 2147483648
    %v629 = vmul.f32 %v628, 1.442695
    %v630 = vpow.pop %v629
    %v631 = vadd.f32 %v630, 1.0
    %v632 = vrcp.pop %v631
    %v633 = vmul.f32 1.0, %v632
    %v634 = vmul.f32 %v626, %v525
    %v635 = vmul.f32 %v626, %v627
    %637 = vrot.lane.b32.xlu0 %v635, 64
    %v638 = vpop.permute.xlu0 %637
    %v640 = vadd.f32 %v634, %v638
    %v641 = vtanh.pop %v640
    %v642 = vmul.f32 %v633, %v641
    %644 = vrot.lane.b32.xlu0 %v642, 64
    %v645 = vpop.permute.xlu0 %644
    %s647 = scalar_lea.vmem [#allocation3], 16
    %648 = vst.msk [vmem:[%s647] sm:$0xff] %vm416, %v645
    %s649 = scalar_lea.vmem [#allocation3], 40
    %650 = vst.msk [vmem:[%s649] sm:$0xff] %vm419, %v645
    %s651 = smul.u32 3, 2
    %s652 = smul.addr %s651, 8
    %s653 = scalar_lea.vmem [#allocation2], %s652
    %v654 = vld [vmem:[%s653] sm:$0xff]
    %v655 = vld [vmem:[%s653 + $0x8] sm:$0xff]
    %s656 = smul.u32 4, 2
    %s657 = smul.addr %s656, 8
    %s658 = scalar_lea.vmem [#allocation2], %s657
    %v659 = vld [vmem:[%s658] sm:$0xff]
    %v660 = vld [vmem:[%s658 + $0x8] sm:$0xff]
    %v661 = vsel %vm101, %v654, %v659
    %v662 = vsel %vm102, %v655, %v660
    %v663 = vsel %vm311, %v645, 0
    %665 = vmatprep.subr.mxu0 0.0
    %666 = vmatpush1.msra.mxu0 0.0
    %667 = vmatprep.subr.mxu0 0.0
    %668 = vmatpush1.msra.mxu0 0.0
    %669 = vmatprep.subr.mxu0 0.0
    %670 = vmatpush1.msra.mxu0 0.0
    %671 = vmatprep.subr.mxu0 0.0
    %672 = vmatpush1.msra.mxu0 0.0
    %673 = vmatprep.subr.mxu0 0.0
    %674 = vmatpush1.msra.mxu0 0.0
    %675 = vmatprep.subr.mxu0 0.0
    %676 = vmatpush1.msra.mxu0 0.0
    %677 = vmatprep.subr.mxu0 0.0
    %678 = vmatpush1.msra.mxu0 0.0
    %679 = vmatprep.subr.mxu0 0.0
    %680 = vmatpush1.msra.mxu0 0.0
    %681 = vmatprep.subr.mxu0 %v296
    %682 = vmatpush1.msra.mxu0 %v295
    %683 = vmatprep.subr.mxu0 %v294
    %684 = vmatpush1.msra.mxu0 %v293
    %685 = vmatprep.subr.mxu0 %v292
    %686 = vmatpush1.msra.mxu0 %v291
    %687 = vmatprep.subr.mxu0 %v290
    %688 = vmatpush1.msra.mxu0 %v289
    %689 = vmatprep.subr.mxu0 %v288
    %690 = vmatpush1.msra.mxu0 %v287
    %691 = vmatprep.subr.mxu0 %v286
    %692 = vmatpush1.msra.mxu0 %v285
    %693 = vmatprep.subr.mxu0 %v284
    %694 = vmatpush1.msra.mxu0 %v283
    %695 = vmatprep.subr.mxu0 %v282
    %696 = vmatpush1.msra.mxu0 %v281
    %697 = vmatprep.subr.mxu0 0.0
    %698 = vmatpush2.msra.mxu0 0.0
    %699 = vmatprep.subr.mxu0 0.0
    %700 = vmatpush2.msra.mxu0 0.0
    %701 = vmatprep.subr.mxu0 0.0
    %702 = vmatpush2.msra.mxu0 0.0
    %703 = vmatprep.subr.mxu0 0.0
    %704 = vmatpush2.msra.mxu0 0.0
    %705 = vmatprep.subr.mxu0 0.0
    %706 = vmatpush2.msra.mxu0 0.0
    %707 = vmatprep.subr.mxu0 0.0
    %708 = vmatpush2.msra.mxu0 0.0
    %709 = vmatprep.subr.mxu0 0.0
    %710 = vmatpush2.msra.mxu0 0.0
    %711 = vmatprep.subr.mxu0 0.0
    %712 = vmatpush2.msra.mxu0 0.0
    %713 = vmatprep.subr.mxu0 0.0
    %714 = vmatpush2.msra.mxu0 0.0
    %715 = vmatprep.subr.mxu0 0.0
    %716 = vmatpush2.msra.mxu0 0.0
    %717 = vmatprep.subr.mxu0 0.0
    %718 = vmatpush2.msra.mxu0 0.0
    %719 = vmatprep.subr.mxu0 0.0
    %720 = vmatpush2.msra.mxu0 0.0
    %721 = vmatprep.subr.mxu0 0.0
    %722 = vmatpush2.msra.mxu0 0.0
    %723 = vmatprep.subr.mxu0 0.0
    %724 = vmatpush2.msra.mxu0 0.0
    %725 = vmatprep.subr.mxu0 0.0
    %726 = vmatpush2.msra.mxu0 0.0
    %727 = vmatprep.subr.mxu0 0.0
    %728 = vmatpush2.msra.mxu0 0.0
    %729 = vmatprep.mubr.f32.mxu0 0.0
    %730 = vmatmul.mubr.f32.gmra.mxu0 %v663
    %v731 = vpop.f32.mrf.mxu0
    %v732 = vadd.f32 %v661, %v731
    %v733 = vpop.f32.mrf.mxu0
    %v734 = vadd.f32 %v662, %v733
    %735 = vdwg.mxu0
    %v736 = vxor.u32 %v732, 2147483648
    %v737 = vmul.f32 %v736, 1.442695
    %v738 = vpow.pop %v737
    %v739 = vadd.f32 %v738, 1.0
    %v740 = vrcp.pop %v739
    %v741 = vmul.f32 1.0, %v740
    %v742 = vtanh.pop %v734
    %v743 = vxor.u32 %v734, 2147483648
    %v744 = vmul.f32 %v743, 1.442695
    %v745 = vpow.pop %v744
    %v746 = vadd.f32 %v745, 1.0
    %v747 = vrcp.pop %v746
    %v748 = vmul.f32 1.0, %v747
    %v749 = vmul.f32 %v741, %v640
    %v750 = vmul.f32 %v741, %v742
    %752 = vrot.lane.b32.xlu0 %v750, 64
    %v753 = vpop.permute.xlu0 %752
    %v755 = vadd.f32 %v749, %v753
    %v756 = vtanh.pop %v755
    %v757 = vmul.f32 %v748, %v756
    %759 = vrot.lane.b32.xlu0 %v757, 64
    %v760 = vpop.permute.xlu0 %759
    %s762 = scalar_lea.vmem [#allocation3], 24
    %763 = vst.msk [vmem:[%s762] sm:$0xff] %vm416, %v760
    %s764 = scalar_lea.vmem [#allocation3], 32
    %765 = vst.msk [vmem:[%s764] sm:$0xff] %vm419, %v760
    %v766 = vld [vmem:[%s658] sm:$0xff]
    %v767 = vld [vmem:[%s658 + $0x8] sm:$0xff]
    %v768 = vld [vmem:[%s653] sm:$0xff]
    %v769 = vld [vmem:[%s653 + $0x8] sm:$0xff]
    %v770 = vsel %vm101, %v766, %v768
    %v771 = vsel %vm102, %v767, %v769
    %v772 = vsel %vm311, %v760, 0
    %774 = vmatprep.subr.mxu0 0.0
    %775 = vmatpush1.msra.mxu0 0.0
    %776 = vmatprep.subr.mxu0 0.0
    %777 = vmatpush1.msra.mxu0 0.0
    %778 = vmatprep.subr.mxu0 0.0
    %779 = vmatpush1.msra.mxu0 0.0
    %780 = vmatprep.subr.mxu0 0.0
    %781 = vmatpush1.msra.mxu0 0.0
    %782 = vmatprep.subr.mxu0 0.0
    %783 = vmatpush1.msra.mxu0 0.0
    %784 = vmatprep.subr.mxu0 0.0
    %785 = vmatpush1.msra.mxu0 0.0
    %786 = vmatprep.subr.mxu0 0.0
    %787 = vmatpush1.msra.mxu0 0.0
    %788 = vmatprep.subr.mxu0 0.0
    %789 = vmatpush1.msra.mxu0 0.0
    %790 = vmatprep.subr.mxu0 %v296
    %791 = vmatpush1.msra.mxu0 %v295
    %792 = vmatprep.subr.mxu0 %v294
    %793 = vmatpush1.msra.mxu0 %v293
    %794 = vmatprep.subr.mxu0 %v292
    %795 = vmatpush1.msra.mxu0 %v291
    %796 = vmatprep.subr.mxu0 %v290
    %797 = vmatpush1.msra.mxu0 %v289
    %798 = vmatprep.subr.mxu0 %v288
    %799 = vmatpush1.msra.mxu0 %v287
    %800 = vmatprep.subr.mxu0 %v286
    %801 = vmatpush1.msra.mxu0 %v285
    %802 = vmatprep.subr.mxu0 %v284
    %803 = vmatpush1.msra.mxu0 %v283
    %804 = vmatprep.subr.mxu0 %v282
    %805 = vmatpush1.msra.mxu0 %v281
    %806 = vmatprep.subr.mxu0 0.0
    %807 = vmatpush2.msra.mxu0 0.0
    %808 = vmatprep.subr.mxu0 0.0
    %809 = vmatpush2.msra.mxu0 0.0
    %810 = vmatprep.subr.mxu0 0.0
    %811 = vmatpush2.msra.mxu0 0.0
    %812 = vmatprep.subr.mxu0 0.0
    %813 = vmatpush2.msra.mxu0 0.0
    %814 = vmatprep.subr.mxu0 0.0
    %815 = vmatpush2.msra.mxu0 0.0
    %816 = vmatprep.subr.mxu0 0.0
    %817 = vmatpush2.msra.mxu0 0.0
    %818 = vmatprep.subr.mxu0 0.0
    %819 = vmatpush2.msra.mxu0 0.0
    %820 = vmatprep.subr.mxu0 0.0
    %821 = vmatpush2.msra.mxu0 0.0
    %822 = vmatprep.subr.mxu0 0.0
    %823 = vmatpush2.msra.mxu0 0.0
    %824 = vmatprep.subr.mxu0 0.0
    %825 = vmatpush2.msra.mxu0 0.0
    %826 = vmatprep.subr.mxu0 0.0
    %827 = vmatpush2.msra.mxu0 0.0
    %828 = vmatprep.subr.mxu0 0.0
    %829 = vmatpush2.msra.mxu0 0.0
    %830 = vmatprep.subr.mxu0 0.0
    %831 = vmatpush2.msra.mxu0 0.0
    %832 = vmatprep.subr.mxu0 0.0
    %833 = vmatpush2.msra.mxu0 0.0
    %834 = vmatprep.subr.mxu0 0.0
    %835 = vmatpush2.msra.mxu0 0.0
    %836 = vmatprep.subr.mxu0 0.0
    %837 = vmatpush2.msra.mxu0 0.0
    %838 = vmatprep.mubr.f32.mxu0 0.0
    %839 = vmatmul.mubr.f32.gmra.mxu0 %v772
    %v840 = vpop.f32.mrf.mxu0
    %v841 = vadd.f32 %v770, %v840
    %v842 = vpop.f32.mrf.mxu0
    %v843 = vadd.f32 %v771, %v842
    %844 = vdwg.mxu0
    %v845 = vxor.u32 %v841, 2147483648
    %v846 = vmul.f32 %v845, 1.442695
    %v847 = vpow.pop %v846
    %v848 = vadd.f32 %v847, 1.0
    %v849 = vrcp.pop %v848
    %v850 = vmul.f32 1.0, %v849
    %v851 = vtanh.pop %v843
    %v852 = vxor.u32 %v843, 2147483648
    %v853 = vmul.f32 %v852, 1.442695
    %v854 = vpow.pop %v853
    %v855 = vadd.f32 %v854, 1.0
    %v856 = vrcp.pop %v855
    %v857 = vmul.f32 1.0, %v856
    %v858 = vmul.f32 %v850, %v755
    %v859 = vmul.f32 %v850, %v851
    %861 = vrot.lane.b32.xlu0 %v859, 64
    %v862 = vpop.permute.xlu0 %861
    %v864 = vadd.f32 %v858, %v862
    %v865 = vtanh.pop %v864
    %v866 = vmul.f32 %v857, %v865
    %868 = vrot.lane.b32.xlu0 %v866, 64
    %v869 = vpop.permute.xlu0 %868
    %871 = vst.msk [vmem:[%s764] sm:$0xff] %vm416, %v869
    %872 = vst.msk [vmem:[%s762] sm:$0xff] %vm419, %v869
    %v873 = vld [vmem:[%s543] sm:$0xff]
    %v874 = vld [vmem:[%s543 + $0x8] sm:$0xff]
    %v875 = vld [vmem:[%s538] sm:$0xff]
    %v876 = vld [vmem:[%s538 + $0x8] sm:$0xff]
    %v877 = vsel %vm101, %v873, %v875
    %v878 = vsel %vm102, %v874, %v876
    %v879 = vsel %vm311, %v869, 0
    %881 = vmatprep.subr.mxu0 0.0
    %882 = vmatpush1.msra.mxu0 0.0
    %883 = vmatprep.subr.mxu0 0.0
    %884 = vmatpush1.msra.mxu0 0.0
    %885 = vmatprep.subr.mxu0 0.0
    %886 = vmatpush1.msra.mxu0 0.0
    %887 = vmatprep.subr.mxu0 0.0
    %888 = vmatpush1.msra.mxu0 0.0
    %889 = vmatprep.subr.mxu0 0.0
    %890 = vmatpush1.msra.mxu0 0.0
    %891 = vmatprep.subr.mxu0 0.0
    %892 = vmatpush1.msra.mxu0 0.0
    %893 = vmatprep.subr.mxu0 0.0
    %894 = vmatpush1.msra.mxu0 0.0
    %895 = vmatprep.subr.mxu0 0.0
    %896 = vmatpush1.msra.mxu0 0.0
    %897 = vmatprep.subr.mxu0 %v296
    %898 = vmatpush1.msra.mxu0 %v295
    %899 = vmatprep.subr.mxu0 %v294
    %900 = vmatpush1.msra.mxu0 %v293
    %901 = vmatprep.subr.mxu0 %v292
    %902 = vmatpush1.msra.mxu0 %v291
    %903 = vmatprep.subr.mxu0 %v290
    %904 = vmatpush1.msra.mxu0 %v289
    %905 = vmatprep.subr.mxu0 %v288
    %906 = vmatpush1.msra.mxu0 %v287
    %907 = vmatprep.subr.mxu0 %v286
    %908 = vmatpush1.msra.mxu0 %v285
    %909 = vmatprep.subr.mxu0 %v284
    %910 = vmatpush1.msra.mxu0 %v283
    %911 = vmatprep.subr.mxu0 %v282
    %912 = vmatpush1.msra.mxu0 %v281
    %913 = vmatprep.subr.mxu0 0.0
    %914 = vmatpush2.msra.mxu0 0.0
    %915 = vmatprep.subr.mxu0 0.0
    %916 = vmatpush2.msra.mxu0 0.0
    %917 = vmatprep.subr.mxu0 0.0
    %918 = vmatpush2.msra.mxu0 0.0
    %919 = vmatprep.subr.mxu0 0.0
    %920 = vmatpush2.msra.mxu0 0.0
    %921 = vmatprep.subr.mxu0 0.0
    %922 = vmatpush2.msra.mxu0 0.0
    %923 = vmatprep.subr.mxu0 0.0
    %924 = vmatpush2.msra.mxu0 0.0
    %925 = vmatprep.subr.mxu0 0.0
    %926 = vmatpush2.msra.mxu0 0.0
    %927 = vmatprep.subr.mxu0 0.0
    %928 = vmatpush2.msra.mxu0 0.0
    %929 = vmatprep.subr.mxu0 0.0
    %930 = vmatpush2.msra.mxu0 0.0
    %931 = vmatprep.subr.mxu0 0.0
    %932 = vmatpush2.msra.mxu0 0.0
    %933 = vmatprep.subr.mxu0 0.0
    %934 = vmatpush2.msra.mxu0 0.0
    %935 = vmatprep.subr.mxu0 0.0
    %936 = vmatpush2.msra.mxu0 0.0
    %937 = vmatprep.subr.mxu0 0.0
    %938 = vmatpush2.msra.mxu0 0.0
    %939 = vmatprep.subr.mxu0 0.0
    %940 = vmatpush2.msra.mxu0 0.0
    %941 = vmatprep.subr.mxu0 0.0
    %942 = vmatpush2.msra.mxu0 0.0
    %943 = vmatprep.subr.mxu0 0.0
    %944 = vmatpush2.msra.mxu0 0.0
    %945 = vmatprep.mubr.f32.mxu0 0.0
    %946 = vmatmul.mubr.f32.gmra.mxu0 %v879
    %v947 = vpop.f32.mrf.mxu0
    %v948 = vadd.f32 %v877, %v947
    %v949 = vpop.f32.mrf.mxu0
    %v950 = vadd.f32 %v878, %v949
    %951 = vdwg.mxu0
    %v952 = vxor.u32 %v948, 2147483648
    %v953 = vmul.f32 %v952, 1.442695
    %v954 = vpow.pop %v953
    %v955 = vadd.f32 %v954, 1.0
    %v956 = vrcp.pop %v955
    %v957 = vmul.f32 1.0, %v956
    %v958 = vtanh.pop %v950
    %v959 = vxor.u32 %v950, 2147483648
    %v960 = vmul.f32 %v959, 1.442695
    %v961 = vpow.pop %v960
    %v962 = vadd.f32 %v961, 1.0
    %v963 = vrcp.pop %v962
    %v964 = vmul.f32 1.0, %v963
    %v965 = vmul.f32 %v957, %v864
    %v966 = vmul.f32 %v957, %v958
    %968 = vrot.lane.b32.xlu0 %v966, 64
    %v969 = vpop.permute.xlu0 %968
    %v971 = vadd.f32 %v965, %v969
    %v972 = vtanh.pop %v971
    %v973 = vmul.f32 %v964, %v972
    %975 = vrot.lane.b32.xlu0 %v973, 64
    %v976 = vpop.permute.xlu0 %975
    %978 = vst.msk [vmem:[%s649] sm:$0xff] %vm416, %v976
    %979 = vst.msk [vmem:[%s647] sm:$0xff] %vm419, %v976
    %v980 = vld [vmem:[%s428] sm:$0xff]
    %v981 = vld [vmem:[%s428 + $0x8] sm:$0xff]
    %v982 = vld [vmem:[%s423] sm:$0xff]
    %v983 = vld [vmem:[%s423 + $0x8] sm:$0xff]
    %v984 = vsel %vm101, %v980, %v982
    %v985 = vsel %vm102, %v981, %v983
    %v986 = vsel %vm311, %v976, 0
    %988 = vmatprep.subr.mxu0 0.0
    %989 = vmatpush1.msra.mxu0 0.0
    %990 = vmatprep.subr.mxu0 0.0
    %991 = vmatpush1.msra.mxu0 0.0
    %992 = vmatprep.subr.mxu0 0.0
    %993 = vmatpush1.msra.mxu0 0.0
    %994 = vmatprep.subr.mxu0 0.0
    %995 = vmatpush1.msra.mxu0 0.0
    %996 = vmatprep.subr.mxu0 0.0
    %997 = vmatpush1.msra.mxu0 0.0
    %998 = vmatprep.subr.mxu0 0.0
    %999 = vmatpush1.msra.mxu0 0.0
    %1000 = vmatprep.subr.mxu0 0.0
    %1001 = vmatpush1.msra.mxu0 0.0
    %1002 = vmatprep.subr.mxu0 0.0
    %1003 = vmatpush1.msra.mxu0 0.0
    %1004 = vmatprep.subr.mxu0 %v296
    %1005 = vmatpush1.msra.mxu0 %v295
    %1006 = vmatprep.subr.mxu0 %v294
    %1007 = vmatpush1.msra.mxu0 %v293
    %1008 = vmatprep.subr.mxu0 %v292
    %1009 = vmatpush1.msra.mxu0 %v291
    %1010 = vmatprep.subr.mxu0 %v290
    %1011 = vmatpush1.msra.mxu0 %v289
    %1012 = vmatprep.subr.mxu0 %v288
    %1013 = vmatpush1.msra.mxu0 %v287
    %1014 = vmatprep.subr.mxu0 %v286
    %1015 = vmatpush1.msra.mxu0 %v285
    %1016 = vmatprep.subr.mxu0 %v284
    %1017 = vmatpush1.msra.mxu0 %v283
    %1018 = vmatprep.subr.mxu0 %v282
    %1019 = vmatpush1.msra.mxu0 %v281
    %1020 = vmatprep.subr.mxu0 0.0
    %1021 = vmatpush2.msra.mxu0 0.0
    %1022 = vmatprep.subr.mxu0 0.0
    %1023 = vmatpush2.msra.mxu0 0.0
    %1024 = vmatprep.subr.mxu0 0.0
    %1025 = vmatpush2.msra.mxu0 0.0
    %1026 = vmatprep.subr.mxu0 0.0
    %1027 = vmatpush2.msra.mxu0 0.0
    %1028 = vmatprep.subr.mxu0 0.0
    %1029 = vmatpush2.msra.mxu0 0.0
    %1030 = vmatprep.subr.mxu0 0.0
    %1031 = vmatpush2.msra.mxu0 0.0
    %1032 = vmatprep.subr.mxu0 0.0
    %1033 = vmatpush2.msra.mxu0 0.0
    %1034 = vmatprep.subr.mxu0 0.0
    %1035 = vmatpush2.msra.mxu0 0.0
    %1036 = vmatprep.subr.mxu0 0.0
    %1037 = vmatpush2.msra.mxu0 0.0
    %1038 = vmatprep.subr.mxu0 0.0
    %1039 = vmatpush2.msra.mxu0 0.0
    %1040 = vmatprep.subr.mxu0 0.0
    %1041 = vmatpush2.msra.mxu0 0.0
    %1042 = vmatprep.subr.mxu0 0.0
    %1043 = vmatpush2.msra.mxu0 0.0
    %1044 = vmatprep.subr.mxu0 0.0
    %1045 = vmatpush2.msra.mxu0 0.0
    %1046 = vmatprep.subr.mxu0 0.0
    %1047 = vmatpush2.msra.mxu0 0.0
    %1048 = vmatprep.subr.mxu0 0.0
    %1049 = vmatpush2.msra.mxu0 0.0
    %1050 = vmatprep.subr.mxu0 0.0
    %1051 = vmatpush2.msra.mxu0 0.0
    %1052 = vmatprep.mubr.f32.mxu0 0.0
    %1053 = vmatmul.mubr.f32.gmra.mxu0 %v986
    %v1054 = vpop.f32.mrf.mxu0
    %v1055 = vadd.f32 %v984, %v1054
    %v1056 = vpop.f32.mrf.mxu0
    %v1057 = vadd.f32 %v985, %v1056
    %1058 = vdwg.mxu0
    %v1059 = vxor.u32 %v1055, 2147483648
    %v1060 = vmul.f32 %v1059, 1.442695
    %v1061 = vpow.pop %v1060
    %v1062 = vadd.f32 %v1061, 1.0
    %v1063 = vrcp.pop %v1062
    %v1064 = vmul.f32 1.0, %v1063
    %v1065 = vtanh.pop %v1057
    %v1066 = vxor.u32 %v1057, 2147483648
    %v1067 = vmul.f32 %v1066, 1.442695
    %v1068 = vpow.pop %v1067
    %v1069 = vadd.f32 %v1068, 1.0
    %v1070 = vrcp.pop %v1069
    %v1071 = vmul.f32 1.0, %v1070
    %v1072 = vmul.f32 %v1064, %v971
    %v1073 = vmul.f32 %v1064, %v1065
    %1075 = vrot.lane.b32.xlu0 %v1073, 64
    %v1076 = vpop.permute.xlu0 %1075
    %v1078 = vadd.f32 %v1072, %v1076
    %v1079 = vtanh.pop %v1078
    %v1080 = vmul.f32 %v1071, %v1079
    %1082 = vrot.lane.b32.xlu0 %v1080, 64
    %v1083 = vpop.permute.xlu0 %1082
    %1085 = vst.msk [vmem:[%s534] sm:$0xff] %vm416, %v1083
    %1086 = vst.msk [vmem:[%s532] sm:$0xff] %vm419, %v1083
    %v1087 = vld [vmem:[%s306] sm:$0xff]
    %v1088 = vld [vmem:[%s306 + $0x8] sm:$0xff]
    %v1089 = vld [vmem:[%s301] sm:$0xff]
    %v1090 = vld [vmem:[%s301 + $0x8] sm:$0xff]
    %v1091 = vsel %vm101, %v1087, %v1089
    %v1092 = vsel %vm102, %v1088, %v1090
    %v1093 = vsel %vm311, %v1083, 0
    %1095 = vmatprep.subr.mxu0 0.0
    %1096 = vmatpush1.msra.mxu0 0.0
    %1097 = vmatprep.subr.mxu0 0.0
    %1098 = vmatpush1.msra.mxu0 0.0
    %1099 = vmatprep.subr.mxu0 0.0
    %1100 = vmatpush1.msra.mxu0 0.0
    %1101 = vmatprep.subr.mxu0 0.0
    %1102 = vmatpush1.msra.mxu0 0.0
    %1103 = vmatprep.subr.mxu0 0.0
    %1104 = vmatpush1.msra.mxu0 0.0
    %1105 = vmatprep.subr.mxu0 0.0
    %1106 = vmatpush1.msra.mxu0 0.0
    %1107 = vmatprep.subr.mxu0 0.0
    %1108 = vmatpush1.msra.mxu0 0.0
    %1109 = vmatprep.subr.mxu0 0.0
    %1110 = vmatpush1.msra.mxu0 0.0
    %1111 = vmatprep.subr.mxu0 %v296
    %1112 = vmatpush1.msra.mxu0 %v295
    %1113 = vmatprep.subr.mxu0 %v294
    %1114 = vmatpush1.msra.mxu0 %v293
    %1115 = vmatprep.subr.mxu0 %v292
    %1116 = vmatpush1.msra.mxu0 %v291
    %1117 = vmatprep.subr.mxu0 %v290
    %1118 = vmatpush1.msra.mxu0 %v289
    %1119 = vmatprep.subr.mxu0 %v288
    %1120 = vmatpush1.msra.mxu0 %v287
    %1121 = vmatprep.subr.mxu0 %v286
    %1122 = vmatpush1.msra.mxu0 %v285
    %1123 = vmatprep.subr.mxu0 %v284
    %1124 = vmatpush1.msra.mxu0 %v283
    %1125 = vmatprep.subr.mxu0 %v282
    %1126 = vmatpush1.msra.mxu0 %v281
    %1127 = vmatprep.subr.mxu0 0.0
    %1128 = vmatpush2.msra.mxu0 0.0
    %1129 = vmatprep.subr.mxu0 0.0
    %1130 = vmatpush2.msra.mxu0 0.0
    %1131 = vmatprep.subr.mxu0 0.0
    %1132 = vmatpush2.msra.mxu0 0.0
    %1133 = vmatprep.subr.mxu0 0.0
    %1134 = vmatpush2.msra.mxu0 0.0
    %1135 = vmatprep.subr.mxu0 0.0
    %1136 = vmatpush2.msra.mxu0 0.0
    %1137 = vmatprep.subr.mxu0 0.0
    %1138 = vmatpush2.msra.mxu0 0.0
    %1139 = vmatprep.subr.mxu0 0.0
    %1140 = vmatpush2.msra.mxu0 0.0
    %1141 = vmatprep.subr.mxu0 0.0
    %1142 = vmatpush2.msra.mxu0 0.0
    %1143 = vmatprep.subr.mxu0 0.0
    %1144 = vmatpush2.msra.mxu0 0.0
    %1145 = vmatprep.subr.mxu0 0.0
    %1146 = vmatpush2.msra.mxu0 0.0
    %1147 = vmatprep.subr.mxu0 0.0
    %1148 = vmatpush2.msra.mxu0 0.0
    %1149 = vmatprep.subr.mxu0 0.0
    %1150 = vmatpush2.msra.mxu0 0.0
    %1151 = vmatprep.subr.mxu0 0.0
    %1152 = vmatpush2.msra.mxu0 0.0
    %1153 = vmatprep.subr.mxu0 0.0
    %1154 = vmatpush2.msra.mxu0 0.0
    %1155 = vmatprep.subr.mxu0 0.0
    %1156 = vmatpush2.msra.mxu0 0.0
    %1157 = vmatprep.subr.mxu0 0.0
    %1158 = vmatpush2.msra.mxu0 0.0
    %1159 = vmatprep.mubr.f32.mxu0 0.0
    %1160 = vmatmul.mubr.f32.gmra.mxu0 %v1093
    %v1161 = vpop.f32.mrf.mxu0
    %v1162 = vadd.f32 %v1091, %v1161
    %v1163 = vpop.f32.mrf.mxu0
    %v1164 = vadd.f32 %v1092, %v1163
    %1165 = vdwg.mxu0
    %v1166 = vxor.u32 %v1162, 2147483648
    %v1167 = vmul.f32 %v1166, 1.442695
    %v1168 = vpow.pop %v1167
    %v1169 = vadd.f32 %v1168, 1.0
    %v1170 = vrcp.pop %v1169
    %v1171 = vmul.f32 1.0, %v1170
    %v1172 = vtanh.pop %v1164
    %v1173 = vxor.u32 %v1164, 2147483648
    %v1174 = vmul.f32 %v1173, 1.442695
    %v1175 = vpow.pop %v1174
    %v1176 = vadd.f32 %v1175, 1.0
    %v1177 = vrcp.pop %v1176
    %v1178 = vmul.f32 1.0, %v1177
    %v1179 = vmul.f32 %v1171, %v1078
    %v1180 = vmul.f32 %v1171, %v1172
    %1182 = vrot.lane.b32.xlu0 %v1180, 64
    %v1183 = vpop.permute.xlu0 %1182
    %v1185 = vadd.f32 %v1179, %v1183
    %v1186 = vtanh.pop %v1185
    %v1187 = vmul.f32 %v1178, %v1186
    %1189 = vrot.lane.b32.xlu0 %v1187, 64
    %v1190 = vpop.permute.xlu0 %1189
    %1192 = vst.msk [vmem:[%s418] sm:$0xff] %vm416, %v1190
    %1193 = vst.msk [vmem:[#allocation3] sm:$0xff] %vm419, %v1190
    %1194 = vst.msk [vmem:[#allocation10] sm:$0xff] %vm311, %v1190
    %v1195 = vld [vmem:[#allocation3] sm:$0xff]
    %v1196 = vld [vmem:[#allocation3 + $0x8] sm:$0xff]
    %v1197 = vld [vmem:[#allocation3 + $0x10] sm:$0xff]
    %v1198 = vld [vmem:[#allocation3 + $0x18] sm:$0xff]
    %v1199 = vld [vmem:[#allocation3 + $0x20] sm:$0xff]
    %v1200 = vld [vmem:[#allocation3 + $0x28] sm:$0xff]
    %v1201 = vld [vmem:[#allocation3 + $0x30] sm:$0xff]
    %v1202 = vld [vmem:[#allocation3 + $0x38] sm:$0xff]
    %v1203 = vld [vmem:[#allocation7] sm:$0xff]
    %v1204 = vld [vmem:[#allocation7 + $0x8] sm:$0xff]
    %v1205 = vld [vmem:[#allocation7 + $0x10] sm:$0xff]
    %v1206 = vld [vmem:[#allocation7 + $0x18] sm:$0xff]
    %v1207 = vld [vmem:[#allocation7 + $0x20] sm:$0xff]
    %v1208 = vld [vmem:[#allocation7 + $0x28] sm:$0xff]
    %v1209 = vld [vmem:[#allocation7 + $0x30] sm:$0xff]
    %v1210 = vld [vmem:[#allocation7 + $0x38] sm:$0xff]
    %v1211 = vld [vmem:[#allocation7 + $0x40] sm:$0xff]
    %v1212 = vld [vmem:[#allocation7 + $0x48] sm:$0xff]
    %v1213 = vld [vmem:[#allocation7 + $0x50] sm:$0xff]
    %v1214 = vld [vmem:[#allocation7 + $0x58] sm:$0xff]
    %v1215 = vld [vmem:[#allocation7 + $0x60] sm:$0xff]
    %v1216 = vld [vmem:[#allocation7 + $0x68] sm:$0xff]
    %v1217 = vld [vmem:[#allocation7 + $0x70] sm:$0xff]
    %v1218 = vld [vmem:[#allocation7 + $0x78] sm:$0xff]
    %v1219 = vld [vmem:[%s6] sm:$0x3]
    %v1221 = vlaneseq
    %v1222 = vshrl.u32 %v1221, 7
    %v1223 = vsub.s32 0, %v1222
    %v1224 = vrot.slane %v1219, %v1223
    %v1225 = vlaneseq
    %v1226 = vshrl.u32 %v1225, 7
    %v1227 = vsub.s32 1, %v1226
    %v1228 = vrot.slane %v1219, %v1227
    %v1232 = vsel %vm311, %v1195, 0
    %v1235 = vsel %vm311, %v1196, 0
    %v1238 = vsel %vm311, %v1197, 0
    %v1241 = vsel %vm311, %v1198, 0
    %v1244 = vsel %vm311, %v1199, 0
    %v1247 = vsel %vm311, %v1200, 0
    %v1250 = vsel %vm311, %v1201, 0
    %v1253 = vsel %vm311, %v1202, 0
    %1255 = vmatprep.subr.mxu0 0.0
    %1256 = vmatpush1.msra.mxu0 0.0
    %1257 = vmatprep.subr.mxu0 0.0
    %1258 = vmatpush1.msra.mxu0 0.0
    %1259 = vmatprep.subr.mxu0 0.0
    %1260 = vmatpush1.msra.mxu0 0.0
    %1261 = vmatprep.subr.mxu0 0.0
    %1262 = vmatpush1.msra.mxu0 0.0
    %1263 = vmatprep.subr.mxu0 0.0
    %1264 = vmatpush1.msra.mxu0 0.0
    %1265 = vmatprep.subr.mxu0 0.0
    %1266 = vmatpush1.msra.mxu0 0.0
    %1267 = vmatprep.subr.mxu0 0.0
    %1268 = vmatpush1.msra.mxu0 0.0
    %1269 = vmatprep.subr.mxu0 0.0
    %1270 = vmatpush1.msra.mxu0 0.0
    %1271 = vmatprep.subr.mxu0 %v1218
    %1272 = vmatpush1.msra.mxu0 %v1217
    %1273 = vmatprep.subr.mxu0 %v1216
    %1274 = vmatpush1.msra.mxu0 %v1215
    %1275 = vmatprep.subr.mxu0 %v1214
    %1276 = vmatpush1.msra.mxu0 %v1213
    %1277 = vmatprep.subr.mxu0 %v1212
    %1278 = vmatpush1.msra.mxu0 %v1211
    %1279 = vmatprep.subr.mxu0 %v1210
    %1280 = vmatpush1.msra.mxu0 %v1209
    %1281 = vmatprep.subr.mxu0 %v1208
    %1282 = vmatpush1.msra.mxu0 %v1207
    %1283 = vmatprep.subr.mxu0 %v1206
    %1284 = vmatpush1.msra.mxu0 %v1205
    %1285 = vmatprep.subr.mxu0 %v1204
    %1286 = vmatpush1.msra.mxu0 %v1203
    %1287 = vmatprep.subr.mxu0 0.0
    %1288 = vmatpush2.msra.mxu0 0.0
    %1289 = vmatprep.subr.mxu0 0.0
    %1290 = vmatpush2.msra.mxu0 0.0
    %1291 = vmatprep.subr.mxu0 0.0
    %1292 = vmatpush2.msra.mxu0 0.0
    %1293 = vmatprep.subr.mxu0 0.0
    %1294 = vmatpush2.msra.mxu0 0.0
    %1295 = vmatprep.subr.mxu0 0.0
    %1296 = vmatpush2.msra.mxu0 0.0
    %1297 = vmatprep.subr.mxu0 0.0
    %1298 = vmatpush2.msra.mxu0 0.0
    %1299 = vmatprep.subr.mxu0 0.0
    %1300 = vmatpush2.msra.mxu0 0.0
    %1301 = vmatprep.subr.mxu0 0.0
    %1302 = vmatpush2.msra.mxu0 0.0
    %1303 = vmatprep.subr.mxu0 0.0
    %1304 = vmatpush2.msra.mxu0 0.0
    %1305 = vmatprep.subr.mxu0 0.0
    %1306 = vmatpush2.msra.mxu0 0.0
    %1307 = vmatprep.subr.mxu0 0.0
    %1308 = vmatpush2.msra.mxu0 0.0
    %1309 = vmatprep.subr.mxu0 0.0
    %1310 = vmatpush2.msra.mxu0 0.0
    %1311 = vmatprep.subr.mxu0 0.0
    %1312 = vmatpush2.msra.mxu0 0.0
    %1313 = vmatprep.subr.mxu0 0.0
    %1314 = vmatpush2.msra.mxu0 0.0
    %1315 = vmatprep.subr.mxu0 0.0
    %1316 = vmatpush2.msra.mxu0 0.0
    %1317 = vmatprep.subr.mxu0 0.0
    %1318 = vmatpush2.msra.mxu0 0.0
    %1319 = vmatprep.mubr.f32.mxu0 0.0
    %1320 = vmatmul.mubr.f32.gmra.mxu0 %v1232
    %v1321 = vpop.f32.mrf.mxu0
    %v1322 = vadd.f32 %v1224, %v1321
    %v1323 = vpop.f32.mrf.mxu0
    %v1324 = vadd.f32 %v1228, %v1323
    %1325 = vmatprep.mubr.f32.mxu0 0.0
    %1326 = vmatmul.mubr.f32.gmra.mxu0 %v1235
    %v1327 = vpop.f32.mrf.mxu0
    %v1328 = vadd.f32 %v1224, %v1327
    %v1329 = vpop.f32.mrf.mxu0
    %v1330 = vadd.f32 %v1228, %v1329
    %1331 = vmatprep.mubr.f32.mxu0 0.0
    %1332 = vmatmul.mubr.f32.gmra.mxu0 %v1238
    %v1333 = vpop.f32.mrf.mxu0
    %v1334 = vadd.f32 %v1224, %v1333
    %v1335 = vpop.f32.mrf.mxu0
    %v1336 = vadd.f32 %v1228, %v1335
    %1337 = vmatprep.mubr.f32.mxu0 0.0
    %1338 = vmatmul.mubr.f32.gmra.mxu0 %v1241
    %v1339 = vpop.f32.mrf.mxu0
    %v1340 = vadd.f32 %v1224, %v1339
    %v1341 = vpop.f32.mrf.mxu0
    %v1342 = vadd.f32 %v1228, %v1341
    %1343 = vmatprep.mubr.f32.mxu0 0.0
    %1344 = vmatmul.mubr.f32.gmra.mxu0 %v1244
    %v1345 = vpop.f32.mrf.mxu0
    %v1346 = vadd.f32 %v1224, %v1345
    %v1347 = vpop.f32.mrf.mxu0
    %v1348 = vadd.f32 %v1228, %v1347
    %1349 = vmatprep.mubr.f32.mxu0 0.0
    %1350 = vmatmul.mubr.f32.gmra.mxu0 %v1247
    %v1351 = vpop.f32.mrf.mxu0
    %v1352 = vadd.f32 %v1224, %v1351
    %v1353 = vpop.f32.mrf.mxu0
    %v1354 = vadd.f32 %v1228, %v1353
    %1355 = vmatprep.mubr.f32.mxu0 0.0
    %1356 = vmatmul.mubr.f32.gmra.mxu0 %v1250
    %v1357 = vpop.f32.mrf.mxu0
    %v1358 = vadd.f32 %v1224, %v1357
    %v1359 = vpop.f32.mrf.mxu0
    %v1360 = vadd.f32 %v1228, %v1359
    %1361 = vmatprep.mubr.f32.mxu0 0.0
    %1362 = vmatmul.mubr.f32.gmra.mxu0 %v1253
    %v1363 = vpop.f32.mrf.mxu0
    %v1364 = vadd.f32 %v1224, %v1363
    %v1365 = vpop.f32.mrf.mxu0
    %v1366 = vadd.f32 %v1228, %v1365
    %1367 = vdwg.mxu0
    %1368 = vst [vmem:[#allocation2] sm:$0xff] %v1322
    %1369 = vst [vmem:[#allocation2 + $0x8] sm:$0xff] %v1324
    %1370 = vst [vmem:[#allocation2 + $0x10] sm:$0xff] %v1328
    %1371 = vst [vmem:[#allocation2 + $0x18] sm:$0xff] %v1330
    %1372 = vst [vmem:[#allocation2 + $0x20] sm:$0xff] %v1334
    %1373 = vst [vmem:[#allocation2 + $0x28] sm:$0xff] %v1336
    %1374 = vst [vmem:[#allocation2 + $0x30] sm:$0xff] %v1340
    %1375 = vst [vmem:[#allocation2 + $0x38] sm:$0xff] %v1342
    %1376 = vst [vmem:[#allocation2 + $0x40] sm:$0xff] %v1346
    %1377 = vst [vmem:[#allocation2 + $0x48] sm:$0xff] %v1348
    %1378 = vst [vmem:[#allocation2 + $0x50] sm:$0xff] %v1352
    %1379 = vst [vmem:[#allocation2 + $0x58] sm:$0xff] %v1354
    %1380 = vst [vmem:[#allocation2 + $0x60] sm:$0xff] %v1358
    %1381 = vst [vmem:[#allocation2 + $0x68] sm:$0xff] %v1360
    %1382 = vst [vmem:[#allocation2 + $0x70] sm:$0xff] %v1364
    %1383 = vst [vmem:[#allocation2 + $0x78] sm:$0xff] %v1366
    %v1384 = vld [vmem:[#allocation9] sm:$0xff]
    %v1385 = vld [vmem:[#allocation9 + $0x8] sm:$0xff]
    %v1386 = vld [vmem:[#allocation9 + $0x10] sm:$0xff]
    %v1387 = vld [vmem:[#allocation9 + $0x18] sm:$0xff]
    %v1388 = vld [vmem:[#allocation9 + $0x20] sm:$0xff]
    %v1389 = vld [vmem:[#allocation9 + $0x28] sm:$0xff]
    %v1390 = vld [vmem:[#allocation9 + $0x30] sm:$0xff]
    %v1391 = vld [vmem:[#allocation9 + $0x38] sm:$0xff]
    %v1392 = vld [vmem:[#allocation9 + $0x40] sm:$0xff]
    %v1393 = vld [vmem:[#allocation9 + $0x48] sm:$0xff]
    %v1394 = vld [vmem:[#allocation9 + $0x50] sm:$0xff]
    %v1395 = vld [vmem:[#allocation9 + $0x58] sm:$0xff]
    %v1396 = vld [vmem:[#allocation9 + $0x60] sm:$0xff]
    %v1397 = vld [vmem:[#allocation9 + $0x68] sm:$0xff]
    %v1398 = vld [vmem:[#allocation9 + $0x70] sm:$0xff]
    %v1399 = vld [vmem:[#allocation9 + $0x78] sm:$0xff]
    %s1400 = scalar_lea.vmem %s7, 8
    %v1401 = vld [vmem:[%s1400] sm:$0xff]
    %s1402 = scalar_lea.vmem %s8, 8
    %v1403 = vld [vmem:[%s1402] sm:$0xff]
    %v1404 = vld [vmem:[%s301] sm:$0xff]
    %v1405 = vld [vmem:[%s301 + $0x8] sm:$0xff]
    %v1406 = vld [vmem:[%s306] sm:$0xff]
    %v1407 = vld [vmem:[%s306 + $0x8] sm:$0xff]
    %v1408 = vsel %vm101, %v1404, %v1406
    %v1409 = vsel %vm102, %v1405, %v1407
    %v1411 = vsel %vm311, %v1401, 0
    %1413 = vmatprep.subr.mxu0 0.0
    %1414 = vmatpush1.msra.mxu0 0.0
    %1415 = vmatprep.subr.mxu0 0.0
    %1416 = vmatpush1.msra.mxu0 0.0
    %1417 = vmatprep.subr.mxu0 0.0
    %1418 = vmatpush1.msra.mxu0 0.0
    %1419 = vmatprep.subr.mxu0 0.0
    %1420 = vmatpush1.msra.mxu0 0.0
    %1421 = vmatprep.subr.mxu0 0.0
    %1422 = vmatpush1.msra.mxu0 0.0
    %1423 = vmatprep.subr.mxu0 0.0
    %1424 = vmatpush1.msra.mxu0 0.0
    %1425 = vmatprep.subr.mxu0 0.0
    %1426 = vmatpush1.msra.mxu0 0.0
    %1427 = vmatprep.subr.mxu0 0.0
    %1428 = vmatpush1.msra.mxu0 0.0
    %1429 = vmatprep.subr.mxu0 %v1399
    %1430 = vmatpush1.msra.mxu0 %v1398
    %1431 = vmatprep.subr.mxu0 %v1397
    %1432 = vmatpush1.msra.mxu0 %v1396
    %1433 = vmatprep.subr.mxu0 %v1395
    %1434 = vmatpush1.msra.mxu0 %v1394
    %1435 = vmatprep.subr.mxu0 %v1393
    %1436 = vmatpush1.msra.mxu0 %v1392
    %1437 = vmatprep.subr.mxu0 %v1391
    %1438 = vmatpush1.msra.mxu0 %v1390
    %1439 = vmatprep.subr.mxu0 %v1389
    %1440 = vmatpush1.msra.mxu0 %v1388
    %1441 = vmatprep.subr.mxu0 %v1387
    %1442 = vmatpush1.msra.mxu0 %v1386
    %1443 = vmatprep.subr.mxu0 %v1385
    %1444 = vmatpush1.msra.mxu0 %v1384
    %1445 = vmatprep.subr.mxu0 0.0
    %1446 = vmatpush2.msra.mxu0 0.0
    %1447 = vmatprep.subr.mxu0 0.0
    %1448 = vmatpush2.msra.mxu0 0.0
    %1449 = vmatprep.subr.mxu0 0.0
    %1450 = vmatpush2.msra.mxu0 0.0
    %1451 = vmatprep.subr.mxu0 0.0
    %1452 = vmatpush2.msra.mxu0 0.0
    %1453 = vmatprep.subr.mxu0 0.0
    %1454 = vmatpush2.msra.mxu0 0.0
    %1455 = vmatprep.subr.mxu0 0.0
    %1456 = vmatpush2.msra.mxu0 0.0
    %1457 = vmatprep.subr.mxu0 0.0
    %1458 = vmatpush2.msra.mxu0 0.0
    %1459 = vmatprep.subr.mxu0 0.0
    %1460 = vmatpush2.msra.mxu0 0.0
    %1461 = vmatprep.subr.mxu0 0.0
    %1462 = vmatpush2.msra.mxu0 0.0
    %1463 = vmatprep.subr.mxu0 0.0
    %1464 = vmatpush2.msra.mxu0 0.0
    %1465 = vmatprep.subr.mxu0 0.0
    %1466 = vmatpush2.msra.mxu0 0.0
    %1467 = vmatprep.subr.mxu0 0.0
    %1468 = vmatpush2.msra.mxu0 0.0
    %1469 = vmatprep.subr.mxu0 0.0
    %1470 = vmatpush2.msra.mxu0 0.0
    %1471 = vmatprep.subr.mxu0 0.0
    %1472 = vmatpush2.msra.mxu0 0.0
    %1473 = vmatprep.subr.mxu0 0.0
    %1474 = vmatpush2.msra.mxu0 0.0
    %1475 = vmatprep.subr.mxu0 0.0
    %1476 = vmatpush2.msra.mxu0 0.0
    %1477 = vmatprep.mubr.f32.mxu0 0.0
    %1478 = vmatmul.mubr.f32.gmra.mxu0 %v1411
    %v1479 = vpop.f32.mrf.mxu0
    %v1480 = vadd.f32 %v1408, %v1479
    %v1481 = vpop.f32.mrf.mxu0
    %v1482 = vadd.f32 %v1409, %v1481
    %1483 = vdwg.mxu0
    %v1484 = vxor.u32 %v1480, 2147483648
    %v1485 = vmul.f32 %v1484, 1.442695
    %v1486 = vpow.pop %v1485
    %v1487 = vadd.f32 %v1486, 1.0
    %v1488 = vrcp.pop %v1487
    %v1489 = vmul.f32 1.0, %v1488
    %v1490 = vtanh.pop %v1482
    %v1491 = vxor.u32 %v1482, 2147483648
    %v1492 = vmul.f32 %v1491, 1.442695
    %v1493 = vpow.pop %v1492
    %v1494 = vadd.f32 %v1493, 1.0
    %v1495 = vrcp.pop %v1494
    %v1496 = vmul.f32 1.0, %v1495
    %1498 = vrot.lane.b32.xlu0 %v1403, 64
    %v1499 = vpop.permute.xlu0 %1498
    %v1501 = vmul.f32 %v1489, %v1499
    %v1502 = vmul.f32 %v1489, %v1490
    %1504 = vrot.lane.b32.xlu0 %v1502, 64
    %v1505 = vpop.permute.xlu0 %1504
    %v1507 = vadd.f32 %v1501, %v1505
    %v1508 = vtanh.pop %v1507
    %v1509 = vmul.f32 %v1496, %v1508
    %v1510 = vld [vmem:[%s423] sm:$0xff]
    %v1511 = vld [vmem:[%s423 + $0x8] sm:$0xff]
    %v1512 = vld [vmem:[%s428] sm:$0xff]
    %v1513 = vld [vmem:[%s428 + $0x8] sm:$0xff]
    %v1514 = vsel %vm101, %v1510, %v1512
    %v1515 = vsel %vm102, %v1511, %v1513
    %1517 = vrot.lane.b32.xlu0 %v1509, 64
    %v1518 = vpop.permute.xlu0 %1517
    %v1519 = vsel %vm311, %v1518, 0
    %1521 = vmatprep.subr.mxu0 0.0
    %1522 = vmatpush1.msra.mxu0 0.0
    %1523 = vmatprep.subr.mxu0 0.0
    %1524 = vmatpush1.msra.mxu0 0.0
    %1525 = vmatprep.subr.mxu0 0.0
    %1526 = vmatpush1.msra.mxu0 0.0
    %1527 = vmatprep.subr.mxu0 0.0
    %1528 = vmatpush1.msra.mxu0 0.0
    %1529 = vmatprep.subr.mxu0 0.0
    %1530 = vmatpush1.msra.mxu0 0.0
    %1531 = vmatprep.subr.mxu0 0.0
    %1532 = vmatpush1.msra.mxu0 0.0
    %1533 = vmatprep.subr.mxu0 0.0
    %1534 = vmatpush1.msra.mxu0 0.0
    %1535 = vmatprep.subr.mxu0 0.0
    %1536 = vmatpush1.msra.mxu0 0.0
    %1537 = vmatprep.subr.mxu0 %v1399
    %1538 = vmatpush1.msra.mxu0 %v1398
    %1539 = vmatprep.subr.mxu0 %v1397
    %1540 = vmatpush1.msra.mxu0 %v1396
    %1541 = vmatprep.subr.mxu0 %v1395
    %1542 = vmatpush1.msra.mxu0 %v1394
    %1543 = vmatprep.subr.mxu0 %v1393
    %1544 = vmatpush1.msra.mxu0 %v1392
    %1545 = vmatprep.subr.mxu0 %v1391
    %1546 = vmatpush1.msra.mxu0 %v1390
    %1547 = vmatprep.subr.mxu0 %v1389
    %1548 = vmatpush1.msra.mxu0 %v1388
    %1549 = vmatprep.subr.mxu0 %v1387
    %1550 = vmatpush1.msra.mxu0 %v1386
    %1551 = vmatprep.subr.mxu0 %v1385
    %1552 = vmatpush1.msra.mxu0 %v1384
    %1553 = vmatprep.subr.mxu0 0.0
    %1554 = vmatpush2.msra.mxu0 0.0
    %1555 = vmatprep.subr.mxu0 0.0
    %1556 = vmatpush2.msra.mxu0 0.0
    %1557 = vmatprep.subr.mxu0 0.0
    %1558 = vmatpush2.msra.mxu0 0.0
    %1559 = vmatprep.subr.mxu0 0.0
    %1560 = vmatpush2.msra.mxu0 0.0
    %1561 = vmatprep.subr.mxu0 0.0
    %1562 = vmatpush2.msra.mxu0 0.0
    %1563 = vmatprep.subr.mxu0 0.0
    %1564 = vmatpush2.msra.mxu0 0.0
    %1565 = vmatprep.subr.mxu0 0.0
    %1566 = vmatpush2.msra.mxu0 0.0
    %1567 = vmatprep.subr.mxu0 0.0
    %1568 = vmatpush2.msra.mxu0 0.0
    %1569 = vmatprep.subr.mxu0 0.0
    %1570 = vmatpush2.msra.mxu0 0.0
    %1571 = vmatprep.subr.mxu0 0.0
    %1572 = vmatpush2.msra.mxu0 0.0
    %1573 = vmatprep.subr.mxu0 0.0
    %1574 = vmatpush2.msra.mxu0 0.0
    %1575 = vmatprep.subr.mxu0 0.0
    %1576 = vmatpush2.msra.mxu0 0.0
    %1577 = vmatprep.subr.mxu0 0.0
    %1578 = vmatpush2.msra.mxu0 0.0
    %1579 = vmatprep.subr.mxu0 0.0
    %1580 = vmatpush2.msra.mxu0 0.0
    %1581 = vmatprep.subr.mxu0 0.0
    %1582 = vmatpush2.msra.mxu0 0.0
    %1583 = vmatprep.subr.mxu0 0.0
    %1584 = vmatpush2.msra.mxu0 0.0
    %1585 = vmatprep.mubr.f32.mxu0 0.0
    %1586 = vmatmul.mubr.f32.gmra.mxu0 %v1519
    %v1587 = vpop.f32.mrf.mxu0
    %v1588 = vadd.f32 %v1514, %v1587
    %v1589 = vpop.f32.mrf.mxu0
    %v1590 = vadd.f32 %v1515, %v1589
    %1591 = vdwg.mxu0
    %v1592 = vxor.u32 %v1588, 2147483648
    %v1593 = vmul.f32 %v1592, 1.442695
    %v1594 = vpow.pop %v1593
    %v1595 = vadd.f32 %v1594, 1.0
    %v1596 = vrcp.pop %v1595
    %v1597 = vmul.f32 1.0, %v1596
    %v1598 = vtanh.pop %v1590
    %v1599 = vxor.u32 %v1590, 2147483648
    %v1600 = vmul.f32 %v1599, 1.442695
    %v1601 = vpow.pop %v1600
    %v1602 = vadd.f32 %v1601, 1.0
    %v1603 = vrcp.pop %v1602
    %v1604 = vmul.f32 1.0, %v1603
    %v1605 = vmul.f32 %v1597, %v1507
    %v1606 = vmul.f32 %v1597, %v1598
    %1608 = vrot.lane.b32.xlu0 %v1606, 64
    %v1609 = vpop.permute.xlu0 %1608
    %v1611 = vadd.f32 %v1605, %v1609
    %v1612 = vtanh.pop %v1611
    %v1613 = vmul.f32 %v1604, %v1612
    %v1614 = vld [vmem:[%s538] sm:$0xff]
    %v1615 = vld [vmem:[%s538 + $0x8] sm:$0xff]
    %v1616 = vld [vmem:[%s543] sm:$0xff]
    %v1617 = vld [vmem:[%s543 + $0x8] sm:$0xff]
    %v1618 = vsel %vm101, %v1614, %v1616
    %v1619 = vsel %vm102, %v1615, %v1617
    %1621 = vrot.lane.b32.xlu0 %v1613, 64
    %v1622 = vpop.permute.xlu0 %1621
    %v1623 = vsel %vm311, %v1622, 0
    %1625 = vmatprep.subr.mxu0 0.0
    %1626 = vmatpush1.msra.mxu0 0.0
    %1627 = vmatprep.subr.mxu0 0.0
    %1628 = vmatpush1.msra.mxu0 0.0
    %1629 = vmatprep.subr.mxu0 0.0
    %1630 = vmatpush1.msra.mxu0 0.0
    %1631 = vmatprep.subr.mxu0 0.0
    %1632 = vmatpush1.msra.mxu0 0.0
    %1633 = vmatprep.subr.mxu0 0.0
    %1634 = vmatpush1.msra.mxu0 0.0
    %1635 = vmatprep.subr.mxu0 0.0
    %1636 = vmatpush1.msra.mxu0 0.0
    %1637 = vmatprep.subr.mxu0 0.0
    %1638 = vmatpush1.msra.mxu0 0.0
    %1639 = vmatprep.subr.mxu0 0.0
    %1640 = vmatpush1.msra.mxu0 0.0
    %1641 = vmatprep.subr.mxu0 %v1399
    %1642 = vmatpush1.msra.mxu0 %v1398
    %1643 = vmatprep.subr.mxu0 %v1397
    %1644 = vmatpush1.msra.mxu0 %v1396
    %1645 = vmatprep.subr.mxu0 %v1395
    %1646 = vmatpush1.msra.mxu0 %v1394
    %1647 = vmatprep.subr.mxu0 %v1393
    %1648 = vmatpush1.msra.mxu0 %v1392
    %1649 = vmatprep.subr.mxu0 %v1391
    %1650 = vmatpush1.msra.mxu0 %v1390
    %1651 = vmatprep.subr.mxu0 %v1389
    %1652 = vmatpush1.msra.mxu0 %v1388
    %1653 = vmatprep.subr.mxu0 %v1387
    %1654 = vmatpush1.msra.mxu0 %v1386
    %1655 = vmatprep.subr.mxu0 %v1385
    %1656 = vmatpush1.msra.mxu0 %v1384
    %1657 = vmatprep.subr.mxu0 0.0
    %1658 = vmatpush2.msra.mxu0 0.0
    %1659 = vmatprep.subr.mxu0 0.0
    %1660 = vmatpush2.msra.mxu0 0.0
    %1661 = vmatprep.subr.mxu0 0.0
    %1662 = vmatpush2.msra.mxu0 0.0
    %1663 = vmatprep.subr.mxu0 0.0
    %1664 = vmatpush2.msra.mxu0 0.0
    %1665 = vmatprep.subr.mxu0 0.0
    %1666 = vmatpush2.msra.mxu0 0.0
    %1667 = vmatprep.subr.mxu0 0.0
    %1668 = vmatpush2.msra.mxu0 0.0
    %1669 = vmatprep.subr.mxu0 0.0
    %1670 = vmatpush2.msra.mxu0 0.0
    %1671 = vmatprep.subr.mxu0 0.0
    %1672 = vmatpush2.msra.mxu0 0.0
    %1673 = vmatprep.subr.mxu0 0.0
    %1674 = vmatpush2.msra.mxu0 0.0
    %1675 = vmatprep.subr.mxu0 0.0
    %1676 = vmatpush2.msra.mxu0 0.0
    %1677 = vmatprep.subr.mxu0 0.0
    %1678 = vmatpush2.msra.mxu0 0.0
    %1679 = vmatprep.subr.mxu0 0.0
    %1680 = vmatpush2.msra.mxu0 0.0
    %1681 = vmatprep.subr.mxu0 0.0
    %1682 = vmatpush2.msra.mxu0 0.0
    %1683 = vmatprep.subr.mxu0 0.0
    %1684 = vmatpush2.msra.mxu0 0.0
    %1685 = vmatprep.subr.mxu0 0.0
    %1686 = vmatpush2.msra.mxu0 0.0
    %1687 = vmatprep.subr.mxu0 0.0
    %1688 = vmatpush2.msra.mxu0 0.0
    %1689 = vmatprep.mubr.f32.mxu0 0.0
    %1690 = vmatmul.mubr.f32.gmra.mxu0 %v1623
    %v1691 = vpop.f32.mrf.mxu0
    %v1692 = vadd.f32 %v1618, %v1691
    %v1693 = vpop.f32.mrf.mxu0
    %v1694 = vadd.f32 %v1619, %v1693
    %1695 = vdwg.mxu0
    %v1696 = vxor.u32 %v1692, 2147483648
    %v1697 = vmul.f32 %v1696, 1.442695
    %v1698 = vpow.pop %v1697
    %v1699 = vadd.f32 %v1698, 1.0
    %v1700 = vrcp.pop %v1699
    %v1701 = vmul.f32 1.0, %v1700
    %v1702 = vtanh.pop %v1694
    %v1703 = vxor.u32 %v1694, 2147483648
    %v1704 = vmul.f32 %v1703, 1.442695
    %v1705 = vpow.pop %v1704
    %v1706 = vadd.f32 %v1705, 1.0
    %v1707 = vrcp.pop %v1706
    %v1708 = vmul.f32 1.0, %v1707
    %v1709 = vmul.f32 %v1701, %v1611
    %v1710 = vmul.f32 %v1701, %v1702
    %1712 = vrot.lane.b32.xlu0 %v1710, 64
    %v1713 = vpop.permute.xlu0 %1712
    %v1715 = vadd.f32 %v1709, %v1713
    %v1716 = vtanh.pop %v1715
    %v1717 = vmul.f32 %v1708, %v1716
    %v1718 = vld [vmem:[%s653] sm:$0xff]
    %v1719 = vld [vmem:[%s653 + $0x8] sm:$0xff]
    %v1720 = vld [vmem:[%s658] sm:$0xff]
    %v1721 = vld [vmem:[%s658 + $0x8] sm:$0xff]
    %v1722 = vsel %vm101, %v1718, %v1720
    %v1723 = vsel %vm102, %v1719, %v1721
    %1725 = vrot.lane.b32.xlu0 %v1717, 64
    %v1726 = vpop.permute.xlu0 %1725
    %v1727 = vsel %vm311, %v1726, 0
    %1729 = vmatprep.subr.mxu0 0.0
    %1730 = vmatpush1.msra.mxu0 0.0
    %1731 = vmatprep.subr.mxu0 0.0
    %1732 = vmatpush1.msra.mxu0 0.0
    %1733 = vmatprep.subr.mxu0 0.0
    %1734 = vmatpush1.msra.mxu0 0.0
    %1735 = vmatprep.subr.mxu0 0.0
    %1736 = vmatpush1.msra.mxu0 0.0
    %1737 = vmatprep.subr.mxu0 0.0
    %1738 = vmatpush1.msra.mxu0 0.0
    %1739 = vmatprep.subr.mxu0 0.0
    %1740 = vmatpush1.msra.mxu0 0.0
    %1741 = vmatprep.subr.mxu0 0.0
    %1742 = vmatpush1.msra.mxu0 0.0
    %1743 = vmatprep.subr.mxu0 0.0
    %1744 = vmatpush1.msra.mxu0 0.0
    %1745 = vmatprep.subr.mxu0 %v1399
    %1746 = vmatpush1.msra.mxu0 %v1398
    %1747 = vmatprep.subr.mxu0 %v1397
    %1748 = vmatpush1.msra.mxu0 %v1396
    %1749 = vmatprep.subr.mxu0 %v1395
    %1750 = vmatpush1.msra.mxu0 %v1394
    %1751 = vmatprep.subr.mxu0 %v1393
    %1752 = vmatpush1.msra.mxu0 %v1392
    %1753 = vmatprep.subr.mxu0 %v1391
    %1754 = vmatpush1.msra.mxu0 %v1390
    %1755 = vmatprep.subr.mxu0 %v1389
    %1756 = vmatpush1.msra.mxu0 %v1388
    %1757 = vmatprep.subr.mxu0 %v1387
    %1758 = vmatpush1.msra.mxu0 %v1386
    %1759 = vmatprep.subr.mxu0 %v1385
    %1760 = vmatpush1.msra.mxu0 %v1384
    %1761 = vmatprep.subr.mxu0 0.0
    %1762 = vmatpush2.msra.mxu0 0.0
    %1763 = vmatprep.subr.mxu0 0.0
    %1764 = vmatpush2.msra.mxu0 0.0
    %1765 = vmatprep.subr.mxu0 0.0
    %1766 = vmatpush2.msra.mxu0 0.0
    %1767 = vmatprep.subr.mxu0 0.0
    %1768 = vmatpush2.msra.mxu0 0.0
    %1769 = vmatprep.subr.mxu0 0.0
    %1770 = vmatpush2.msra.mxu0 0.0
    %1771 = vmatprep.subr.mxu0 0.0
    %1772 = vmatpush2.msra.mxu0 0.0
    %1773 = vmatprep.subr.mxu0 0.0
    %1774 = vmatpush2.msra.mxu0 0.0
    %1775 = vmatprep.subr.mxu0 0.0
    %1776 = vmatpush2.msra.mxu0 0.0
    %1777 = vmatprep.subr.mxu0 0.0
    %1778 = vmatpush2.msra.mxu0 0.0
    %1779 = vmatprep.subr.mxu0 0.0
    %1780 = vmatpush2.msra.mxu0 0.0
    %1781 = vmatprep.subr.mxu0 0.0
    %1782 = vmatpush2.msra.mxu0 0.0
    %1783 = vmatprep.subr.mxu0 0.0
    %1784 = vmatpush2.msra.mxu0 0.0
    %1785 = vmatprep.subr.mxu0 0.0
    %1786 = vmatpush2.msra.mxu0 0.0
    %1787 = vmatprep.subr.mxu0 0.0
    %1788 = vmatpush2.msra.mxu0 0.0
    %1789 = vmatprep.subr.mxu0 0.0
    %1790 = vmatpush2.msra.mxu0 0.0
    %1791 = vmatprep.subr.mxu0 0.0
    %1792 = vmatpush2.msra.mxu0 0.0
    %1793 = vmatprep.mubr.f32.mxu0 0.0
    %1794 = vmatmul.mubr.f32.gmra.mxu0 %v1727
    %v1795 = vpop.f32.mrf.mxu0
    %v1796 = vadd.f32 %v1722, %v1795
    %v1797 = vpop.f32.mrf.mxu0
    %v1798 = vadd.f32 %v1723, %v1797
    %1799 = vdwg.mxu0
    %v1800 = vxor.u32 %v1796, 2147483648
    %v1801 = vmul.f32 %v1800, 1.442695
    %v1802 = vpow.pop %v1801
    %v1803 = vadd.f32 %v1802, 1.0
    %v1804 = vrcp.pop %v1803
    %v1805 = vmul.f32 1.0, %v1804
    %v1806 = vtanh.pop %v1798
    %v1807 = vxor.u32 %v1798, 2147483648
    %v1808 = vmul.f32 %v1807, 1.442695
    %v1809 = vpow.pop %v1808
    %v1810 = vadd.f32 %v1809, 1.0
    %v1811 = vrcp.pop %v1810
    %v1812 = vmul.f32 1.0, %v1811
    %v1813 = vmul.f32 %v1805, %v1715
    %v1814 = vmul.f32 %v1805, %v1806
    %1816 = vrot.lane.b32.xlu0 %v1814, 64
    %v1817 = vpop.permute.xlu0 %1816
    %v1819 = vadd.f32 %v1813, %v1817
    %v1820 = vtanh.pop %v1819
    %v1821 = vmul.f32 %v1812, %v1820
    %v1822 = vsel %vm101, %v1720, %v1718
    %v1823 = vsel %vm102, %v1721, %v1719
    %1825 = vrot.lane.b32.xlu0 %v1821, 64
    %v1826 = vpop.permute.xlu0 %1825
    %v1827 = vsel %vm311, %v1826, 0
    %1829 = vmatprep.subr.mxu0 0.0
    %1830 = vmatpush1.msra.mxu0 0.0
    %1831 = vmatprep.subr.mxu0 0.0
    %1832 = vmatpush1.msra.mxu0 0.0
    %1833 = vmatprep.subr.mxu0 0.0
    %1834 = vmatpush1.msra.mxu0 0.0
    %1835 = vmatprep.subr.mxu0 0.0
    %1836 = vmatpush1.msra.mxu0 0.0
    %1837 = vmatprep.subr.mxu0 0.0
    %1838 = vmatpush1.msra.mxu0 0.0
    %1839 = vmatprep.subr.mxu0 0.0
    %1840 = vmatpush1.msra.mxu0 0.0
    %1841 = vmatprep.subr.mxu0 0.0
    %1842 = vmatpush1.msra.mxu0 0.0
    %1843 = vmatprep.subr.mxu0 0.0
    %1844 = vmatpush1.msra.mxu0 0.0
    %1845 = vmatprep.subr.mxu0 %v1399
    %1846 = vmatpush1.msra.mxu0 %v1398
    %1847 = vmatprep.subr.mxu0 %v1397
    %1848 = vmatpush1.msra.mxu0 %v1396
    %1849 = vmatprep.subr.mxu0 %v1395
    %1850 = vmatpush1.msra.mxu0 %v1394
    %1851 = vmatprep.subr.mxu0 %v1393
    %1852 = vmatpush1.msra.mxu0 %v1392
    %1853 = vmatprep.subr.mxu0 %v1391
    %1854 = vmatpush1.msra.mxu0 %v1390
    %1855 = vmatprep.subr.mxu0 %v1389
    %1856 = vmatpush1.msra.mxu0 %v1388
    %1857 = vmatprep.subr.mxu0 %v1387
    %1858 = vmatpush1.msra.mxu0 %v1386
    %1859 = vmatprep.subr.mxu0 %v1385
    %1860 = vmatpush1.msra.mxu0 %v1384
    %1861 = vmatprep.subr.mxu0 0.0
    %1862 = vmatpush2.msra.mxu0 0.0
    %1863 = vmatprep.subr.mxu0 0.0
    %1864 = vmatpush2.msra.mxu0 0.0
    %1865 = vmatprep.subr.mxu0 0.0
    %1866 = vmatpush2.msra.mxu0 0.0
    %1867 = vmatprep.subr.mxu0 0.0
    %1868 = vmatpush2.msra.mxu0 0.0
    %1869 = vmatprep.subr.mxu0 0.0
    %1870 = vmatpush2.msra.mxu0 0.0
    %1871 = vmatprep.subr.mxu0 0.0
    %1872 = vmatpush2.msra.mxu0 0.0
    %1873 = vmatprep.subr.mxu0 0.0
    %1874 = vmatpush2.msra.mxu0 0.0
    %1875 = vmatprep.subr.mxu0 0.0
    %1876 = vmatpush2.msra.mxu0 0.0
    %1877 = vmatprep.subr.mxu0 0.0
    %1878 = vmatpush2.msra.mxu0 0.0
    %1879 = vmatprep.subr.mxu0 0.0
    %1880 = vmatpush2.msra.mxu0 0.0
    %1881 = vmatprep.subr.mxu0 0.0
    %1882 = vmatpush2.msra.mxu0 0.0
    %1883 = vmatprep.subr.mxu0 0.0
    %1884 = vmatpush2.msra.mxu0 0.0
    %1885 = vmatprep.subr.mxu0 0.0
    %1886 = vmatpush2.msra.mxu0 0.0
    %1887 = vmatprep.subr.mxu0 0.0
    %1888 = vmatpush2.msra.mxu0 0.0
    %1889 = vmatprep.subr.mxu0 0.0
    %1890 = vmatpush2.msra.mxu0 0.0
    %1891 = vmatprep.subr.mxu0 0.0
    %1892 = vmatpush2.msra.mxu0 0.0
    %1893 = vmatprep.mubr.f32.mxu0 0.0
    %1894 = vmatmul.mubr.f32.gmra.mxu0 %v1827
    %v1895 = vpop.f32.mrf.mxu0
    %v1896 = vadd.f32 %v1822, %v1895
    %v1897 = vpop.f32.mrf.mxu0
    %v1898 = vadd.f32 %v1823, %v1897
    %1899 = vdwg.mxu0
    %v1900 = vxor.u32 %v1896, 2147483648
    %v1901 = vmul.f32 %v1900, 1.442695
    %v1902 = vpow.pop %v1901
    %v1903 = vadd.f32 %v1902, 1.0
    %v1904 = vrcp.pop %v1903
    %v1905 = vmul.f32 1.0, %v1904
    %v1906 = vtanh.pop %v1898
    %v1907 = vxor.u32 %v1898, 2147483648
    %v1908 = vmul.f32 %v1907, 1.442695
    %v1909 = vpow.pop %v1908
    %v1910 = vadd.f32 %v1909, 1.0
    %v1911 = vrcp.pop %v1910
    %v1912 = vmul.f32 1.0, %v1911
    %v1913 = vmul.f32 %v1905, %v1819
    %v1914 = vmul.f32 %v1905, %v1906
    %1916 = vrot.lane.b32.xlu0 %v1914, 64
    %v1917 = vpop.permute.xlu0 %1916
    %v1919 = vadd.f32 %v1913, %v1917
    %v1920 = vtanh.pop %v1919
    %v1921 = vmul.f32 %v1912, %v1920
    %v1922 = vsel %vm101, %v1616, %v1614
    %v1923 = vsel %vm102, %v1617, %v1615
    %1925 = vrot.lane.b32.xlu0 %v1921, 64
    %v1926 = vpop.permute.xlu0 %1925
    %v1927 = vsel %vm311, %v1926, 0
    %1929 = vmatprep.subr.mxu0 0.0
    %1930 = vmatpush1.msra.mxu0 0.0
    %1931 = vmatprep.subr.mxu0 0.0
    %1932 = vmatpush1.msra.mxu0 0.0
    %1933 = vmatprep.subr.mxu0 0.0
    %1934 = vmatpush1.msra.mxu0 0.0
    %1935 = vmatprep.subr.mxu0 0.0
    %1936 = vmatpush1.msra.mxu0 0.0
    %1937 = vmatprep.subr.mxu0 0.0
    %1938 = vmatpush1.msra.mxu0 0.0
    %1939 = vmatprep.subr.mxu0 0.0
    %1940 = vmatpush1.msra.mxu0 0.0
    %1941 = vmatprep.subr.mxu0 0.0
    %1942 = vmatpush1.msra.mxu0 0.0
    %1943 = vmatprep.subr.mxu0 0.0
    %1944 = vmatpush1.msra.mxu0 0.0
    %1945 = vmatprep.subr.mxu0 %v1399
    %1946 = vmatpush1.msra.mxu0 %v1398
    %1947 = vmatprep.subr.mxu0 %v1397
    %1948 = vmatpush1.msra.mxu0 %v1396
    %1949 = vmatprep.subr.mxu0 %v1395
    %1950 = vmatpush1.msra.mxu0 %v1394
    %1951 = vmatprep.subr.mxu0 %v1393
    %1952 = vmatpush1.msra.mxu0 %v1392
    %1953 = vmatprep.subr.mxu0 %v1391
    %1954 = vmatpush1.msra.mxu0 %v1390
    %1955 = vmatprep.subr.mxu0 %v1389
    %1956 = vmatpush1.msra.mxu0 %v1388
    %1957 = vmatprep.subr.mxu0 %v1387
    %1958 = vmatpush1.msra.mxu0 %v1386
    %1959 = vmatprep.subr.mxu0 %v1385
    %1960 = vmatpush1.msra.mxu0 %v1384
    %1961 = vmatprep.subr.mxu0 0.0
    %1962 = vmatpush2.msra.mxu0 0.0
    %1963 = vmatprep.subr.mxu0 0.0
    %1964 = vmatpush2.msra.mxu0 0.0
    %1965 = vmatprep.subr.mxu0 0.0
    %1966 = vmatpush2.msra.mxu0 0.0
    %1967 = vmatprep.subr.mxu0 0.0
    %1968 = vmatpush2.msra.mxu0 0.0
    %1969 = vmatprep.subr.mxu0 0.0
    %1970 = vmatpush2.msra.mxu0 0.0
    %1971 = vmatprep.subr.mxu0 0.0
    %1972 = vmatpush2.msra.mxu0 0.0
    %1973 = vmatprep.subr.mxu0 0.0
    %1974 = vmatpush2.msra.mxu0 0.0
    %1975 = vmatprep.subr.mxu0 0.0
    %1976 = vmatpush2.msra.mxu0 0.0
    %1977 = vmatprep.subr.mxu0 0.0
    %1978 = vmatpush2.msra.mxu0 0.0
    %1979 = vmatprep.subr.mxu0 0.0
    %1980 = vmatpush2.msra.mxu0 0.0
    %1981 = vmatprep.subr.mxu0 0.0
    %1982 = vmatpush2.msra.mxu0 0.0
    %1983 = vmatprep.subr.mxu0 0.0
    %1984 = vmatpush2.msra.mxu0 0.0
    %1985 = vmatprep.subr.mxu0 0.0
    %1986 = vmatpush2.msra.mxu0 0.0
    %1987 = vmatprep.subr.mxu0 0.0
    %1988 = vmatpush2.msra.mxu0 0.0
    %1989 = vmatprep.subr.mxu0 0.0
    %1990 = vmatpush2.msra.mxu0 0.0
    %1991 = vmatprep.subr.mxu0 0.0
    %1992 = vmatpush2.msra.mxu0 0.0
    %1993 = vmatprep.mubr.f32.mxu0 0.0
    %1994 = vmatmul.mubr.f32.gmra.mxu0 %v1927
    %v1995 = vpop.f32.mrf.mxu0
    %v1996 = vadd.f32 %v1922, %v1995
    %v1997 = vpop.f32.mrf.mxu0
    %v1998 = vadd.f32 %v1923, %v1997
    %1999 = vdwg.mxu0
    %v2000 = vxor.u32 %v1996, 2147483648
    %v2001 = vmul.f32 %v2000, 1.442695
    %v2002 = vpow.pop %v2001
    %v2003 = vadd.f32 %v2002, 1.0
    %v2004 = vrcp.pop %v2003
    %v2005 = vmul.f32 1.0, %v2004
    %v2006 = vtanh.pop %v1998
    %v2007 = vxor.u32 %v1998, 2147483648
    %v2008 = vmul.f32 %v2007, 1.442695
    %v2009 = vpow.pop %v2008
    %v2010 = vadd.f32 %v2009, 1.0
    %v2011 = vrcp.pop %v2010
    %v2012 = vmul.f32 1.0, %v2011
    %v2013 = vmul.f32 %v2005, %v1919
    %v2014 = vmul.f32 %v2005, %v2006
    %2016 = vrot.lane.b32.xlu0 %v2014, 64
    %v2017 = vpop.permute.xlu0 %2016
    %v2019 = vadd.f32 %v2013, %v2017
    %v2020 = vtanh.pop %v2019
    %v2021 = vmul.f32 %v2012, %v2020
    %v2022 = vsel %vm101, %v1512, %v1510
    %v2023 = vsel %vm102, %v1513, %v1511
    %2025 = vrot.lane.b32.xlu0 %v2021, 64
    %v2026 = vpop.permute.xlu0 %2025
    %v2027 = vsel %vm311, %v2026, 0
    %2029 = vmatprep.subr.mxu0 0.0
    %2030 = vmatpush1.msra.mxu0 0.0
    %2031 = vmatprep.subr.mxu0 0.0
    %2032 = vmatpush1.msra.mxu0 0.0
    %2033 = vmatprep.subr.mxu0 0.0
    %2034 = vmatpush1.msra.mxu0 0.0
    %2035 = vmatprep.subr.mxu0 0.0
    %2036 = vmatpush1.msra.mxu0 0.0
    %2037 = vmatprep.subr.mxu0 0.0
    %2038 = vmatpush1.msra.mxu0 0.0
    %2039 = vmatprep.subr.mxu0 0.0
    %2040 = vmatpush1.msra.mxu0 0.0
    %2041 = vmatprep.subr.mxu0 0.0
    %2042 = vmatpush1.msra.mxu0 0.0
    %2043 = vmatprep.subr.mxu0 0.0
    %2044 = vmatpush1.msra.mxu0 0.0
    %2045 = vmatprep.subr.mxu0 %v1399
    %2046 = vmatpush1.msra.mxu0 %v1398
    %2047 = vmatprep.subr.mxu0 %v1397
    %2048 = vmatpush1.msra.mxu0 %v1396
    %2049 = vmatprep.subr.mxu0 %v1395
    %2050 = vmatpush1.msra.mxu0 %v1394
    %2051 = vmatprep.subr.mxu0 %v1393
    %2052 = vmatpush1.msra.mxu0 %v1392
    %2053 = vmatprep.subr.mxu0 %v1391
    %2054 = vmatpush1.msra.mxu0 %v1390
    %2055 = vmatprep.subr.mxu0 %v1389
    %2056 = vmatpush1.msra.mxu0 %v1388
    %2057 = vmatprep.subr.mxu0 %v1387
    %2058 = vmatpush1.msra.mxu0 %v1386
    %2059 = vmatprep.subr.mxu0 %v1385
    %2060 = vmatpush1.msra.mxu0 %v1384
    %2061 = vmatprep.subr.mxu0 0.0
    %2062 = vmatpush2.msra.mxu0 0.0
    %2063 = vmatprep.subr.mxu0 0.0
    %2064 = vmatpush2.msra.mxu0 0.0
    %2065 = vmatprep.subr.mxu0 0.0
    %2066 = vmatpush2.msra.mxu0 0.0
    %2067 = vmatprep.subr.mxu0 0.0
    %2068 = vmatpush2.msra.mxu0 0.0
    %2069 = vmatprep.subr.mxu0 0.0
    %2070 = vmatpush2.msra.mxu0 0.0
    %2071 = vmatprep.subr.mxu0 0.0
    %2072 = vmatpush2.msra.mxu0 0.0
    %2073 = vmatprep.subr.mxu0 0.0
    %2074 = vmatpush2.msra.mxu0 0.0
    %2075 = vmatprep.subr.mxu0 0.0
    %2076 = vmatpush2.msra.mxu0 0.0
    %2077 = vmatprep.subr.mxu0 0.0
    %2078 = vmatpush2.msra.mxu0 0.0
    %2079 = vmatprep.subr.mxu0 0.0
    %2080 = vmatpush2.msra.mxu0 0.0
    %2081 = vmatprep.subr.mxu0 0.0
    %2082 = vmatpush2.msra.mxu0 0.0
    %2083 = vmatprep.subr.mxu0 0.0
    %2084 = vmatpush2.msra.mxu0 0.0
    %2085 = vmatprep.subr.mxu0 0.0
    %2086 = vmatpush2.msra.mxu0 0.0
    %2087 = vmatprep.subr.mxu0 0.0
    %2088 = vmatpush2.msra.mxu0 0.0
    %2089 = vmatprep.subr.mxu0 0.0
    %2090 = vmatpush2.msra.mxu0 0.0
    %2091 = vmatprep.subr.mxu0 0.0
    %2092 = vmatpush2.msra.mxu0 0.0
    %2093 = vmatprep.mubr.f32.mxu0 0.0
    %2094 = vmatmul.mubr.f32.gmra.mxu0 %v2027
    %v2095 = vpop.f32.mrf.mxu0
    %v2096 = vadd.f32 %v2022, %v2095
    %v2097 = vpop.f32.mrf.mxu0
    %v2098 = vadd.f32 %v2023, %v2097
    %2099 = vdwg.mxu0
    %v2100 = vxor.u32 %v2096, 2147483648
    %v2101 = vmul.f32 %v2100, 1.442695
    %v2102 = vpow.pop %v2101
    %v2103 = vadd.f32 %v2102, 1.0
    %v2104 = vrcp.pop %v2103
    %v2105 = vmul.f32 1.0, %v2104
    %v2106 = vtanh.pop %v2098
    %v2107 = vxor.u32 %v2098, 2147483648
    %v2108 = vmul.f32 %v2107, 1.442695
    %v2109 = vpow.pop %v2108
    %v2110 = vadd.f32 %v2109, 1.0
    %v2111 = vrcp.pop %v2110
    %v2112 = vmul.f32 1.0, %v2111
    %v2113 = vmul.f32 %v2105, %v2019
    %v2114 = vmul.f32 %v2105, %v2106
    %2116 = vrot.lane.b32.xlu0 %v2114, 64
    %v2117 = vpop.permute.xlu0 %2116
    %v2119 = vadd.f32 %v2113, %v2117
    %v2120 = vtanh.pop %v2119
    %v2121 = vmul.f32 %v2112, %v2120
    %v2122 = vsel %vm101, %v1406, %v1404
    %v2123 = vsel %vm102, %v1407, %v1405
    %2125 = vrot.lane.b32.xlu0 %v2121, 64
    %v2126 = vpop.permute.xlu0 %2125
    %v2127 = vsel %vm311, %v2126, 0
    %2129 = vmatprep.subr.mxu0 0.0
    %2130 = vmatpush1.msra.mxu0 0.0
    %2131 = vmatprep.subr.mxu0 0.0
    %2132 = vmatpush1.msra.mxu0 0.0
    %2133 = vmatprep.subr.mxu0 0.0
    %2134 = vmatpush1.msra.mxu0 0.0
    %2135 = vmatprep.subr.mxu0 0.0
    %2136 = vmatpush1.msra.mxu0 0.0
    %2137 = vmatprep.subr.mxu0 0.0
    %2138 = vmatpush1.msra.mxu0 0.0
    %2139 = vmatprep.subr.mxu0 0.0
    %2140 = vmatpush1.msra.mxu0 0.0
    %2141 = vmatprep.subr.mxu0 0.0
    %2142 = vmatpush1.msra.mxu0 0.0
    %2143 = vmatprep.subr.mxu0 0.0
    %2144 = vmatpush1.msra.mxu0 0.0
    %2145 = vmatprep.subr.mxu0 %v1399
    %2146 = vmatpush1.msra.mxu0 %v1398
    %2147 = vmatprep.subr.mxu0 %v1397
    %2148 = vmatpush1.msra.mxu0 %v1396
    %2149 = vmatprep.subr.mxu0 %v1395
    %2150 = vmatpush1.msra.mxu0 %v1394
    %2151 = vmatprep.subr.mxu0 %v1393
    %2152 = vmatpush1.msra.mxu0 %v1392
    %2153 = vmatprep.subr.mxu0 %v1391
    %2154 = vmatpush1.msra.mxu0 %v1390
    %2155 = vmatprep.subr.mxu0 %v1389
    %2156 = vmatpush1.msra.mxu0 %v1388
    %2157 = vmatprep.subr.mxu0 %v1387
    %2158 = vmatpush1.msra.mxu0 %v1386
    %2159 = vmatprep.subr.mxu0 %v1385
    %2160 = vmatpush1.msra.mxu0 %v1384
    %2161 = vmatprep.subr.mxu0 0.0
    %2162 = vmatpush2.msra.mxu0 0.0
    %2163 = vmatprep.subr.mxu0 0.0
    %2164 = vmatpush2.msra.mxu0 0.0
    %2165 = vmatprep.subr.mxu0 0.0
    %2166 = vmatpush2.msra.mxu0 0.0
    %2167 = vmatprep.subr.mxu0 0.0
    %2168 = vmatpush2.msra.mxu0 0.0
    %2169 = vmatprep.subr.mxu0 0.0
    %2170 = vmatpush2.msra.mxu0 0.0
    %2171 = vmatprep.subr.mxu0 0.0
    %2172 = vmatpush2.msra.mxu0 0.0
    %2173 = vmatprep.subr.mxu0 0.0
    %2174 = vmatpush2.msra.mxu0 0.0
    %2175 = vmatprep.subr.mxu0 0.0
    %2176 = vmatpush2.msra.mxu0 0.0
    %2177 = vmatprep.subr.mxu0 0.0
    %2178 = vmatpush2.msra.mxu0 0.0
    %2179 = vmatprep.subr.mxu0 0.0
    %2180 = vmatpush2.msra.mxu0 0.0
    %2181 = vmatprep.subr.mxu0 0.0
    %2182 = vmatpush2.msra.mxu0 0.0
    %2183 = vmatprep.subr.mxu0 0.0
    %2184 = vmatpush2.msra.mxu0 0.0
    %2185 = vmatprep.subr.mxu0 0.0
    %2186 = vmatpush2.msra.mxu0 0.0
    %2187 = vmatprep.subr.mxu0 0.0
    %2188 = vmatpush2.msra.mxu0 0.0
    %2189 = vmatprep.subr.mxu0 0.0
    %2190 = vmatpush2.msra.mxu0 0.0
    %2191 = vmatprep.subr.mxu0 0.0
    %2192 = vmatpush2.msra.mxu0 0.0
    %2193 = vmatprep.mubr.f32.mxu0 0.0
    %2194 = vmatmul.mubr.f32.gmra.mxu0 %v2127
    %v2195 = vpop.f32.mrf.mxu0
    %v2196 = vadd.f32 %v2122, %v2195
    %v2197 = vpop.f32.mrf.mxu0
    %v2198 = vadd.f32 %v2123, %v2197
    %2199 = vdwg.mxu0
    %v2200 = vxor.u32 %v2196, 2147483648
    %v2201 = vmul.f32 %v2200, 1.442695
    %v2202 = vpow.pop %v2201
    %v2203 = vadd.f32 %v2202, 1.0
    %v2204 = vrcp.pop %v2203
    %v2205 = vmul.f32 1.0, %v2204
    %v2206 = vtanh.pop %v2198
    %v2207 = vxor.u32 %v2198, 2147483648
    %v2208 = vmul.f32 %v2207, 1.442695
    %v2209 = vpow.pop %v2208
    %v2210 = vadd.f32 %v2209, 1.0
    %v2211 = vrcp.pop %v2210
    %v2212 = vmul.f32 1.0, %v2211
    %v2213 = vmul.f32 %v2205, %v2119
    %v2214 = vmul.f32 %v2205, %v2206
    %2216 = vrot.lane.b32.xlu0 %v2214, 64
    %v2217 = vpop.permute.xlu0 %2216
    %v2219 = vadd.f32 %v2213, %v2217
    %v2220 = vtanh.pop %v2219
    %v2221 = vmul.f32 %v2212, %v2220
    %2223 = vrot.lane.b32.xlu0 %v2221, 64
    %v2224 = vpop.permute.xlu0 %2223
    %s2226 = scalar_lea.vmem [#allocation10], 8
    %2227 = vst.msk [vmem:[%s2226] sm:$0xff] %vm311, %v2224
    // Predicated region
    $region50: #{tpu_custom_call.1} parent=1 // pred_check
      _
    $region51: #{tpu_custom_call.1} parent=1 // pred_check_branch
      %2229 = sbr.rel (0) target = $region53
    $region52: #{tpu_custom_call.1} parent=1 // pred_region
      %s2231 = ssub.s32 256, 256
      %2232 = vsyncadd [#allocation6], %s2231
      %s2233 = sshll.u32 [#allocation10], 4
      %s2234 = int_to_ptr.vmem [resolvable:$true] %s2233
      %2239 = dma.vmem_to_hbm [thread:$0]  %s2234, 256, %s9, [#allocation6], 128, 128, 8
    $region53: #{tpu_custom_call.1} parent=1 // pred_fallthru
      _
    // Predicated region
    $region54: #{tpu_custom_call.1} parent=1 // pred_check
      _
    $region55: #{tpu_custom_call.1} parent=1 // pred_check_branch
      %2241 = sbr.rel (0) target = $region57
    $region56: #{tpu_custom_call.1} parent=1 // pred_region
      %2242 = dma.done [#allocation6], 256
    $region57: #{tpu_custom_call.1} parent=1 // pred_fallthru
      _
    %2243 = vsyncpa [#allocation5], 1
    %2244 = vsyncpa [#allocation8], 1
    %2245 = vsyncpa [#allocation6], 1

</llo_original>
